<compile_context>
chip_gen: v7x
topology: tpu7x:2x2x1
jax: 0.10.0
libtpu: 0.0.40
codegen_flags: <defaults>
</compile_context>

<pallas_src>
import numpy as np
import jax
import jax.numpy as jnp
from jax.experimental import pallas as pl
from jax.experimental.pallas import tpu as pltpu


def _fused_vqa_kernel(q_ref, wemb_ref, wih_ref, whh_ref, bih_ref, bhh_ref,
                      img_ref, sel_ref, selT_ref,
                      wfa_ref, wha_ref, ba_ref,
                      wfap_ref, whap_ref, bap_ref,
                      watt_ref, batt_ref,
                      wq_ref, bq_ref, wqp_ref, bqp_ref,
                      wv_ref, bv_ref, wvp_ref, bvp_ref,
                      wc_ref, bc_ref, wcp_ref, bcp_ref,
                      wclf_ref, bclf_ref,
                      out_ref, emb_scratch):
    B = out_ref.shape[0]
    SB, _E = emb_scratch.shape
    S = SB // B
    H = whh_ref.shape[0]

    def dot(a, b):
        return jnp.dot(a, b, preferred_element_type=jnp.float32)

    # ---- 1. Embedding gather: SMEM token ids -> rows of wemb (VMEM) -------------
    # Rows written in seq-major order (t*B + b) so one matmul covers every timestep.
    for t in range(S):
        for b in range(B):
            tok = q_ref[b * S + t]                               # scalar from SMEM
            emb_scratch[pl.ds(t * B + b, 1), :] = wemb_ref[pl.ds(tok, 1), :]
    emb = emb_scratch[...]                                       # (S*B, E)

    # ---- 2. GRU: hoisted input projections + fused gate matmuls -----------------
    x_proj = dot(emb, wih_ref[...]) + bih_ref[...]               # (S*B, 3H), all steps at once
    whh = whh_ref[...]                                           # (H, 3H)
    bhh = bhh_ref[...]                                           # (1, 3H)
    h = jnp.zeros((B, H), dtype=jnp.float32)
    for t in range(S):                                           # static unroll (S is small)
        xp = x_proj[t * B:(t + 1) * B, :]                        # (B, 3H)
        hp = dot(h, whh) + bhh                                   # (B, 3H) single recurrent matmul
        r = jax.nn.sigmoid(xp[:, 0:H] + hp[:, 0:H])
        z = jax.nn.sigmoid(xp[:, H:2 * H] + hp[:, H:2 * H])
        n = jnp.tanh(xp[:, 2 * H:3 * H] + r * hp[:, 2 * H:3 * H])
        h = (1.0 - z) * n + z * h
    qenc = h                                                     # (B, H) == enc[-1]

    # ---- 3. VQA head, vectorized over all B*K image locations -------------------
    img = img_ref[...]                                           # (B*K, F)
    sel = sel_ref[...]                                           # (B*K, B) block one-hot
    selT = selT_ref[...]                                         # (B, B*K)

    # F.normalize(image, p=-1, dim=1): x / max((sum_k 1/|x|)^-1, 1e-12)
    recip = 1.0 / jnp.maximum(jnp.abs(img), 1e-30)               # clamp keeps exact zeros finite
    scale_b = jnp.minimum(dot(selT, recip), 1e12)                # (B, F) == 1/max(norm, 1e-12)
    img_n = img * dot(sel, scale_b)                              # (B*K, F)

    # gated tanh on concat([image, qenc_rep]) with split weights (one matmul per part)
    q1 = dot(qenc, wha_ref[...]) + ba_ref[...]                   # (B, H)
    q2 = dot(qenc, whap_ref[...]) + bap_ref[...]                 # (B, H)
    lin1 = dot(img_n, wfa_ref[...]) + dot(sel, q1)               # (B*K, H)
    lin2 = dot(img_n, wfap_ref[...]) + dot(sel, q2)              # (B*K, H)
    ga = jnp.tanh(lin1) * jax.nn.sigmoid(lin2)                   # (B*K, H)

    # attention logits -> per-batch softmax over K -> attention-pooled image feature
    att = dot(ga, watt_ref[...]) + batt_ref[...]                 # (B*K, 1)
    att = att - jnp.max(att, axis=0, keepdims=True)              # shared shift (softmax-invariant)
    e = jnp.exp(att)                                             # (B*K, 1)
    denom = dot(selT, e)                                         # (B, 1) per-batch sums
    a = e * dot(sel, 1.0 / denom)                                # (B*K, 1) softmax over K
    v_head = dot(selT, a * img_n)                                # (B, F)

    def gated(x, w_ref, b_ref, wp_ref, bp_ref):
        return (jnp.tanh(dot(x, w_ref[...]) + b_ref[...]) *
                jax.nn.sigmoid(dot(x, wp_ref[...]) + bp_ref[...]))

    q = gated(qenc, wq_ref, bq_ref, wqp_ref, bqp_ref)            # (B, H)
    v = gated(v_head, wv_ref, bv_ref, wvp_ref, bvp_ref)          # (B, H)
    hc = gated(q * v, wc_ref, bc_ref, wcp_ref, bcp_ref)          # (B, H)
    out_ref[...] = dot(hc, wclf_ref[...]) + bclf_ref[...]        # (B, O)


def model_forward(question, image, params):
    B, S = question.shape
    K, Fd = image.shape[1], image.shape[2]
    E = params["wemb"].shape[1]
    O = params["wclf"].shape[1]

    q_ids = question.reshape(-1).astype(jnp.int32)               # (B*S,), row index b*S + t
    img_flat = image.reshape(B * K, Fd)                          # (B*K, F), row index b*K + k

    args = (q_ids, params["wemb"], params["wih"], params["whh"],
            params["bih"], params["bhh"],
            img_flat, params["sel"], params["selT"],
            params["wfa"], params["wha"], params["ba"],
            params["wfap"], params["whap"], params["bap"],
            params["watt"], params["batt"],
            params["wq"], params["bq"], params["wqp"], params["bqp"],
            params["wv"], params["bv"], params["wvp"], params["bvp"],
            params["wc"], params["bc"], params["wcp"], params["bcp"],
            params["wclf"], params["bclf"])

    in_specs = ([pl.BlockSpec(memory_space=pltpu.MemorySpace.SMEM)] +
                [pl.BlockSpec(memory_space=pltpu.MemorySpace.VMEM)] * (len(args) - 1))

    return pl.pallas_call(
        _fused_vqa_kernel,
        out_shape=jax.ShapeDtypeStruct((B, O), jnp.float32),
        in_specs=in_specs,
        out_specs=pl.BlockSpec(memory_space=pltpu.MemorySpace.VMEM),
        scratch_shapes=[pltpu.VMEM((S * B, E), jnp.float32)],
        compiler_params=pltpu.CompilerParams(vmem_limit_bytes=16 * 1024 * 1024),
    )(*args)


# ----------------------------------------------------------------------------
# Pure-JAX reference (mirrors the PyTorch forward exactly) for validation.
# ----------------------------------------------------------------------------
def reference_forward(question, image, p):
    emb = p["wemb"][question]                                    # (B, S, E)
    x = jnp.transpose(emb, (1, 0, 2))                            # (S, B, E) seq-first like torch GRU
    S, B, _ = x.shape
    H = p["whh"].shape[0]
    h = jnp.zeros((B, H), jnp.float32)
    for t in range(S):
        gi = x[t] @ p["wih"] + p["bih"]                          # (B, 3H)
        gh = h @ p["whh"] + p["bhh"]                             # (B, 3H)
        r = jax.nn.sigmoid(gi[:, 0:H] + gh[:, 0:H])
        z = jax.nn.sigmoid(gi[:, H:2 * H] + gh[:, H:2 * H])
        n = jnp.tanh(gi[:, 2 * H:] + r * gh[:, 2 * H:])
        h = (1.0 - z) * n + z * h
    qenc = h

    norm = 1.0 / jnp.sum(1.0 / jnp.abs(image), axis=1, keepdims=True)
    img_n = image / jnp.maximum(norm, 1e-12)

    def gated(xx, w, b, wp, bp):
        return jnp.tanh(xx @ w + b) * jax.nn.sigmoid(xx @ wp + bp)

    lin1 = jnp.einsum("bkf,fh->bkh", img_n, p["wfa"]) + (qenc @ p["wha"])[:, None, :] + p["ba"]
    lin2 = jnp.einsum("bkf,fh->bkh", img_n, p["wfap"]) + (qenc @ p["whap"])[:, None, :] + p["bap"]
    ga = jnp.tanh(lin1) * jax.nn.sigmoid(lin2)
    att = jnp.einsum("bkh,ho->bko", ga, p["watt"])[..., 0] + p["batt"][0, 0]   # (B, K)
    a = jax.nn.softmax(att, axis=-1)
    v_head = jnp.einsum("bk,bkf->bf", a, img_n)
    q = gated(qenc, p["wq"], p["bq"], p["wqp"], p["bqp"])
    v = gated(v_head, p["wv"], p["bv"], p["wvp"], p["bvp"])
    hh = q * v
    hc = gated(hh, p["wc"], p["bc"], p["wcp"], p["bcp"])
    return hc @ p["wclf"] + p["bclf"]


def init_params(key, vocab, E, K, F, H, O):
    keys = jax.random.split(key, 32)
    it = iter(keys)

    def w(shape, scale=0.1):
        return (scale * jax.random.normal(next(it), shape)).astype(jnp.float32)

    return {
        "wemb": w((vocab, E), 1.0),                      # pretrained_wemb (synthetic)
        "wih": w((E, 3 * H)), "whh": w((H, 3 * H)),      # GRU, gate order r,z,n along 3H
        "bih": w((1, 3 * H)), "bhh": w((1, 3 * H)),
        "wfa": w((F, H)), "wha": w((H, H)), "ba": w((1, H)),      # gt_W_img_att (split)
        "wfap": w((F, H)), "whap": w((H, H)), "bap": w((1, H)),   # gt_W_prime_img_att (split)
        "watt": w((H, 1)), "batt": w((1, 1)),                     # att_wa
        "wq": w((H, H)), "bq": w((1, H)), "wqp": w((H, H)), "bqp": w((1, H)),
        "wv": w((F, H)), "bv": w((1, H)), "wvp": w((F, H)), "bvp": w((1, H)),
        "wc": w((H, H)), "bc": w((1, H)), "wcp": w((H, H)), "bcp": w((1, H)),
        "wclf": w((H, O)), "bclf": w((1, O)),
    }


if __name__ == "__main__":
    B, S = 2, 8
    vocab, E, K, F, H, O = 100, 32, 36, 256, 64, 32

    key = jax.random.PRNGKey(0)
    kp, kq, ki = jax.random.split(key, 3)
    params = init_params(kp, vocab, E, K, F, H, O)

    # block one-hot selector: sel[b*K + k, b] = 1 (per-batch broadcast / reduce inside kernel)
    sel_np = np.repeat(np.eye(B, dtype=np.float32), K, axis=0)    # (B*K, B)
    params["sel"] = jnp.asarray(sel_np)
    params["selT"] = jnp.asarray(sel_np.T)                        # (B, B*K)

    question = jax.random.randint(kq, (B, S), 0, vocab, dtype=jnp.int32)
    image = jax.random.normal(ki, (B, K, F), dtype=jnp.float32)

    out = jax.block_until_ready(model_forward(question, image, params))
    ref = reference_forward(question, image, params)

    assert out.shape == (B, O)
    if not jnp.allclose(out, ref, rtol=1e-4, atol=1e-4):
        raise AssertionError(
            f"mismatch: max abs diff = {float(jnp.max(jnp.abs(out - ref)))}")
    print("KERNEL_OK")
</pallas_src>

<mosaic_0001>
module attributes {stable_mosaic.version = 11 : i64} {
  func.func @_fused_vqa_kernel(%arg0: memref<16xi32, #tpu.memory_space<smem>>, %arg1: memref<100x32xf32, #tpu.memory_space<vmem>>, %arg2: memref<32x192xf32, #tpu.memory_space<vmem>>, %arg3: memref<64x192xf32, #tpu.memory_space<vmem>>, %arg4: memref<1x192xf32, #tpu.memory_space<vmem>>, %arg5: memref<1x192xf32, #tpu.memory_space<vmem>>, %arg6: memref<72x256xf32, #tpu.memory_space<vmem>>, %arg7: memref<72x2xf32, #tpu.memory_space<vmem>>, %arg8: memref<2x72xf32, #tpu.memory_space<vmem>>, %arg9: memref<256x64xf32, #tpu.memory_space<vmem>>, %arg10: memref<64x64xf32, #tpu.memory_space<vmem>>, %arg11: memref<1x64xf32, #tpu.memory_space<vmem>>, %arg12: memref<256x64xf32, #tpu.memory_space<vmem>>, %arg13: memref<64x64xf32, #tpu.memory_space<vmem>>, %arg14: memref<1x64xf32, #tpu.memory_space<vmem>>, %arg15: memref<64x1xf32, #tpu.memory_space<vmem>>, %arg16: memref<1x1xf32, #tpu.memory_space<vmem>>, %arg17: memref<64x64xf32, #tpu.memory_space<vmem>>, %arg18: memref<1x64xf32, #tpu.memory_space<vmem>>, %arg19: memref<64x64xf32, #tpu.memory_space<vmem>>, %arg20: memref<1x64xf32, #tpu.memory_space<vmem>>, %arg21: memref<256x64xf32, #tpu.memory_space<vmem>>, %arg22: memref<1x64xf32, #tpu.memory_space<vmem>>, %arg23: memref<256x64xf32, #tpu.memory_space<vmem>>, %arg24: memref<1x64xf32, #tpu.memory_space<vmem>>, %arg25: memref<64x64xf32, #tpu.memory_space<vmem>>, %arg26: memref<1x64xf32, #tpu.memory_space<vmem>>, %arg27: memref<64x64xf32, #tpu.memory_space<vmem>>, %arg28: memref<1x64xf32, #tpu.memory_space<vmem>>, %arg29: memref<64x32xf32, #tpu.memory_space<vmem>>, %arg30: memref<1x32xf32, #tpu.memory_space<vmem>>, %arg31: memref<2x32xf32, #tpu.memory_space<vmem>>, %arg32: memref<16x32xf32, #tpu.memory_space<vmem>>) attributes {dimension_semantics = [], scalar_prefetch = 0 : i64, scratch_operands = 1 : i64, tpu.core_type = #tpu.core_type<tc>} {
    %c0 = arith.constant 0 : index
    %0 = memref.load %arg0[%c0] : memref<16xi32, #tpu.memory_space<smem>>
    %1 = arith.index_cast %0 : i32 to index
    %c0_0 = arith.constant 0 : index
    %2 = vector.load %arg1[%1, %c0_0] : memref<100x32xf32, #tpu.memory_space<vmem>>, vector<1x32xf32>
    %c0_1 = arith.constant 0 : index
    %c0_2 = arith.constant 0 : index
    %3 = vector.load %arg32[%c0_1, %c0_2] : memref<16x32xf32, #tpu.memory_space<vmem>>, vector<1x32xf32>
    tpu.vector_store %arg32[%c0_1, %c0_2], %2 {strides = array<i32>} : memref<16x32xf32, #tpu.memory_space<vmem>>, vector<1x32xf32>,
    %c8 = arith.constant 8 : index
    %4 = memref.load %arg0[%c8] : memref<16xi32, #tpu.memory_space<smem>>
    %5 = arith.index_cast %4 : i32 to index
    %c0_3 = arith.constant 0 : index
    %6 = vector.load %arg1[%5, %c0_3] : memref<100x32xf32, #tpu.memory_space<vmem>>, vector<1x32xf32>
    %c1 = arith.constant 1 : index
    %c0_4 = arith.constant 0 : index
    %7 = vector.load %arg32[%c1, %c0_4] : memref<16x32xf32, #tpu.memory_space<vmem>>, vector<1x32xf32>
    tpu.vector_store %arg32[%c1, %c0_4], %6 {strides = array<i32>} : memref<16x32xf32, #tpu.memory_space<vmem>>, vector<1x32xf32>,
    %c1_5 = arith.constant 1 : index
    %8 = memref.load %arg0[%c1_5] : memref<16xi32, #tpu.memory_space<smem>>
    %9 = arith.index_cast %8 : i32 to index
    %c0_6 = arith.constant 0 : index
    %10 = vector.load %arg1[%9, %c0_6] : memref<100x32xf32, #tpu.memory_space<vmem>>, vector<1x32xf32>
    %c2 = arith.constant 2 : index
    %c0_7 = arith.constant 0 : index
    %11 = vector.load %arg32[%c2, %c0_7] : memref<16x32xf32, #tpu.memory_space<vmem>>, vector<1x32xf32>
    tpu.vector_store %arg32[%c2, %c0_7], %10 {strides = array<i32>} : memref<16x32xf32, #tpu.memory_space<vmem>>, vector<1x32xf32>,
    %c9 = arith.constant 9 : index
    %12 = memref.load %arg0[%c9] : memref<16xi32, #tpu.memory_space<smem>>
    %13 = arith.index_cast %12 : i32 to index
    %c0_8 = arith.constant 0 : index
    %14 = vector.load %arg1[%13, %c0_8] : memref<100x32xf32, #tpu.memory_space<vmem>>, vector<1x32xf32>
    %c3 = arith.constant 3 : index
    %c0_9 = arith.constant 0 : index
    %15 = vector.load %arg32[%c3, %c0_9] : memref<16x32xf32, #tpu.memory_space<vmem>>, vector<1x32xf32>
    tpu.vector_store %arg32[%c3, %c0_9], %14 {strides = array<i32>} : memref<16x32xf32, #tpu.memory_space<vmem>>, vector<1x32xf32>,
    %c2_10 = arith.constant 2 : index
    %16 = memref.load %arg0[%c2_10] : memref<16xi32, #tpu.memory_space<smem>>
    %17 = arith.index_cast %16 : i32 to index
    %c0_11 = arith.constant 0 : index
    %18 = vector.load %arg1[%17, %c0_11] : memref<100x32xf32, #tpu.memory_space<vmem>>, vector<1x32xf32>
    %c4 = arith.constant 4 : index
    %c0_12 = arith.constant 0 : index
    %19 = vector.load %arg32[%c4, %c0_12] : memref<16x32xf32, #tpu.memory_space<vmem>>, vector<1x32xf32>
    tpu.vector_store %arg32[%c4, %c0_12], %18 {strides = array<i32>} : memref<16x32xf32, #tpu.memory_space<vmem>>, vector<1x32xf32>,
    %c10 = arith.constant 10 : index
    %20 = memref.load %arg0[%c10] : memref<16xi32, #tpu.memory_space<smem>>
    %21 = arith.index_cast %20 : i32 to index
    %c0_13 = arith.constant 0 : index
    %22 = vector.load %arg1[%21, %c0_13] : memref<100x32xf32, #tpu.memory_space<vmem>>, vector<1x32xf32>
    %c5 = arith.constant 5 : index
    %c0_14 = arith.constant 0 : index
    %23 = vector.load %arg32[%c5, %c0_14] : memref<16x32xf32, #tpu.memory_space<vmem>>, vector<1x32xf32>
    tpu.vector_store %arg32[%c5, %c0_14], %22 {strides = array<i32>} : memref<16x32xf32, #tpu.memory_space<vmem>>, vector<1x32xf32>,
    %c3_15 = arith.constant 3 : index
    %24 = memref.load %arg0[%c3_15] : memref<16xi32, #tpu.memory_space<smem>>
    %25 = arith.index_cast %24 : i32 to index
    %c0_16 = arith.constant 0 : index
    %26 = vector.load %arg1[%25, %c0_16] : memref<100x32xf32, #tpu.memory_space<vmem>>, vector<1x32xf32>
    %c6 = arith.constant 6 : index
    %c0_17 = arith.constant 0 : index
    %27 = vector.load %arg32[%c6, %c0_17] : memref<16x32xf32, #tpu.memory_space<vmem>>, vector<1x32xf32>
    tpu.vector_store %arg32[%c6, %c0_17], %26 {strides = array<i32>} : memref<16x32xf32, #tpu.memory_space<vmem>>, vector<1x32xf32>,
    %c11 = arith.constant 11 : index
    %28 = memref.load %arg0[%c11] : memref<16xi32, #tpu.memory_space<smem>>
    %29 = arith.index_cast %28 : i32 to index
    %c0_18 = arith.constant 0 : index
    %30 = vector.load %arg1[%29, %c0_18] : memref<100x32xf32, #tpu.memory_space<vmem>>, vector<1x32xf32>
    %c7 = arith.constant 7 : index
    %c0_19 = arith.constant 0 : index
    %31 = vector.load %arg32[%c7, %c0_19] : memref<16x32xf32, #tpu.memory_space<vmem>>, vector<1x32xf32>
    tpu.vector_store %arg32[%c7, %c0_19], %30 {strides = array<i32>} : memref<16x32xf32, #tpu.memory_space<vmem>>, vector<1x32xf32>,
    %c4_20 = arith.constant 4 : index
    %32 = memref.load %arg0[%c4_20] : memref<16xi32, #tpu.memory_space<smem>>
    %33 = arith.index_cast %32 : i32 to index
    %c0_21 = arith.constant 0 : index
    %34 = vector.load %arg1[%33, %c0_21] : memref<100x32xf32, #tpu.memory_space<vmem>>, vector<1x32xf32>
    %c8_22 = arith.constant 8 : index
    %c0_23 = arith.constant 0 : index
    %35 = vector.load %arg32[%c8_22, %c0_23] : memref<16x32xf32, #tpu.memory_space<vmem>>, vector<1x32xf32>
    tpu.vector_store %arg32[%c8_22, %c0_23], %34 {strides = array<i32>} : memref<16x32xf32, #tpu.memory_space<vmem>>, vector<1x32xf32>,
    %c12 = arith.constant 12 : index
    %36 = memref.load %arg0[%c12] : memref<16xi32, #tpu.memory_space<smem>>
    %37 = arith.index_cast %36 : i32 to index
    %c0_24 = arith.constant 0 : index
    %38 = vector.load %arg1[%37, %c0_24] : memref<100x32xf32, #tpu.memory_space<vmem>>, vector<1x32xf32>
    %c9_25 = arith.constant 9 : index
    %c0_26 = arith.constant 0 : index
    %39 = vector.load %arg32[%c9_25, %c0_26] : memref<16x32xf32, #tpu.memory_space<vmem>>, vector<1x32xf32>
    tpu.vector_store %arg32[%c9_25, %c0_26], %38 {strides = array<i32>} : memref<16x32xf32, #tpu.memory_space<vmem>>, vector<1x32xf32>,
    %c5_27 = arith.constant 5 : index
    %40 = memref.load %arg0[%c5_27] : memref<16xi32, #tpu.memory_space<smem>>
    %41 = arith.index_cast %40 : i32 to index
    %c0_28 = arith.constant 0 : index
    %42 = vector.load %arg1[%41, %c0_28] : memref<100x32xf32, #tpu.memory_space<vmem>>, vector<1x32xf32>
    %c10_29 = arith.constant 10 : index
    %c0_30 = arith.constant 0 : index
    %43 = vector.load %arg32[%c10_29, %c0_30] : memref<16x32xf32, #tpu.memory_space<vmem>>, vector<1x32xf32>
    tpu.vector_store %arg32[%c10_29, %c0_30], %42 {strides = array<i32>} : memref<16x32xf32, #tpu.memory_space<vmem>>, vector<1x32xf32>,
    %c13 = arith.constant 13 : index
    %44 = memref.load %arg0[%c13] : memref<16xi32, #tpu.memory_space<smem>>
    %45 = arith.index_cast %44 : i32 to index
    %c0_31 = arith.constant 0 : index
    %46 = vector.load %arg1[%45, %c0_31] : memref<100x32xf32, #tpu.memory_space<vmem>>, vector<1x32xf32>
    %c11_32 = arith.constant 11 : index
    %c0_33 = arith.constant 0 : index
    %47 = vector.load %arg32[%c11_32, %c0_33] : memref<16x32xf32, #tpu.memory_space<vmem>>, vector<1x32xf32>
    tpu.vector_store %arg32[%c11_32, %c0_33], %46 {strides = array<i32>} : memref<16x32xf32, #tpu.memory_space<vmem>>, vector<1x32xf32>,
    %c6_34 = arith.constant 6 : index
    %48 = memref.load %arg0[%c6_34] : memref<16xi32, #tpu.memory_space<smem>>
    %49 = arith.index_cast %48 : i32 to index
    %c0_35 = arith.constant 0 : index
    %50 = vector.load %arg1[%49, %c0_35] : memref<100x32xf32, #tpu.memory_space<vmem>>, vector<1x32xf32>
    %c12_36 = arith.constant 12 : index
    %c0_37 = arith.constant 0 : index
    %51 = vector.load %arg32[%c12_36, %c0_37] : memref<16x32xf32, #tpu.memory_space<vmem>>, vector<1x32xf32>
    tpu.vector_store %arg32[%c12_36, %c0_37], %50 {strides = array<i32>} : memref<16x32xf32, #tpu.memory_space<vmem>>, vector<1x32xf32>,
    %c14 = arith.constant 14 : index
    %52 = memref.load %arg0[%c14] : memref<16xi32, #tpu.memory_space<smem>>
    %53 = arith.index_cast %52 : i32 to index
    %c0_38 = arith.constant 0 : index
    %54 = vector.load %arg1[%53, %c0_38] : memref<100x32xf32, #tpu.memory_space<vmem>>, vector<1x32xf32>
    %c13_39 = arith.constant 13 : index
    %c0_40 = arith.constant 0 : index
    %55 = vector.load %arg32[%c13_39, %c0_40] : memref<16x32xf32, #tpu.memory_space<vmem>>, vector<1x32xf32>
    tpu.vector_store %arg32[%c13_39, %c0_40], %54 {strides = array<i32>} : memref<16x32xf32, #tpu.memory_space<vmem>>, vector<1x32xf32>,
    %c7_41 = arith.constant 7 : index
    %56 = memref.load %arg0[%c7_41] : memref<16xi32, #tpu.memory_space<smem>>
    %57 = arith.index_cast %56 : i32 to index
    %c0_42 = arith.constant 0 : index
    %58 = vector.load %arg1[%57, %c0_42] : memref<100x32xf32, #tpu.memory_space<vmem>>, vector<1x32xf32>
    %c14_43 = arith.constant 14 : index
    %c0_44 = arith.constant 0 : index
    %59 = vector.load %arg32[%c14_43, %c0_44] : memref<16x32xf32, #tpu.memory_space<vmem>>, vector<1x32xf32>
    tpu.vector_store %arg32[%c14_43, %c0_44], %58 {strides = array<i32>} : memref<16x32xf32, #tpu.memory_space<vmem>>, vector<1x32xf32>,
    %c15 = arith.constant 15 : index
    %60 = memref.load %arg0[%c15] : memref<16xi32, #tpu.memory_space<smem>>
    %61 = arith.index_cast %60 : i32 to index
    %c0_45 = arith.constant 0 : index
    %62 = vector.load %arg1[%61, %c0_45] : memref<100x32xf32, #tpu.memory_space<vmem>>, vector<1x32xf32>
    %c15_46 = arith.constant 15 : index
    %c0_47 = arith.constant 0 : index
    %63 = vector.load %arg32[%c15_46, %c0_47] : memref<16x32xf32, #tpu.memory_space<vmem>>, vector<1x32xf32>
    tpu.vector_store %arg32[%c15_46, %c0_47], %62 {strides = array<i32>} : memref<16x32xf32, #tpu.memory_space<vmem>>, vector<1x32xf32>,
    %c0_48 = arith.constant 0 : index
    %c0_49 = arith.constant 0 : index
    %64 = vector.load %arg32[%c0_48, %c0_49] : memref<16x32xf32, #tpu.memory_space<vmem>>, vector<16x32xf32>
    %c0_50 = arith.constant 0 : index
    %c0_51 = arith.constant 0 : index
    %65 = vector.load %arg2[%c0_50, %c0_51] : memref<32x192xf32, #tpu.memory_space<vmem>>, vector<32x192xf32>
    %cst = arith.constant dense<0.000000e+00> : vector<16x192xf32>
    %66 = tpu.matmul %64, %65, %cst {dimension_numbers = #tpu.dot_dimension_numbers<[1], [0], [0], [1], [0, 0, 1, 1], [], []>} : vector<16x32xf32>, vector<32x192xf32>, vector<16x192xf32> -> vector<16x192xf32>
    %c0_52 = arith.constant 0 : index
    %c0_53 = arith.constant 0 : index
    %67 = vector.load %arg4[%c0_52, %c0_53] : memref<1x192xf32, #tpu.memory_space<vmem>>, vector<1x192xf32>
    %68 = vector.broadcast %67 : vector<1x192xf32> to vector<16x192xf32>
    %69 = arith.addf %66, %68 : vector<16x192xf32>
    %c0_54 = arith.constant 0 : index
    %c0_55 = arith.constant 0 : index
    %70 = vector.load %arg3[%c0_54, %c0_55] : memref<64x192xf32, #tpu.memory_space<vmem>>, vector<64x192xf32>
    %c0_56 = arith.constant 0 : index
    %c0_57 = arith.constant 0 : index
    %71 = vector.load %arg5[%c0_56, %c0_57] : memref<1x192xf32, #tpu.memory_space<vmem>>, vector<1x192xf32>
    %cst_58 = arith.constant 0.000000e+00 : f32
    %72 = vector.broadcast %cst_58 : f32 to vector<2x64xf32>
    %73 = vector.extract_strided_slice %69 {offsets = [0, 0], sizes = [2, 192], strides = [1, 1]} : vector<16x192xf32> to vector<2x192xf32>
    %cst_59 = arith.constant dense<0.000000e+00> : vector<2x192xf32>
    %74 = tpu.matmul %72, %70, %cst_59 {dimension_numbers = #tpu.dot_dimension_numbers<[1], [0], [0], [1], [0, 0, 1, 1], [], []>} : vector<2x64xf32>, vector<64x192xf32>, vector<2x192xf32> -> vector<2x192xf32>
    %75 = vector.broadcast %71 : vector<1x192xf32> to vector<2x192xf32>
    %76 = arith.addf %74, %75 : vector<2x192xf32>
    %77 = vector.extract_strided_slice %73 {offsets = [0, 0], sizes = [2, 64], strides = [1, 1]} : vector<2x192xf32> to vector<2x64xf32>
    %78 = vector.extract_strided_slice %76 {offsets = [0, 0], sizes = [2, 64], strides = [1, 1]} : vector<2x192xf32> to vector<2x64xf32>
    %79 = arith.addf %77, %78 : vector<2x64xf32>
    %80 = arith.negf %79 : vector<2x64xf32>
    %81 = math.exp %80 : vector<2x64xf32>
    %cst_60 = arith.constant 1.000000e+00 : f32
    %82 = vector.broadcast %cst_60 : f32 to vector<2x64xf32>
    %83 = arith.addf %82, %81 : vector<2x64xf32>
    %84 = arith.divf %82, %83 : vector<2x64xf32>
    %85 = vector.extract_strided_slice %73 {offsets = [0, 64], sizes = [2, 64], strides = [1, 1]} : vector<2x192xf32> to vector<2x64xf32>
    %86 = vector.extract_strided_slice %76 {offsets = [0, 64], sizes = [2, 64], strides = [1, 1]} : vector<2x192xf32> to vector<2x64xf32>
    %87 = arith.addf %85, %86 : vector<2x64xf32>
    %88 = arith.negf %87 : vector<2x64xf32>
    %89 = math.exp %88 : vector<2x64xf32>
    %cst_61 = arith.constant 1.000000e+00 : f32
    %90 = vector.broadcast %cst_61 : f32 to vector<2x64xf32>
    %91 = arith.addf %90, %89 : vector<2x64xf32>
    %92 = arith.divf %90, %91 : vector<2x64xf32>
    %93 = vector.extract_strided_slice %73 {offsets = [0, 128], sizes = [2, 64], strides = [1, 1]} : vector<2x192xf32> to vector<2x64xf32>
    %94 = vector.extract_strided_slice %76 {offsets = [0, 128], sizes = [2, 64], strides = [1, 1]} : vector<2x192xf32> to vector<2x64xf32>
    %95 = arith.mulf %84, %94 : vector<2x64xf32>
    %96 = arith.addf %93, %95 : vector<2x64xf32>
    %97 = math.tanh %96 : vector<2x64xf32>
    %cst_62 = arith.constant 1.000000e+00 : f32
    %98 = vector.broadcast %cst_62 : f32 to vector<2x64xf32>
    %99 = arith.subf %98, %92 : vector<2x64xf32>
    %100 = arith.mulf %99, %97 : vector<2x64xf32>
    %101 = arith.mulf %92, %72 : vector<2x64xf32>
    %102 = arith.addf %100, %101 : vector<2x64xf32>
    %103 = vector.extract_strided_slice %69 {offsets = [2, 0], sizes = [2, 192], strides = [1, 1]} : vector<16x192xf32> to vector<2x192xf32>
    %cst_63 = arith.constant dense<0.000000e+00> : vector<2x192xf32>
    %104 = tpu.matmul %102, %70, %cst_63 {dimension_numbers = #tpu.dot_dimension_numbers<[1], [0], [0], [1], [0, 0, 1, 1], [], []>} : vector<2x64xf32>, vector<64x192xf32>, vector<2x192xf32> -> vector<2x192xf32>
    %105 = vector.broadcast %71 : vector<1x192xf32> to vector<2x192xf32>
    %106 = arith.addf %104, %105 : vector<2x192xf32>
    %107 = vector.extract_strided_slice %103 {offsets = [0, 0], sizes = [2, 64], strides = [1, 1]} : vector<2x192xf32> to vector<2x64xf32>
    %108 = vector.extract_strided_slice %106 {offsets = [0, 0], sizes = [2, 64], strides = [1, 1]} : vector<2x192xf32> to vector<2x64xf32>
    %109 = arith.addf %107, %108 : vector<2x64xf32>
    %110 = arith.negf %109 : vector<2x64xf32>
    %111 = math.exp %110 : vector<2x64xf32>
    %cst_64 = arith.constant 1.000000e+00 : f32
    %112 = vector.broadcast %cst_64 : f32 to vector<2x64xf32>
    %113 = arith.addf %112, %111 : vector<2x64xf32>
    %114 = arith.divf %112, %113 : vector<2x64xf32>
    %115 = vector.extract_strided_slice %103 {offsets = [0, 64], sizes = [2, 64], strides = [1, 1]} : vector<2x192xf32> to vector<2x64xf32>
    %116 = vector.extract_strided_slice %106 {offsets = [0, 64], sizes = [2, 64], strides = [1, 1]} : vector<2x192xf32> to vector<2x64xf32>
    %117 = arith.addf %115, %116 : vector<2x64xf32>
    %118 = arith.negf %117 : vector<2x64xf32>
    %119 = math.exp %118 : vector<2x64xf32>
    %cst_65 = arith.constant 1.000000e+00 : f32
    %120 = vector.broadcast %cst_65 : f32 to vector<2x64xf32>
    %121 = arith.addf %120, %119 : vector<2x64xf32>
    %122 = arith.divf %120, %121 : vector<2x64xf32>
    %123 = vector.extract_strided_slice %103 {offsets = [0, 128], sizes = [2, 64], strides = [1, 1]} : vector<2x192xf32> to vector<2x64xf32>
    %124 = vector.extract_strided_slice %106 {offsets = [0, 128], sizes = [2, 64], strides = [1, 1]} : vector<2x192xf32> to vector<2x64xf32>
    %125 = arith.mulf %114, %124 : vector<2x64xf32>
    %126 = arith.addf %123, %125 : vector<2x64xf32>
    %127 = math.tanh %126 : vector<2x64xf32>
    %cst_66 = arith.constant 1.000000e+00 : f32
    %128 = vector.broadcast %cst_66 : f32 to vector<2x64xf32>
    %129 = arith.subf %128, %122 : vector<2x64xf32>
    %130 = arith.mulf %129, %127 : vector<2x64xf32>
    %131 = arith.mulf %122, %102 : vector<2x64xf32>
    %132 = arith.addf %130, %131 : vector<2x64xf32>
    %133 = vector.extract_strided_slice %69 {offsets = [4, 0], sizes = [2, 192], strides = [1, 1]} : vector<16x192xf32> to vector<2x192xf32>
    %cst_67 = arith.constant dense<0.000000e+00> : vector<2x192xf32>
    %134 = tpu.matmul %132, %70, %cst_67 {dimension_numbers = #tpu.dot_dimension_numbers<[1], [0], [0], [1], [0, 0, 1, 1], [], []>} : vector<2x64xf32>, vector<64x192xf32>, vector<2x192xf32> -> vector<2x192xf32>
    %135 = vector.broadcast %71 : vector<1x192xf32> to vector<2x192xf32>
    %136 = arith.addf %134, %135 : vector<2x192xf32>
    %137 = vector.extract_strided_slice %133 {offsets = [0, 0], sizes = [2, 64], strides = [1, 1]} : vector<2x192xf32> to vector<2x64xf32>
    %138 = vector.extract_strided_slice %136 {offsets = [0, 0], sizes = [2, 64], strides = [1, 1]} : vector<2x192xf32> to vector<2x64xf32>
    %139 = arith.addf %137, %138 : vector<2x64xf32>
    %140 = arith.negf %139 : vector<2x64xf32>
    %141 = math.exp %140 : vector<2x64xf32>
    %cst_68 = arith.constant 1.000000e+00 : f32
    %142 = vector.broadcast %cst_68 : f32 to vector<2x64xf32>
    %143 = arith.addf %142, %141 : vector<2x64xf32>
    %144 = arith.divf %142, %143 : vector<2x64xf32>
    %145 = vector.extract_strided_slice %133 {offsets = [0, 64], sizes = [2, 64], strides = [1, 1]} : vector<2x192xf32> to vector<2x64xf32>
    %146 = vector.extract_strided_slice %136 {offsets = [0, 64], sizes = [2, 64], strides = [1, 1]} : vector<2x192xf32> to vector<2x64xf32>
    %147 = arith.addf %145, %146 : vector<2x64xf32>
    %148 = arith.negf %147 : vector<2x64xf32>
    %149 = math.exp %148 : vector<2x64xf32>
    %cst_69 = arith.constant 1.000000e+00 : f32
    %150 = vector.broadcast %cst_69 : f32 to vector<2x64xf32>
    %151 = arith.addf %150, %149 : vector<2x64xf32>
    %152 = arith.divf %150, %151 : vector<2x64xf32>
    %153 = vector.extract_strided_slice %133 {offsets = [0, 128], sizes = [2, 64], strides = [1, 1]} : vector<2x192xf32> to vector<2x64xf32>
    %154 = vector.extract_strided_slice %136 {offsets = [0, 128], sizes = [2, 64], strides = [1, 1]} : vector<2x192xf32> to vector<2x64xf32>
    %155 = arith.mulf %144, %154 : vector<2x64xf32>
    %156 = arith.addf %153, %155 : vector<2x64xf32>
    %157 = math.tanh %156 : vector<2x64xf32>
    %cst_70 = arith.constant 1.000000e+00 : f32
    %158 = vector.broadcast %cst_70 : f32 to vector<2x64xf32>
    %159 = arith.subf %158, %152 : vector<2x64xf32>
    %160 = arith.mulf %159, %157 : vector<2x64xf32>
    %161 = arith.mulf %152, %132 : vector<2x64xf32>
    %162 = arith.addf %160, %161 : vector<2x64xf32>
    %163 = vector.extract_strided_slice %69 {offsets = [6, 0], sizes = [2, 192], strides = [1, 1]} : vector<16x192xf32> to vector<2x192xf32>
    %cst_71 = arith.constant dense<0.000000e+00> : vector<2x192xf32>
    %164 = tpu.matmul %162, %70, %cst_71 {dimension_numbers = #tpu.dot_dimension_numbers<[1], [0], [0], [1], [0, 0, 1, 1], [], []>} : vector<2x64xf32>, vector<64x192xf32>, vector<2x192xf32> -> vector<2x192xf32>
    %165 = vector.broadcast %71 : vector<1x192xf32> to vector<2x192xf32>
    %166 = arith.addf %164, %165 : vector<2x192xf32>
    %167 = vector.extract_strided_slice %163 {offsets = [0, 0], sizes = [2, 64], strides = [1, 1]} : vector<2x192xf32> to vector<2x64xf32>
    %168 = vector.extract_strided_slice %166 {offsets = [0, 0], sizes = [2, 64], strides = [1, 1]} : vector<2x192xf32> to vector<2x64xf32>
    %169 = arith.addf %167, %168 : vector<2x64xf32>
    %170 = arith.negf %169 : vector<2x64xf32>
    %171 = math.exp %170 : vector<2x64xf32>
    %cst_72 = arith.constant 1.000000e+00 : f32
    %172 = vector.broadcast %cst_72 : f32 to vector<2x64xf32>
    %173 = arith.addf %172, %171 : vector<2x64xf32>
    %174 = arith.divf %172, %173 : vector<2x64xf32>
    %175 = vector.extract_strided_slice %163 {offsets = [0, 64], sizes = [2, 64], strides = [1, 1]} : vector<2x192xf32> to vector<2x64xf32>
    %176 = vector.extract_strided_slice %166 {offsets = [0, 64], sizes = [2, 64], strides = [1, 1]} : vector<2x192xf32> to vector<2x64xf32>
    %177 = arith.addf %175, %176 : vector<2x64xf32>
    %178 = arith.negf %177 : vector<2x64xf32>
    %179 = math.exp %178 : vector<2x64xf32>
    %cst_73 = arith.constant 1.000000e+00 : f32
    %180 = vector.broadcast %cst_73 : f32 to vector<2x64xf32>
    %181 = arith.addf %180, %179 : vector<2x64xf32>
    %182 = arith.divf %180, %181 : vector<2x64xf32>
    %183 = vector.extract_strided_slice %163 {offsets = [0, 128], sizes = [2, 64], strides = [1, 1]} : vector<2x192xf32> to vector<2x64xf32>
    %184 = vector.extract_strided_slice %166 {offsets = [0, 128], sizes = [2, 64], strides = [1, 1]} : vector<2x192xf32> to vector<2x64xf32>
    %185 = arith.mulf %174, %184 : vector<2x64xf32>
    %186 = arith.addf %183, %185 : vector<2x64xf32>
    %187 = math.tanh %186 : vector<2x64xf32>
    %cst_74 = arith.constant 1.000000e+00 : f32
    %188 = vector.broadcast %cst_74 : f32 to vector<2x64xf32>
    %189 = arith.subf %188, %182 : vector<2x64xf32>
    %190 = arith.mulf %189, %187 : vector<2x64xf32>
    %191 = arith.mulf %182, %162 : vector<2x64xf32>
    %192 = arith.addf %190, %191 : vector<2x64xf32>
    %193 = vector.extract_strided_slice %69 {offsets = [8, 0], sizes = [2, 192], strides = [1, 1]} : vector<16x192xf32> to vector<2x192xf32>
    %cst_75 = arith.constant dense<0.000000e+00> : vector<2x192xf32>
    %194 = tpu.matmul %192, %70, %cst_75 {dimension_numbers = #tpu.dot_dimension_numbers<[1], [0], [0], [1], [0, 0, 1, 1], [], []>} : vector<2x64xf32>, vector<64x192xf32>, vector<2x192xf32> -> vector<2x192xf32>
    %195 = vector.broadcast %71 : vector<1x192xf32> to vector<2x192xf32>
    %196 = arith.addf %194, %195 : vector<2x192xf32>
    %197 = vector.extract_strided_slice %193 {offsets = [0, 0], sizes = [2, 64], strides = [1, 1]} : vector<2x192xf32> to vector<2x64xf32>
    %198 = vector.extract_strided_slice %196 {offsets = [0, 0], sizes = [2, 64], strides = [1, 1]} : vector<2x192xf32> to vector<2x64xf32>
    %199 = arith.addf %197, %198 : vector<2x64xf32>
    %200 = arith.negf %199 : vector<2x64xf32>
    %201 = math.exp %200 : vector<2x64xf32>
    %cst_76 = arith.constant 1.000000e+00 : f32
    %202 = vector.broadcast %cst_76 : f32 to vector<2x64xf32>
    %203 = arith.addf %202, %201 : vector<2x64xf32>
    %204 = arith.divf %202, %203 : vector<2x64xf32>
    %205 = vector.extract_strided_slice %193 {offsets = [0, 64], sizes = [2, 64], strides = [1, 1]} : vector<2x192xf32> to vector<2x64xf32>
    %206 = vector.extract_strided_slice %196 {offsets = [0, 64], sizes = [2, 64], strides = [1, 1]} : vector<2x192xf32> to vector<2x64xf32>
    %207 = arith.addf %205, %206 : vector<2x64xf32>
    %208 = arith.negf %207 : vector<2x64xf32>
    %209 = math.exp %208 : vector<2x64xf32>
    %cst_77 = arith.constant 1.000000e+00 : f32
    %210 = vector.broadcast %cst_77 : f32 to vector<2x64xf32>
    %211 = arith.addf %210, %209 : vector<2x64xf32>
    %212 = arith.divf %210, %211 : vector<2x64xf32>
    %213 = vector.extract_strided_slice %193 {offsets = [0, 128], sizes = [2, 64], strides = [1, 1]} : vector<2x192xf32> to vector<2x64xf32>
    %214 = vector.extract_strided_slice %196 {offsets = [0, 128], sizes = [2, 64], strides = [1, 1]} : vector<2x192xf32> to vector<2x64xf32>
    %215 = arith.mulf %204, %214 : vector<2x64xf32>
    %216 = arith.addf %213, %215 : vector<2x64xf32>
    %217 = math.tanh %216 : vector<2x64xf32>
    %cst_78 = arith.constant 1.000000e+00 : f32
    %218 = vector.broadcast %cst_78 : f32 to vector<2x64xf32>
    %219 = arith.subf %218, %212 : vector<2x64xf32>
    %220 = arith.mulf %219, %217 : vector<2x64xf32>
    %221 = arith.mulf %212, %192 : vector<2x64xf32>
    %222 = arith.addf %220, %221 : vector<2x64xf32>
    %223 = vector.extract_strided_slice %69 {offsets = [10, 0], sizes = [2, 192], strides = [1, 1]} : vector<16x192xf32> to vector<2x192xf32>
    %cst_79 = arith.constant dense<0.000000e+00> : vector<2x192xf32>
    %224 = tpu.matmul %222, %70, %cst_79 {dimension_numbers = #tpu.dot_dimension_numbers<[1], [0], [0], [1], [0, 0, 1, 1], [], []>} : vector<2x64xf32>, vector<64x192xf32>, vector<2x192xf32> -> vector<2x192xf32>
    %225 = vector.broadcast %71 : vector<1x192xf32> to vector<2x192xf32>
    %226 = arith.addf %224, %225 : vector<2x192xf32>
    %227 = vector.extract_strided_slice %223 {offsets = [0, 0], sizes = [2, 64], strides = [1, 1]} : vector<2x192xf32> to vector<2x64xf32>
    %228 = vector.extract_strided_slice %226 {offsets = [0, 0], sizes = [2, 64], strides = [1, 1]} : vector<2x192xf32> to vector<2x64xf32>
    %229 = arith.addf %227, %228 : vector<2x64xf32>
    %230 = arith.negf %229 : vector<2x64xf32>
    %231 = math.exp %230 : vector<2x64xf32>
    %cst_80 = arith.constant 1.000000e+00 : f32
    %232 = vector.broadcast %cst_80 : f32 to vector<2x64xf32>
    %233 = arith.addf %232, %231 : vector<2x64xf32>
    %234 = arith.divf %232, %233 : vector<2x64xf32>
    %235 = vector.extract_strided_slice %223 {offsets = [0, 64], sizes = [2, 64], strides = [1, 1]} : vector<2x192xf32> to vector<2x64xf32>
    %236 = vector.extract_strided_slice %226 {offsets = [0, 64], sizes = [2, 64], strides = [1, 1]} : vector<2x192xf32> to vector<2x64xf32>
    %237 = arith.addf %235, %236 : vector<2x64xf32>
    %238 = arith.negf %237 : vector<2x64xf32>
    %239 = math.exp %238 : vector<2x64xf32>
    %cst_81 = arith.constant 1.000000e+00 : f32
    %240 = vector.broadcast %cst_81 : f32 to vector<2x64xf32>
    %241 = arith.addf %240, %239 : vector<2x64xf32>
    %242 = arith.divf %240, %241 : vector<2x64xf32>
    %243 = vector.extract_strided_slice %223 {offsets = [0, 128], sizes = [2, 64], strides = [1, 1]} : vector<2x192xf32> to vector<2x64xf32>
    %244 = vector.extract_strided_slice %226 {offsets = [0, 128], sizes = [2, 64], strides = [1, 1]} : vector<2x192xf32> to vector<2x64xf32>
    %245 = arith.mulf %234, %244 : vector<2x64xf32>
    %246 = arith.addf %243, %245 : vector<2x64xf32>
    %247 = math.tanh %246 : vector<2x64xf32>
    %cst_82 = arith.constant 1.000000e+00 : f32
    %248 = vector.broadcast %cst_82 : f32 to vector<2x64xf32>
    %249 = arith.subf %248, %242 : vector<2x64xf32>
    %250 = arith.mulf %249, %247 : vector<2x64xf32>
    %251 = arith.mulf %242, %222 : vector<2x64xf32>
    %252 = arith.addf %250, %251 : vector<2x64xf32>
    %253 = vector.extract_strided_slice %69 {offsets = [12, 0], sizes = [2, 192], strides = [1, 1]} : vector<16x192xf32> to vector<2x192xf32>
    %cst_83 = arith.constant dense<0.000000e+00> : vector<2x192xf32>
    %254 = tpu.matmul %252, %70, %cst_83 {dimension_numbers = #tpu.dot_dimension_numbers<[1], [0], [0], [1], [0, 0, 1, 1], [], []>} : vector<2x64xf32>, vector<64x192xf32>, vector<2x192xf32> -> vector<2x192xf32>
    %255 = vector.broadcast %71 : vector<1x192xf32> to vector<2x192xf32>
    %256 = arith.addf %254, %255 : vector<2x192xf32>
    %257 = vector.extract_strided_slice %253 {offsets = [0, 0], sizes = [2, 64], strides = [1, 1]} : vector<2x192xf32> to vector<2x64xf32>
    %258 = vector.extract_strided_slice %256 {offsets = [0, 0], sizes = [2, 64], strides = [1, 1]} : vector<2x192xf32> to vector<2x64xf32>
    %259 = arith.addf %257, %258 : vector<2x64xf32>
    %260 = arith.negf %259 : vector<2x64xf32>
    %261 = math.exp %260 : vector<2x64xf32>
    %cst_84 = arith.constant 1.000000e+00 : f32
    %262 = vector.broadcast %cst_84 : f32 to vector<2x64xf32>
    %263 = arith.addf %262, %261 : vector<2x64xf32>
    %264 = arith.divf %262, %263 : vector<2x64xf32>
    %265 = vector.extract_strided_slice %253 {offsets = [0, 64], sizes = [2, 64], strides = [1, 1]} : vector<2x192xf32> to vector<2x64xf32>
    %266 = vector.extract_strided_slice %256 {offsets = [0, 64], sizes = [2, 64], strides = [1, 1]} : vector<2x192xf32> to vector<2x64xf32>
    %267 = arith.addf %265, %266 : vector<2x64xf32>
    %268 = arith.negf %267 : vector<2x64xf32>
    %269 = math.exp %268 : vector<2x64xf32>
    %cst_85 = arith.constant 1.000000e+00 : f32
    %270 = vector.broadcast %cst_85 : f32 to vector<2x64xf32>
    %271 = arith.addf %270, %269 : vector<2x64xf32>
    %272 = arith.divf %270, %271 : vector<2x64xf32>
    %273 = vector.extract_strided_slice %253 {offsets = [0, 128], sizes = [2, 64], strides = [1, 1]} : vector<2x192xf32> to vector<2x64xf32>
    %274 = vector.extract_strided_slice %256 {offsets = [0, 128], sizes = [2, 64], strides = [1, 1]} : vector<2x192xf32> to vector<2x64xf32>
    %275 = arith.mulf %264, %274 : vector<2x64xf32>
    %276 = arith.addf %273, %275 : vector<2x64xf32>
    %277 = math.tanh %276 : vector<2x64xf32>
    %cst_86 = arith.constant 1.000000e+00 : f32
    %278 = vector.broadcast %cst_86 : f32 to vector<2x64xf32>
    %279 = arith.subf %278, %272 : vector<2x64xf32>
    %280 = arith.mulf %279, %277 : vector<2x64xf32>
    %281 = arith.mulf %272, %252 : vector<2x64xf32>
    %282 = arith.addf %280, %281 : vector<2x64xf32>
    %283 = vector.extract_strided_slice %69 {offsets = [14, 0], sizes = [2, 192], strides = [1, 1]} : vector<16x192xf32> to vector<2x192xf32>
    %cst_87 = arith.constant dense<0.000000e+00> : vector<2x192xf32>
    %284 = tpu.matmul %282, %70, %cst_87 {dimension_numbers = #tpu.dot_dimension_numbers<[1], [0], [0], [1], [0, 0, 1, 1], [], []>} : vector<2x64xf32>, vector<64x192xf32>, vector<2x192xf32> -> vector<2x192xf32>
    %285 = vector.broadcast %71 : vector<1x192xf32> to vector<2x192xf32>
    %286 = arith.addf %284, %285 : vector<2x192xf32>
    %287 = vector.extract_strided_slice %283 {offsets = [0, 0], sizes = [2, 64], strides = [1, 1]} : vector<2x192xf32> to vector<2x64xf32>
    %288 = vector.extract_strided_slice %286 {offsets = [0, 0], sizes = [2, 64], strides = [1, 1]} : vector<2x192xf32> to vector<2x64xf32>
    %289 = arith.addf %287, %288 : vector<2x64xf32>
    %290 = arith.negf %289 : vector<2x64xf32>
    %291 = math.exp %290 : vector<2x64xf32>
    %cst_88 = arith.constant 1.000000e+00 : f32
    %292 = vector.broadcast %cst_88 : f32 to vector<2x64xf32>
    %293 = arith.addf %292, %291 : vector<2x64xf32>
    %294 = arith.divf %292, %293 : vector<2x64xf32>
    %295 = vector.extract_strided_slice %283 {offsets = [0, 64], sizes = [2, 64], strides = [1, 1]} : vector<2x192xf32> to vector<2x64xf32>
    %296 = vector.extract_strided_slice %286 {offsets = [0, 64], sizes = [2, 64], strides = [1, 1]} : vector<2x192xf32> to vector<2x64xf32>
    %297 = arith.addf %295, %296 : vector<2x64xf32>
    %298 = arith.negf %297 : vector<2x64xf32>
    %299 = math.exp %298 : vector<2x64xf32>
    %cst_89 = arith.constant 1.000000e+00 : f32
    %300 = vector.broadcast %cst_89 : f32 to vector<2x64xf32>
    %301 = arith.addf %300, %299 : vector<2x64xf32>
    %302 = arith.divf %300, %301 : vector<2x64xf32>
    %303 = vector.extract_strided_slice %283 {offsets = [0, 128], sizes = [2, 64], strides = [1, 1]} : vector<2x192xf32> to vector<2x64xf32>
    %304 = vector.extract_strided_slice %286 {offsets = [0, 128], sizes = [2, 64], strides = [1, 1]} : vector<2x192xf32> to vector<2x64xf32>
    %305 = arith.mulf %294, %304 : vector<2x64xf32>
    %306 = arith.addf %303, %305 : vector<2x64xf32>
    %307 = math.tanh %306 : vector<2x64xf32>
    %cst_90 = arith.constant 1.000000e+00 : f32
    %308 = vector.broadcast %cst_90 : f32 to vector<2x64xf32>
    %309 = arith.subf %308, %302 : vector<2x64xf32>
    %310 = arith.mulf %309, %307 : vector<2x64xf32>
    %311 = arith.mulf %302, %282 : vector<2x64xf32>
    %312 = arith.addf %310, %311 : vector<2x64xf32>
    %c0_91 = arith.constant 0 : index
    %c0_92 = arith.constant 0 : index
    %313 = vector.load %arg6[%c0_91, %c0_92] : memref<72x256xf32, #tpu.memory_space<vmem>>, vector<72x256xf32>
    %c0_93 = arith.constant 0 : index
    %c0_94 = arith.constant 0 : index
    %314 = vector.load %arg7[%c0_93, %c0_94] : memref<72x2xf32, #tpu.memory_space<vmem>>, vector<72x2xf32>
    %c0_95 = arith.constant 0 : index
    %c0_96 = arith.constant 0 : index
    %315 = vector.load %arg8[%c0_95, %c0_96] : memref<2x72xf32, #tpu.memory_space<vmem>>, vector<2x72xf32>
    %316 = math.absf %313 : vector<72x256xf32>
    %cst_97 = arith.constant 1.000000e-30 : f32
    %317 = vector.broadcast %cst_97 : f32 to vector<72x256xf32>
    %318 = arith.maximumf %316, %317 : vector<72x256xf32>
    %cst_98 = arith.constant 1.000000e+00 : f32
    %319 = vector.broadcast %cst_98 : f32 to vector<72x256xf32>
    %320 = arith.divf %319, %318 : vector<72x256xf32>
    %cst_99 = arith.constant dense<0.000000e+00> : vector<2x256xf32>
    %321 = tpu.matmul %315, %320, %cst_99 {dimension_numbers = #tpu.dot_dimension_numbers<[1], [0], [0], [1], [0, 0, 1, 1], [], []>} : vector<2x72xf32>, vector<72x256xf32>, vector<2x256xf32> -> vector<2x256xf32>
    %cst_100 = arith.constant 9.99999995E+11 : f32
    %322 = vector.broadcast %cst_100 : f32 to vector<2x256xf32>
    %323 = arith.minimumf %321, %322 : vector<2x256xf32>
    %cst_101 = arith.constant dense<0.000000e+00> : vector<72x256xf32>
    %324 = tpu.matmul %314, %323, %cst_101 {dimension_numbers = #tpu.dot_dimension_numbers<[1], [0], [0], [1], [0, 0, 1, 1], [], []>} : vector<72x2xf32>, vector<2x256xf32>, vector<72x256xf32> -> vector<72x256xf32>
    %325 = arith.mulf %313, %324 : vector<72x256xf32>
    %c0_102 = arith.constant 0 : index
    %c0_103 = arith.constant 0 : index
    %326 = vector.load %arg10[%c0_102, %c0_103] : memref<64x64xf32, #tpu.memory_space<vmem>>, vector<64x64xf32>
    %cst_104 = arith.constant dense<0.000000e+00> : vector<2x64xf32>
    %327 = tpu.matmul %312, %326, %cst_104 {dimension_numbers = #tpu.dot_dimension_numbers<[1], [0], [0], [1], [0, 0, 1, 1], [], []>} : vector<2x64xf32>, vector<64x64xf32>, vector<2x64xf32> -> vector<2x64xf32>
    %c0_105 = arith.constant 0 : index
    %c0_106 = arith.constant 0 : index
    %328 = vector.load %arg11[%c0_105, %c0_106] : memref<1x64xf32, #tpu.memory_space<vmem>>, vector<1x64xf32>
    %329 = vector.broadcast %328 : vector<1x64xf32> to vector<2x64xf32>
    %330 = arith.addf %327, %329 : vector<2x64xf32>
    %c0_107 = arith.constant 0 : index
    %c0_108 = arith.constant 0 : index
    %331 = vector.load %arg13[%c0_107, %c0_108] : memref<64x64xf32, #tpu.memory_space<vmem>>, vector<64x64xf32>
    %cst_109 = arith.constant dense<0.000000e+00> : vector<2x64xf32>
    %332 = tpu.matmul %312, %331, %cst_109 {dimension_numbers = #tpu.dot_dimension_numbers<[1], [0], [0], [1], [0, 0, 1, 1], [], []>} : vector<2x64xf32>, vector<64x64xf32>, vector<2x64xf32> -> vector<2x64xf32>
    %c0_110 = arith.constant 0 : index
    %c0_111 = arith.constant 0 : index
    %333 = vector.load %arg14[%c0_110, %c0_111] : memref<1x64xf32, #tpu.memory_space<vmem>>, vector<1x64xf32>
    %334 = vector.broadcast %333 : vector<1x64xf32> to vector<2x64xf32>
    %335 = arith.addf %332, %334 : vector<2x64xf32>
    %c0_112 = arith.constant 0 : index
    %c0_113 = arith.constant 0 : index
    %336 = vector.load %arg9[%c0_112, %c0_113] : memref<256x64xf32, #tpu.memory_space<vmem>>, vector<256x64xf32>
    %cst_114 = arith.constant dense<0.000000e+00> : vector<72x64xf32>
    %337 = tpu.matmul %325, %336, %cst_114 {dimension_numbers = #tpu.dot_dimension_numbers<[1], [0], [0], [1], [0, 0, 1, 1], [], []>} : vector<72x256xf32>, vector<256x64xf32>, vector<72x64xf32> -> vector<72x64xf32>
    %cst_115 = arith.constant dense<0.000000e+00> : vector<72x64xf32>
    %338 = tpu.matmul %314, %330, %cst_115 {dimension_numbers = #tpu.dot_dimension_numbers<[1], [0], [0], [1], [0, 0, 1, 1], [], []>} : vector<72x2xf32>, vector<2x64xf32>, vector<72x64xf32> -> vector<72x64xf32>
    %339 = arith.addf %337, %338 : vector<72x64xf32>
    %c0_116 = arith.constant 0 : index
    %c0_117 = arith.constant 0 : index
    %340 = vector.load %arg12[%c0_116, %c0_117] : memref<256x64xf32, #tpu.memory_space<vmem>>, vector<256x64xf32>
    %cst_118 = arith.constant dense<0.000000e+00> : vector<72x64xf32>
    %341 = tpu.matmul %325, %340, %cst_118 {dimension_numbers = #tpu.dot_dimension_numbers<[1], [0], [0], [1], [0, 0, 1, 1], [], []>} : vector<72x256xf32>, vector<256x64xf32>, vector<72x64xf32> -> vector<72x64xf32>
    %cst_119 = arith.constant dense<0.000000e+00> : vector<72x64xf32>
    %342 = tpu.matmul %314, %335, %cst_119 {dimension_numbers = #tpu.dot_dimension_numbers<[1], [0], [0], [1], [0, 0, 1, 1], [], []>} : vector<72x2xf32>, vector<2x64xf32>, vector<72x64xf32> -> vector<72x64xf32>
    %343 = arith.addf %341, %342 : vector<72x64xf32>
    %344 = math.tanh %339 : vector<72x64xf32>
    %345 = arith.negf %343 : vector<72x64xf32>
    %346 = math.exp %345 : vector<72x64xf32>
    %cst_120 = arith.constant 1.000000e+00 : f32
    %347 = vector.broadcast %cst_120 : f32 to vector<72x64xf32>
    %348 = arith.addf %347, %346 : vector<72x64xf32>
    %349 = arith.divf %347, %348 : vector<72x64xf32>
    %350 = arith.mulf %344, %349 : vector<72x64xf32>
    %c0_121 = arith.constant 0 : index
    %c0_122 = arith.constant 0 : index
    %351 = vector.load %arg15[%c0_121, %c0_122] : memref<64x1xf32, #tpu.memory_space<vmem>>, vector<64x1xf32>
    %cst_123 = arith.constant dense<0.000000e+00> : vector<72x1xf32>
    %352 = tpu.matmul %350, %351, %cst_123 {dimension_numbers = #tpu.dot_dimension_numbers<[1], [0], [0], [1], [0, 0, 1, 1], [], []>} : vector<72x64xf32>, vector<64x1xf32>, vector<72x1xf32> -> vector<72x1xf32>
    %c0_124 = arith.constant 0 : index
    %c0_125 = arith.constant 0 : index
    %353 = vector.load %arg16[%c0_124, %c0_125] : memref<1x1xf32, #tpu.memory_space<vmem>>, vector<1x1xf32>
    %354 = vector.broadcast %353 : vector<1x1xf32> to vector<72x1xf32>
    %355 = arith.addf %352, %354 : vector<72x1xf32>
    %cst_126 = arith.constant dense<0xFF800000> : vector<1xf32>
    %356 = vector.multi_reduction <maximumf>, %355, %cst_126 [0] : vector<72x1xf32> to vector<1xf32>
    %357 = vector.shape_cast %356 : vector<1xf32> to vector<1x1xf32>
    %358 = vector.broadcast %357 : vector<1x1xf32> to vector<72x1xf32>
    %359 = arith.subf %355, %358 : vector<72x1xf32>
    %360 = math.exp %359 : vector<72x1xf32>
    %cst_127 = arith.constant dense<0.000000e+00> : vector<2x1xf32>
    %361 = tpu.matmul %315, %360, %cst_127 {dimension_numbers = #tpu.dot_dimension_numbers<[1], [0], [0], [1], [0, 0, 1, 1], [], []>} : vector<2x72xf32>, vector<72x1xf32>, vector<2x1xf32> -> vector<2x1xf32>
    %cst_128 = arith.constant 1.000000e+00 : f32
    %362 = vector.broadcast %cst_128 : f32 to vector<2x1xf32>
    %363 = arith.divf %362, %361 : vector<2x1xf32>
    %cst_129 = arith.constant dense<0.000000e+00> : vector<72x1xf32>
    %364 = tpu.matmul %314, %363, %cst_129 {dimension_numbers = #tpu.dot_dimension_numbers<[1], [0], [0], [1], [0, 0, 1, 1], [], []>} : vector<72x2xf32>, vector<2x1xf32>, vector<72x1xf32> -> vector<72x1xf32>
    %365 = arith.mulf %360, %364 : vector<72x1xf32>
    %366 = vector.broadcast %365 : vector<72x1xf32> to vector<72x256xf32>
    %367 = arith.mulf %366, %325 : vector<72x256xf32>
    %cst_130 = arith.constant dense<0.000000e+00> : vector<2x256xf32>
    %368 = tpu.matmul %315, %367, %cst_130 {dimension_numbers = #tpu.dot_dimension_numbers<[1], [0], [0], [1], [0, 0, 1, 1], [], []>} : vector<2x72xf32>, vector<72x256xf32>, vector<2x256xf32> -> vector<2x256xf32>
    %c0_131 = arith.constant 0 : index
    %c0_132 = arith.constant 0 : index
    %369 = vector.load %arg17[%c0_131, %c0_132] : memref<64x64xf32, #tpu.memory_space<vmem>>, vector<64x64xf32>
    %cst_133 = arith.constant dense<0.000000e+00> : vector<2x64xf32>
    %370 = tpu.matmul %312, %369, %cst_133 {dimension_numbers = #tpu.dot_dimension_numbers<[1], [0], [0], [1], [0, 0, 1, 1], [], []>} : vector<2x64xf32>, vector<64x64xf32>, vector<2x64xf32> -> vector<2x64xf32>
    %c0_134 = arith.constant 0 : index
    %c0_135 = arith.constant 0 : index
    %371 = vector.load %arg18[%c0_134, %c0_135] : memref<1x64xf32, #tpu.memory_space<vmem>>, vector<1x64xf32>
    %372 = vector.broadcast %371 : vector<1x64xf32> to vector<2x64xf32>
    %373 = arith.addf %370, %372 : vector<2x64xf32>
    %374 = math.tanh %373 : vector<2x64xf32>
    %c0_136 = arith.constant 0 : index
    %c0_137 = arith.constant 0 : index
    %375 = vector.load %arg19[%c0_136, %c0_137] : memref<64x64xf32, #tpu.memory_space<vmem>>, vector<64x64xf32>
    %cst_138 = arith.constant dense<0.000000e+00> : vector<2x64xf32>
    %376 = tpu.matmul %312, %375, %cst_138 {dimension_numbers = #tpu.dot_dimension_numbers<[1], [0], [0], [1], [0, 0, 1, 1], [], []>} : vector<2x64xf32>, vector<64x64xf32>, vector<2x64xf32> -> vector<2x64xf32>
    %c0_139 = arith.constant 0 : index
    %c0_140 = arith.constant 0 : index
    %377 = vector.load %arg20[%c0_139, %c0_140] : memref<1x64xf32, #tpu.memory_space<vmem>>, vector<1x64xf32>
    %378 = vector.broadcast %377 : vector<1x64xf32> to vector<2x64xf32>
    %379 = arith.addf %376, %378 : vector<2x64xf32>
    %380 = arith.negf %379 : vector<2x64xf32>
    %381 = math.exp %380 : vector<2x64xf32>
    %cst_141 = arith.constant 1.000000e+00 : f32
    %382 = vector.broadcast %cst_141 : f32 to vector<2x64xf32>
    %383 = arith.addf %382, %381 : vector<2x64xf32>
    %384 = arith.divf %382, %383 : vector<2x64xf32>
    %385 = arith.mulf %374, %384 : vector<2x64xf32>
    %c0_142 = arith.constant 0 : index
    %c0_143 = arith.constant 0 : index
    %386 = vector.load %arg21[%c0_142, %c0_143] : memref<256x64xf32, #tpu.memory_space<vmem>>, vector<256x64xf32>
    %cst_144 = arith.constant dense<0.000000e+00> : vector<2x64xf32>
    %387 = tpu.matmul %368, %386, %cst_144 {dimension_numbers = #tpu.dot_dimension_numbers<[1], [0], [0], [1], [0, 0, 1, 1], [], []>} : vector<2x256xf32>, vector<256x64xf32>, vector<2x64xf32> -> vector<2x64xf32>
    %c0_145 = arith.constant 0 : index
    %c0_146 = arith.constant 0 : index
    %388 = vector.load %arg22[%c0_145, %c0_146] : memref<1x64xf32, #tpu.memory_space<vmem>>, vector<1x64xf32>
    %389 = vector.broadcast %388 : vector<1x64xf32> to vector<2x64xf32>
    %390 = arith.addf %387, %389 : vector<2x64xf32>
    %391 = math.tanh %390 : vector<2x64xf32>
    %c0_147 = arith.constant 0 : index
    %c0_148 = arith.constant 0 : index
    %392 = vector.load %arg23[%c0_147, %c0_148] : memref<256x64xf32, #tpu.memory_space<vmem>>, vector<256x64xf32>
    %cst_149 = arith.constant dense<0.000000e+00> : vector<2x64xf32>
    %393 = tpu.matmul %368, %392, %cst_149 {dimension_numbers = #tpu.dot_dimension_numbers<[1], [0], [0], [1], [0, 0, 1, 1], [], []>} : vector<2x256xf32>, vector<256x64xf32>, vector<2x64xf32> -> vector<2x64xf32>
    %c0_150 = arith.constant 0 : index
    %c0_151 = arith.constant 0 : index
    %394 = vector.load %arg24[%c0_150, %c0_151] : memref<1x64xf32, #tpu.memory_space<vmem>>, vector<1x64xf32>
    %395 = vector.broadcast %394 : vector<1x64xf32> to vector<2x64xf32>
    %396 = arith.addf %393, %395 : vector<2x64xf32>
    %397 = arith.negf %396 : vector<2x64xf32>
    %398 = math.exp %397 : vector<2x64xf32>
    %cst_152 = arith.constant 1.000000e+00 : f32
    %399 = vector.broadcast %cst_152 : f32 to vector<2x64xf32>
    %400 = arith.addf %399, %398 : vector<2x64xf32>
    %401 = arith.divf %399, %400 : vector<2x64xf32>
    %402 = arith.mulf %391, %401 : vector<2x64xf32>
    %403 = arith.mulf %385, %402 : vector<2x64xf32>
    %c0_153 = arith.constant 0 : index
    %c0_154 = arith.constant 0 : index
    %404 = vector.load %arg25[%c0_153, %c0_154] : memref<64x64xf32, #tpu.memory_space<vmem>>, vector<64x64xf32>
    %cst_155 = arith.constant dense<0.000000e+00> : vector<2x64xf32>
    %405 = tpu.matmul %403, %404, %cst_155 {dimension_numbers = #tpu.dot_dimension_numbers<[1], [0], [0], [1], [0, 0, 1, 1], [], []>} : vector<2x64xf32>, vector<64x64xf32>, vector<2x64xf32> -> vector<2x64xf32>
    %c0_156 = arith.constant 0 : index
    %c0_157 = arith.constant 0 : index
    %406 = vector.load %arg26[%c0_156, %c0_157] : memref<1x64xf32, #tpu.memory_space<vmem>>, vector<1x64xf32>
    %407 = vector.broadcast %406 : vector<1x64xf32> to vector<2x64xf32>
    %408 = arith.addf %405, %407 : vector<2x64xf32>
    %409 = math.tanh %408 : vector<2x64xf32>
    %c0_158 = arith.constant 0 : index
    %c0_159 = arith.constant 0 : index
    %410 = vector.load %arg27[%c0_158, %c0_159] : memref<64x64xf32, #tpu.memory_space<vmem>>, vector<64x64xf32>
    %cst_160 = arith.constant dense<0.000000e+00> : vector<2x64xf32>
    %411 = tpu.matmul %403, %410, %cst_160 {dimension_numbers = #tpu.dot_dimension_numbers<[1], [0], [0], [1], [0, 0, 1, 1], [], []>} : vector<2x64xf32>, vector<64x64xf32>, vector<2x64xf32> -> vector<2x64xf32>
    %c0_161 = arith.constant 0 : index
    %c0_162 = arith.constant 0 : index
    %412 = vector.load %arg28[%c0_161, %c0_162] : memref<1x64xf32, #tpu.memory_space<vmem>>, vector<1x64xf32>
    %413 = vector.broadcast %412 : vector<1x64xf32> to vector<2x64xf32>
    %414 = arith.addf %411, %413 : vector<2x64xf32>
    %415 = arith.negf %414 : vector<2x64xf32>
    %416 = math.exp %415 : vector<2x64xf32>
    %cst_163 = arith.constant 1.000000e+00 : f32
    %417 = vector.broadcast %cst_163 : f32 to vector<2x64xf32>
    %418 = arith.addf %417, %416 : vector<2x64xf32>
    %419 = arith.divf %417, %418 : vector<2x64xf32>
    %420 = arith.mulf %409, %419 : vector<2x64xf32>
    %c0_164 = arith.constant 0 : index
    %c0_165 = arith.constant 0 : index
    %421 = vector.load %arg29[%c0_164, %c0_165] : memref<64x32xf32, #tpu.memory_space<vmem>>, vector<64x32xf32>
    %cst_166 = arith.constant dense<0.000000e+00> : vector<2x32xf32>
    %422 = tpu.matmul %420, %421, %cst_166 {dimension_numbers = #tpu.dot_dimension_numbers<[1], [0], [0], [1], [0, 0, 1, 1], [], []>} : vector<2x64xf32>, vector<64x32xf32>, vector<2x32xf32> -> vector<2x32xf32>
    %c0_167 = arith.constant 0 : index
    %c0_168 = arith.constant 0 : index
    %423 = vector.load %arg30[%c0_167, %c0_168] : memref<1x32xf32, #tpu.memory_space<vmem>>, vector<1x32xf32>
    %424 = vector.broadcast %423 : vector<1x32xf32> to vector<2x32xf32>
    %425 = arith.addf %422, %424 : vector<2x32xf32>
    %c0_169 = arith.constant 0 : index
    %c0_170 = arith.constant 0 : index
    %426 = vector.load %arg31[%c0_169, %c0_170] : memref<2x32xf32, #tpu.memory_space<vmem>>, vector<2x32xf32>
    tpu.vector_store %arg31[%c0_169, %c0_170], %425 {strides = array<i32>} : memref<2x32xf32, #tpu.memory_space<vmem>>, vector<2x32xf32>,
    return
  }
}

</mosaic_0001>

<llo_original>
// kernel: tpu_custom_call.1
$region0: #{tpu_custom_call.1}
  #allocation0 [shape = 'u32[]', space=smem, size = 0x4, offset = 0x4, fixed_abs, tag = 'smem constant byte address 0x4 - core index']
  #allocation1 [shape = 'u32[144,128]{1,0:T(1,128)}', space=vmem, size = 0x12000, scoped, tag = 'internal scratch']
  #allocation2 [shape = 'f32[16,32]{1,0:T(8,128)}', space=vmem, size = 0x2000, scoped, tag = 'scratch operand']
  #allocation3 [shape = 'f32[1,1]{1,0:T(1,128)S(1)}', space=vmem, size = 0x200, scoped, tag = 'scoped memory for tpu_custom_call.1']
  %s0 = inlined_call_operand.smem [shape: u32[32], index: -1, kind: input, shape index: {}]
  %s1 = sld [smem:[%s0]]
  %s2 = scalar_lea.smem %s0, 1
  %s3 = sld [smem:[%s2]]
  %s4 = scalar_lea.smem %s0, 2
  %s5 = sld [smem:[%s4]]
  %s6 = scalar_lea.smem %s0, 3
  %s7 = sld [smem:[%s6]]
  %s8 = scalar_lea.smem %s0, 4
  %s9 = sld [smem:[%s8]]
  %s10 = scalar_lea.smem %s0, 5
  %s11 = sld [smem:[%s10]]
  %s12 = scalar_lea.smem %s0, 6
  %s13 = sld [smem:[%s12]]
  %s14 = scalar_lea.smem %s0, 7
  %s15 = sld [smem:[%s14]]
  %s16 = scalar_lea.smem %s0, 8
  %s17 = sld [smem:[%s16]]
  %s18 = scalar_lea.smem %s0, 9
  %s19 = sld [smem:[%s18]]
  %s20 = scalar_lea.smem %s0, 10
  %s21 = sld [smem:[%s20]]
  %s22 = scalar_lea.smem %s0, 11
  %s23 = sld [smem:[%s22]]
  %s24 = scalar_lea.smem %s0, 12
  %s25 = sld [smem:[%s24]]
  %s26 = scalar_lea.smem %s0, 13
  %s27 = sld [smem:[%s26]]
  %s28 = scalar_lea.smem %s0, 14
  %s29 = sld [smem:[%s28]]
  %s30 = scalar_lea.smem %s0, 15
  %s31 = sld [smem:[%s30]]
  %s32 = scalar_lea.smem %s0, 16
  %s33 = sld [smem:[%s32]]
  %s34 = scalar_lea.smem %s0, 17
  %s35 = sld [smem:[%s34]]
  %s36 = scalar_lea.smem %s0, 18
  %s37 = sld [smem:[%s36]]
  %s38 = scalar_lea.smem %s0, 19
  %s39 = sld [smem:[%s38]]
  %s40 = scalar_lea.smem %s0, 20
  %s41 = sld [smem:[%s40]]
  %s42 = scalar_lea.smem %s0, 21
  %s43 = sld [smem:[%s42]]
  %s44 = scalar_lea.smem %s0, 22
  %s45 = sld [smem:[%s44]]
  %s46 = scalar_lea.smem %s0, 23
  %s47 = sld [smem:[%s46]]
  %s48 = scalar_lea.smem %s0, 24
  %s49 = sld [smem:[%s48]]
  %s50 = scalar_lea.smem %s0, 25
  %s51 = sld [smem:[%s50]]
  %s52 = scalar_lea.smem %s0, 26
  %s53 = sld [smem:[%s52]]
  %s54 = scalar_lea.smem %s0, 27
  %s55 = sld [smem:[%s54]]
  %s56 = scalar_lea.smem %s0, 28
  %s57 = sld [smem:[%s56]]
  %s58 = scalar_lea.smem %s0, 29
  %s59 = sld [smem:[%s58]]
  %s60 = scalar_lea.smem %s0, 30
  %s61 = sld [smem:[%s60]]
  %s62 = scalar_lea.smem %s0, 31
  %s63 = sld [smem:[%s62]]
  %s64 = sld [smem:[#allocation0]]
  $region138: #{tpu_custom_call.1} parent=0
    _
  %s66 = ssub.s32 1, %s64
  %s67 = scalar_select 0, %s66, %s64
  %v68 = vstv %s33
  %69 = vst [vmem:[#allocation3] sm:$0x1] %v68
  $region1: #{tpu_custom_call.1} parent=0
    #allocation4 [shape = 'u8[512]{0}', space=smem, size = 0x200, scoped, tag = 'input window, operand 0, single buffered']
    #allocation5 [shape = 's32[1]{0}', space=sflag, size = 0x4, scoped, tag = 'scoped memory for tpu_custom_call.1']
    #allocation6 [shape = 's32[1]{0}', space=sflag, size = 0x4, scoped, tag = 'scoped memory for tpu_custom_call.1']
    #allocation7 [shape = 'u8[1024]{0}', space=vmem, size = 0x400, scoped, tag = 'output window, operand 0, single buffered']
    %70 = vsyncpa [#allocation6], 0
    %71 = vsyncpa [#allocation5], 0
    // Predicated region
    $region2: #{tpu_custom_call.1} parent=1 // pred_check
      _
    $region3: #{tpu_custom_call.1} parent=1 // pred_check_branch
      %73 = sbr.rel (0) target = $region5
    $region4: #{tpu_custom_call.1} parent=1 // pred_region
      %s75 = ssub.s32 16, 16
      %76 = vsyncadd [#allocation6], %s75
      %s78 = sshll.u32 %s1, 4
      %s79 = int_to_ptr.vmem [resolvable:$true] %s78
      %81 = dma.vmem_to_smem %s79, 16, [#allocation4], [#allocation6]
    $region5: #{tpu_custom_call.1} parent=1 // pred_fallthru
      _
    // Predicated region
    $region6: #{tpu_custom_call.1} parent=1 // pred_check
      _
    $region7: #{tpu_custom_call.1} parent=1 // pred_check_branch
      %83 = sbr.rel (0) target = $region9
    $region8: #{tpu_custom_call.1} parent=1 // pred_region
      _
    $region9: #{tpu_custom_call.1} parent=1 // pred_fallthru
      _
    // Predicated region
    $region10: #{tpu_custom_call.1} parent=1 // pred_check
      _
    $region11: #{tpu_custom_call.1} parent=1 // pred_check_branch
      %85 = sbr.rel (0) target = $region13
    $region12: #{tpu_custom_call.1} parent=1 // pred_region
      _
    $region13: #{tpu_custom_call.1} parent=1 // pred_fallthru
      _
    // Predicated region
    $region14: #{tpu_custom_call.1} parent=1 // pred_check
      _
    $region15: #{tpu_custom_call.1} parent=1 // pred_check_branch
      %87 = sbr.rel (0) target = $region17
    $region16: #{tpu_custom_call.1} parent=1 // pred_region
      _
    $region17: #{tpu_custom_call.1} parent=1 // pred_fallthru
      _
    // Predicated region
    $region18: #{tpu_custom_call.1} parent=1 // pred_check
      _
    $region19: #{tpu_custom_call.1} parent=1 // pred_check_branch
      %89 = sbr.rel (0) target = $region21
    $region20: #{tpu_custom_call.1} parent=1 // pred_region
      _
    $region21: #{tpu_custom_call.1} parent=1 // pred_fallthru
      _
    // Predicated region
    $region22: #{tpu_custom_call.1} parent=1 // pred_check
      _
    $region23: #{tpu_custom_call.1} parent=1 // pred_check_branch
      %91 = sbr.rel (0) target = $region25
    $region24: #{tpu_custom_call.1} parent=1 // pred_region
      _
    $region25: #{tpu_custom_call.1} parent=1 // pred_fallthru
      _
    // Predicated region
    $region26: #{tpu_custom_call.1} parent=1 // pred_check
      _
    $region27: #{tpu_custom_call.1} parent=1 // pred_check_branch
      %93 = sbr.rel (0) target = $region29
    $region28: #{tpu_custom_call.1} parent=1 // pred_region
      _
    $region29: #{tpu_custom_call.1} parent=1 // pred_fallthru
      _
    // Predicated region
    $region30: #{tpu_custom_call.1} parent=1 // pred_check
      _
    $region31: #{tpu_custom_call.1} parent=1 // pred_check_branch
      %95 = sbr.rel (0) target = $region33
    $region32: #{tpu_custom_call.1} parent=1 // pred_region
      _
    $region33: #{tpu_custom_call.1} parent=1 // pred_fallthru
      _
    // Predicated region
    $region34: #{tpu_custom_call.1} parent=1 // pred_check
      _
    $region35: #{tpu_custom_call.1} parent=1 // pred_check_branch
      %97 = sbr.rel (0) target = $region37
    $region36: #{tpu_custom_call.1} parent=1 // pred_region
      _
    $region37: #{tpu_custom_call.1} parent=1 // pred_fallthru
      _
    // Predicated region
    $region38: #{tpu_custom_call.1} parent=1 // pred_check
      _
    $region39: #{tpu_custom_call.1} parent=1 // pred_check_branch
      %99 = sbr.rel (0) target = $region41
    $region40: #{tpu_custom_call.1} parent=1 // pred_region
      _
    $region41: #{tpu_custom_call.1} parent=1 // pred_fallthru
      _
    // Predicated region
    $region42: #{tpu_custom_call.1} parent=1 // pred_check
      _
    $region43: #{tpu_custom_call.1} parent=1 // pred_check_branch
      %101 = sbr.rel (0) target = $region45
    $region44: #{tpu_custom_call.1} parent=1 // pred_region
      _
    $region45: #{tpu_custom_call.1} parent=1 // pred_fallthru
      _
    // Predicated region
    $region46: #{tpu_custom_call.1} parent=1 // pred_check
      _
    $region47: #{tpu_custom_call.1} parent=1 // pred_check_branch
      %103 = sbr.rel (0) target = $region49
    $region48: #{tpu_custom_call.1} parent=1 // pred_region
      _
    $region49: #{tpu_custom_call.1} parent=1 // pred_fallthru
      _
    // Predicated region
    $region50: #{tpu_custom_call.1} parent=1 // pred_check
      _
    $region51: #{tpu_custom_call.1} parent=1 // pred_check_branch
      %105 = sbr.rel (0) target = $region53
    $region52: #{tpu_custom_call.1} parent=1 // pred_region
      _
    $region53: #{tpu_custom_call.1} parent=1 // pred_fallthru
      _
    // Predicated region
    $region54: #{tpu_custom_call.1} parent=1 // pred_check
      _
    $region55: #{tpu_custom_call.1} parent=1 // pred_check_branch
      %107 = sbr.rel (0) target = $region57
    $region56: #{tpu_custom_call.1} parent=1 // pred_region
      _
    $region57: #{tpu_custom_call.1} parent=1 // pred_fallthru
      _
    // Predicated region
    $region58: #{tpu_custom_call.1} parent=1 // pred_check
      _
    $region59: #{tpu_custom_call.1} parent=1 // pred_check_branch
      %109 = sbr.rel (0) target = $region61
    $region60: #{tpu_custom_call.1} parent=1 // pred_region
      _
    $region61: #{tpu_custom_call.1} parent=1 // pred_fallthru
      _
    // Predicated region
    $region62: #{tpu_custom_call.1} parent=1 // pred_check
      _
    $region63: #{tpu_custom_call.1} parent=1 // pred_check_branch
      %111 = sbr.rel (0) target = $region65
    $region64: #{tpu_custom_call.1} parent=1 // pred_region
      _
    $region65: #{tpu_custom_call.1} parent=1 // pred_fallthru
      _
    // Predicated region
    $region66: #{tpu_custom_call.1} parent=1 // pred_check
      _
    $region67: #{tpu_custom_call.1} parent=1 // pred_check_branch
      %113 = sbr.rel (0) target = $region69
    $region68: #{tpu_custom_call.1} parent=1 // pred_region
      _
    $region69: #{tpu_custom_call.1} parent=1 // pred_fallthru
      _
    // Predicated region
    $region70: #{tpu_custom_call.1} parent=1 // pred_check
      _
    $region71: #{tpu_custom_call.1} parent=1 // pred_check_branch
      %115 = sbr.rel (0) target = $region73
    $region72: #{tpu_custom_call.1} parent=1 // pred_region
      _
    $region73: #{tpu_custom_call.1} parent=1 // pred_fallthru
      _
    // Predicated region
    $region74: #{tpu_custom_call.1} parent=1 // pred_check
      _
    $region75: #{tpu_custom_call.1} parent=1 // pred_check_branch
      %117 = sbr.rel (0) target = $region77
    $region76: #{tpu_custom_call.1} parent=1 // pred_region
      _
    $region77: #{tpu_custom_call.1} parent=1 // pred_fallthru
      _
    // Predicated region
    $region78: #{tpu_custom_call.1} parent=1 // pred_check
      _
    $region79: #{tpu_custom_call.1} parent=1 // pred_check_branch
      %119 = sbr.rel (0) target = $region81
    $region80: #{tpu_custom_call.1} parent=1 // pred_region
      _
    $region81: #{tpu_custom_call.1} parent=1 // pred_fallthru
      _
    // Predicated region
    $region82: #{tpu_custom_call.1} parent=1 // pred_check
      _
    $region83: #{tpu_custom_call.1} parent=1 // pred_check_branch
      %121 = sbr.rel (0) target = $region85
    $region84: #{tpu_custom_call.1} parent=1 // pred_region
      _
    $region85: #{tpu_custom_call.1} parent=1 // pred_fallthru
      _
    // Predicated region
    $region86: #{tpu_custom_call.1} parent=1 // pred_check
      _
    $region87: #{tpu_custom_call.1} parent=1 // pred_check_branch
      %123 = sbr.rel (0) target = $region89
    $region88: #{tpu_custom_call.1} parent=1 // pred_region
      _
    $region89: #{tpu_custom_call.1} parent=1 // pred_fallthru
      _
    // Predicated region
    $region90: #{tpu_custom_call.1} parent=1 // pred_check
      _
    $region91: #{tpu_custom_call.1} parent=1 // pred_check_branch
      %125 = sbr.rel (0) target = $region93
    $region92: #{tpu_custom_call.1} parent=1 // pred_region
      _
    $region93: #{tpu_custom_call.1} parent=1 // pred_fallthru
      _
    // Predicated region
    $region94: #{tpu_custom_call.1} parent=1 // pred_check
      _
    $region95: #{tpu_custom_call.1} parent=1 // pred_check_branch
      %127 = sbr.rel (0) target = $region97
    $region96: #{tpu_custom_call.1} parent=1 // pred_region
      _
    $region97: #{tpu_custom_call.1} parent=1 // pred_fallthru
      _
    // Predicated region
    $region98: #{tpu_custom_call.1} parent=1 // pred_check
      _
    $region99: #{tpu_custom_call.1} parent=1 // pred_check_branch
      %129 = sbr.rel (0) target = $region101
    $region100: #{tpu_custom_call.1} parent=1 // pred_region
      _
    $region101: #{tpu_custom_call.1} parent=1 // pred_fallthru
      _
    // Predicated region
    $region102: #{tpu_custom_call.1} parent=1 // pred_check
      _
    $region103: #{tpu_custom_call.1} parent=1 // pred_check_branch
      %131 = sbr.rel (0) target = $region105
    $region104: #{tpu_custom_call.1} parent=1 // pred_region
      _
    $region105: #{tpu_custom_call.1} parent=1 // pred_fallthru
      _
    // Predicated region
    $region106: #{tpu_custom_call.1} parent=1 // pred_check
      _
    $region107: #{tpu_custom_call.1} parent=1 // pred_check_branch
      %133 = sbr.rel (0) target = $region109
    $region108: #{tpu_custom_call.1} parent=1 // pred_region
      _
    $region109: #{tpu_custom_call.1} parent=1 // pred_fallthru
      _
    // Predicated region
    $region110: #{tpu_custom_call.1} parent=1 // pred_check
      _
    $region111: #{tpu_custom_call.1} parent=1 // pred_check_branch
      %135 = sbr.rel (0) target = $region113
    $region112: #{tpu_custom_call.1} parent=1 // pred_region
      _
    $region113: #{tpu_custom_call.1} parent=1 // pred_fallthru
      _
    // Predicated region
    $region114: #{tpu_custom_call.1} parent=1 // pred_check
      _
    $region115: #{tpu_custom_call.1} parent=1 // pred_check_branch
      %137 = sbr.rel (0) target = $region117
    $region116: #{tpu_custom_call.1} parent=1 // pred_region
      _
    $region117: #{tpu_custom_call.1} parent=1 // pred_fallthru
      _
    // Predicated region
    $region118: #{tpu_custom_call.1} parent=1 // pred_check
      _
    $region119: #{tpu_custom_call.1} parent=1 // pred_check_branch
      %139 = sbr.rel (0) target = $region121
    $region120: #{tpu_custom_call.1} parent=1 // pred_region
      _
    $region121: #{tpu_custom_call.1} parent=1 // pred_fallthru
      _
    // Predicated region
    $region122: #{tpu_custom_call.1} parent=1 // pred_check
      _
    $region123: #{tpu_custom_call.1} parent=1 // pred_check_branch
      %141 = sbr.rel (0) target = $region125
    $region124: #{tpu_custom_call.1} parent=1 // pred_region
      _
    $region125: #{tpu_custom_call.1} parent=1 // pred_fallthru
      _
    // Predicated region
    $region126: #{tpu_custom_call.1} parent=1 // pred_check
      _
    $region127: #{tpu_custom_call.1} parent=1 // pred_check_branch
      %143 = sbr.rel (0) target = $region129
    $region128: #{tpu_custom_call.1} parent=1 // pred_region
      %144 = dma.done [#allocation6], 16
    $region129: #{tpu_custom_call.1} parent=1 // pred_fallthru
      _
    %145 = sfence
    %s146 = sld [smem:[#allocation4]]
    %s147 = scalar_lea.vmem %s3, %s146
    %v148 = vld [vmem:[%s147] sm:$0x1]
    %vm149 = vcmask 253952
    %150 = vst.msk [vmem:[#allocation2] sm:$0x1] %vm149, %v148
    %s151 = sld [smem:[#allocation4 + $0x8]]
    %s152 = scalar_lea.vmem %s3, %s151
    %v153 = vld [vmem:[%s152] sm:$0x1]
    %154 = vst.msk [vmem:[#allocation2 + $0x1] sm:$0x1] %vm149, %v153
    %s155 = sld [smem:[#allocation4 + $0x1]]
    %s156 = scalar_lea.vmem %s3, %s155
    %v157 = vld [vmem:[%s156] sm:$0x1]
    %158 = vst.msk [vmem:[#allocation2 + $0x2] sm:$0x1] %vm149, %v157
    %s159 = sld [smem:[#allocation4 + $0x9]]
    %s160 = scalar_lea.vmem %s3, %s159
    %v161 = vld [vmem:[%s160] sm:$0x1]
    %162 = vst.msk [vmem:[#allocation2 + $0x3] sm:$0x1] %vm149, %v161
    %s163 = sld [smem:[#allocation4 + $0x2]]
    %s164 = scalar_lea.vmem %s3, %s163
    %v165 = vld [vmem:[%s164] sm:$0x1]
    %166 = vst.msk [vmem:[#allocation2 + $0x4] sm:$0x1] %vm149, %v165
    %s167 = sld [smem:[#allocation4 + $0xa]]
    %s168 = scalar_lea.vmem %s3, %s167
    %v169 = vld [vmem:[%s168] sm:$0x1]
    %170 = vst.msk [vmem:[#allocation2 + $0x5] sm:$0x1] %vm149, %v169
    %s171 = sld [smem:[#allocation4 + $0x3]]
    %s172 = scalar_lea.vmem %s3, %s171
    %v173 = vld [vmem:[%s172] sm:$0x1]
    %174 = vst.msk [vmem:[#allocation2 + $0x6] sm:$0x1] %vm149, %v173
    %s175 = sld [smem:[#allocation4 + $0xb]]
    %s176 = scalar_lea.vmem %s3, %s175
    %v177 = vld [vmem:[%s176] sm:$0x1]
    %178 = vst.msk [vmem:[#allocation2 + $0x7] sm:$0x1] %vm149, %v177
    %s179 = sld [smem:[#allocation4 + $0x4]]
    %s180 = scalar_lea.vmem %s3, %s179
    %v181 = vld [vmem:[%s180] sm:$0x1]
    %182 = vst.msk [vmem:[#allocation2 + $0x8] sm:$0x1] %vm149, %v181
    %s183 = sld [smem:[#allocation4 + $0xc]]
    %s184 = scalar_lea.vmem %s3, %s183
    %v185 = vld [vmem:[%s184] sm:$0x1]
    %186 = vst.msk [vmem:[#allocation2 + $0x9] sm:$0x1] %vm149, %v185
    %s187 = sld [smem:[#allocation4 + $0x5]]
    %s188 = scalar_lea.vmem %s3, %s187
    %v189 = vld [vmem:[%s188] sm:$0x1]
    %190 = vst.msk [vmem:[#allocation2 + $0xa] sm:$0x1] %vm149, %v189
    %s191 = sld [smem:[#allocation4 + $0xd]]
    %s192 = scalar_lea.vmem %s3, %s191
    %v193 = vld [vmem:[%s192] sm:$0x1]
    %194 = vst.msk [vmem:[#allocation2 + $0xb] sm:$0x1] %vm149, %v193
    %s195 = sld [smem:[#allocation4 + $0x6]]
    %s196 = scalar_lea.vmem %s3, %s195
    %v197 = vld [vmem:[%s196] sm:$0x1]
    %198 = vst.msk [vmem:[#allocation2 + $0xc] sm:$0x1] %vm149, %v197
    %s199 = sld [smem:[#allocation4 + $0xe]]
    %s200 = scalar_lea.vmem %s3, %s199
    %v201 = vld [vmem:[%s200] sm:$0x1]
    %202 = vst.msk [vmem:[#allocation2 + $0xd] sm:$0x1] %vm149, %v201
    %s203 = sld [smem:[#allocation4 + $0x7]]
    %s204 = scalar_lea.vmem %s3, %s203
    %v205 = vld [vmem:[%s204] sm:$0x1]
    %206 = vst.msk [vmem:[#allocation2 + $0xe] sm:$0x1] %vm149, %v205
    %s207 = sld [smem:[#allocation4 + $0xf]]
    %s208 = scalar_lea.vmem %s3, %s207
    %v209 = vld [vmem:[%s208] sm:$0x1]
    %210 = vst.msk [vmem:[#allocation2 + $0xf] sm:$0x1] %vm149, %v209
    %v211 = vld [vmem:[#allocation2] sm:$0xff]
    %v212 = vld [vmem:[#allocation2 + $0x8] sm:$0xff]
    %v213 = vld [vmem:[%s5] sm:$0xff]
    %v214 = vld [vmem:[%s5 + $0x8] sm:$0xff]
    %v215 = vld [vmem:[%s5 + $0x10] sm:$0xff]
    %v216 = vld [vmem:[%s5 + $0x18] sm:$0xff]
    %v217 = vld [vmem:[%s5 + $0x20] sm:$0xff]
    %v218 = vld [vmem:[%s5 + $0x28] sm:$0xff]
    %v219 = vld [vmem:[%s5 + $0x30] sm:$0xff]
    %v220 = vld [vmem:[%s5 + $0x38] sm:$0xff]
    %v221 = vld [vmem:[%s9] sm:$0x3]
    %v223 = vlaneseq
    %v224 = vshrl.u32 %v223, 7
    %v225 = vsub.s32 0, %v224
    %v226 = vrot.slane %v221, %v225
    %v227 = vlaneseq
    %v228 = vshrl.u32 %v227, 7
    %v229 = vsub.s32 1, %v228
    %v230 = vrot.slane %v221, %v229
    %vm233 = vcmask 261120
    %v235 = vsel %vm233, %v211, 0
    %v238 = vsel %vm233, %v212, 0
    %240 = vmatprep.subr.mxu0 %v214
    %241 = vmatpush1.msra.mxu0 %v213
    %242 = vmatprep.subr.mxu0 %v216
    %243 = vmatpush1.msra.mxu0 %v215
    %244 = vmatprep.subr.mxu0 %v218
    %245 = vmatpush1.msra.mxu0 %v217
    %246 = vmatprep.subr.mxu0 %v220
    %247 = vmatpush1.msra.mxu0 %v219
    %248 = vmatprep.subr.mxu0 0.0
    %249 = vmatpush1.msra.mxu0 0.0
    %250 = vmatprep.subr.mxu0 0.0
    %251 = vmatpush1.msra.mxu0 0.0
    %252 = vmatprep.subr.mxu0 0.0
    %253 = vmatpush1.msra.mxu0 0.0
    %254 = vmatprep.subr.mxu0 0.0
    %255 = vmatpush1.msra.mxu0 0.0
    %256 = vmatprep.subr.mxu0 0.0
    %257 = vmatpush1.msra.mxu0 0.0
    %258 = vmatprep.subr.mxu0 0.0
    %259 = vmatpush1.msra.mxu0 0.0
    %260 = vmatprep.subr.mxu0 0.0
    %261 = vmatpush1.msra.mxu0 0.0
    %262 = vmatprep.subr.mxu0 0.0
    %263 = vmatpush1.msra.mxu0 0.0
    %264 = vmatprep.subr.mxu0 0.0
    %265 = vmatpush1.msra.mxu0 0.0
    %266 = vmatprep.subr.mxu0 0.0
    %267 = vmatpush1.msra.mxu0 0.0
    %268 = vmatprep.subr.mxu0 0.0
    %269 = vmatpush1.msra.mxu0 0.0
    %270 = vmatprep.subr.mxu0 0.0
    %271 = vmatpush1.msra.mxu0 0.0
    %272 = vmatprep.subr.mxu0 0.0
    %273 = vmatpush1.msra.mxu0 0.0
    %274 = vmatprep.subr.mxu0 0.0
    %275 = vmatpush1.msra.mxu0 0.0
    %276 = vmatprep.subr.mxu0 0.0
    %277 = vmatpush1.msra.mxu0 0.0
    %278 = vmatprep.subr.mxu0 0.0
    %279 = vmatpush1.msra.mxu0 0.0
    %280 = vmatprep.subr.mxu0 0.0
    %281 = vmatpush1.msra.mxu0 0.0
    %282 = vmatprep.subr.mxu0 0.0
    %283 = vmatpush1.msra.mxu0 0.0
    %284 = vmatprep.subr.mxu0 0.0
    %285 = vmatpush1.msra.mxu0 0.0
    %286 = vmatprep.subr.mxu0 0.0
    %287 = vmatpush1.msra.mxu0 0.0
    %288 = vmatprep.subr.mxu0 0.0
    %289 = vmatpush1.msra.mxu0 0.0
    %290 = vmatprep.subr.mxu0 0.0
    %291 = vmatpush1.msra.mxu0 0.0
    %292 = vmatprep.subr.mxu0 0.0
    %293 = vmatpush1.msra.mxu0 0.0
    %294 = vmatprep.subr.mxu0 0.0
    %295 = vmatpush1.msra.mxu0 0.0
    %296 = vmatprep.subr.mxu0 0.0
    %297 = vmatpush1.msra.mxu0 0.0
    %298 = vmatprep.subr.mxu0 0.0
    %299 = vmatpush1.msra.mxu0 0.0
    %300 = vmatprep.subr.mxu0 0.0
    %301 = vmatpush1.msra.mxu0 0.0
    %302 = vmatprep.subr.mxu0 0.0
    %303 = vmatpush1.msra.mxu0 0.0
    %304 = vmatprep.mubr.f32.mxu0 0.0
    %305 = vmatmul.mubr.f32.gmra.mrb[0].mxu0 %v235
    %v306 = vpop.f32.mrb[0].mxu0
    %v307 = vadd.f32 %v226, %v306
    %v308 = vpop.f32.mrb[0].mxu0
    %v309 = vadd.f32 %v230, %v308
    %310 = vmatprep.mubr.f32.mxu0 0.0
    %311 = vmatmul.mubr.f32.gmra.mrb[0].mxu0 %v238
    %v312 = vpop.f32.mrb[0].mxu0
    %v313 = vadd.f32 %v226, %v312
    %v314 = vpop.f32.mrb[0].mxu0
    %v315 = vadd.f32 %v230, %v314
    %316 = vdwg.mxu0
    %v317 = vld [vmem:[%s7] sm:$0xff]
    %v318 = vld [vmem:[%s7 + $0x8] sm:$0xff]
    %v319 = vld [vmem:[%s7 + $0x10] sm:$0xff]
    %v320 = vld [vmem:[%s7 + $0x18] sm:$0xff]
    %v321 = vld [vmem:[%s7 + $0x20] sm:$0xff]
    %v322 = vld [vmem:[%s7 + $0x28] sm:$0xff]
    %v323 = vld [vmem:[%s7 + $0x30] sm:$0xff]
    %v324 = vld [vmem:[%s7 + $0x38] sm:$0xff]
    %v325 = vld [vmem:[%s7 + $0x40] sm:$0xff]
    %v326 = vld [vmem:[%s7 + $0x48] sm:$0xff]
    %v327 = vld [vmem:[%s7 + $0x50] sm:$0xff]
    %v328 = vld [vmem:[%s7 + $0x58] sm:$0xff]
    %v329 = vld [vmem:[%s7 + $0x60] sm:$0xff]
    %v330 = vld [vmem:[%s7 + $0x68] sm:$0xff]
    %v331 = vld [vmem:[%s7 + $0x70] sm:$0xff]
    %v332 = vld [vmem:[%s7 + $0x78] sm:$0xff]
    %v333 = vld [vmem:[%s11] sm:$0x3]
    %v335 = vlaneseq
    %v336 = vshrl.u32 %v335, 7
    %v337 = vsub.s32 0, %v336
    %v338 = vrot.slane %v333, %v337
    %v339 = vlaneseq
    %v340 = vshrl.u32 %v339, 7
    %v341 = vsub.s32 1, %v340
    %v342 = vrot.slane %v333, %v341
    %vm345 = vcmask 523264
    %v347 = vsel %vm345, 0.0, 0
    %349 = vmatprep.subr.mxu0 %v318
    %350 = vmatpush1.msra.mxu0 %v317
    %351 = vmatprep.subr.mxu0 %v320
    %352 = vmatpush1.msra.mxu0 %v319
    %353 = vmatprep.subr.mxu0 %v322
    %354 = vmatpush1.msra.mxu0 %v321
    %355 = vmatprep.subr.mxu0 %v324
    %356 = vmatpush1.msra.mxu0 %v323
    %357 = vmatprep.subr.mxu0 %v326
    %358 = vmatpush1.msra.mxu0 %v325
    %359 = vmatprep.subr.mxu0 %v328
    %360 = vmatpush1.msra.mxu0 %v327
    %361 = vmatprep.subr.mxu0 %v330
    %362 = vmatpush1.msra.mxu0 %v329
    %363 = vmatprep.subr.mxu0 %v332
    %364 = vmatpush1.msra.mxu0 %v331
    %365 = vmatprep.subr.mxu0 0.0
    %366 = vmatpush1.msra.mxu0 0.0
    %367 = vmatprep.subr.mxu0 0.0
    %368 = vmatpush1.msra.mxu0 0.0
    %369 = vmatprep.subr.mxu0 0.0
    %370 = vmatpush1.msra.mxu0 0.0
    %371 = vmatprep.subr.mxu0 0.0
    %372 = vmatpush1.msra.mxu0 0.0
    %373 = vmatprep.subr.mxu0 0.0
    %374 = vmatpush1.msra.mxu0 0.0
    %375 = vmatprep.subr.mxu0 0.0
    %376 = vmatpush1.msra.mxu0 0.0
    %377 = vmatprep.subr.mxu0 0.0
    %378 = vmatpush1.msra.mxu0 0.0
    %379 = vmatprep.subr.mxu0 0.0
    %380 = vmatpush1.msra.mxu0 0.0
    %381 = vmatprep.subr.mxu0 0.0
    %382 = vmatpush1.msra.mxu0 0.0
    %383 = vmatprep.subr.mxu0 0.0
    %384 = vmatpush1.msra.mxu0 0.0
    %385 = vmatprep.subr.mxu0 0.0
    %386 = vmatpush1.msra.mxu0 0.0
    %387 = vmatprep.subr.mxu0 0.0
    %388 = vmatpush1.msra.mxu0 0.0
    %389 = vmatprep.subr.mxu0 0.0
    %390 = vmatpush1.msra.mxu0 0.0
    %391 = vmatprep.subr.mxu0 0.0
    %392 = vmatpush1.msra.mxu0 0.0
    %393 = vmatprep.subr.mxu0 0.0
    %394 = vmatpush1.msra.mxu0 0.0
    %395 = vmatprep.subr.mxu0 0.0
    %396 = vmatpush1.msra.mxu0 0.0
    %397 = vmatprep.subr.mxu0 0.0
    %398 = vmatpush1.msra.mxu0 0.0
    %399 = vmatprep.subr.mxu0 0.0
    %400 = vmatpush1.msra.mxu0 0.0
    %401 = vmatprep.subr.mxu0 0.0
    %402 = vmatpush1.msra.mxu0 0.0
    %403 = vmatprep.subr.mxu0 0.0
    %404 = vmatpush1.msra.mxu0 0.0
    %405 = vmatprep.subr.mxu0 0.0
    %406 = vmatpush1.msra.mxu0 0.0
    %407 = vmatprep.subr.mxu0 0.0
    %408 = vmatpush1.msra.mxu0 0.0
    %409 = vmatprep.subr.mxu0 0.0
    %410 = vmatpush1.msra.mxu0 0.0
    %411 = vmatprep.subr.mxu0 0.0
    %412 = vmatpush1.msra.mxu0 0.0
    %413 = vmatprep.mubr.f32.mxu0 0.0
    %414 = vmatmul.mubr.f32.gmra.mrb[0].mxu0 %v347
    %v415 = vpop.f32.mrb[0].mxu0
    %v416 = vadd.f32 %v338, %v415
    %v417 = vpop.f32.mrb[0].mxu0
    %v418 = vadd.f32 %v342, %v417
    %419 = vdwg.mxu0
    %v420 = vadd.f32 %v307, %v416
    %v421 = vxor.u32 %v420, 2147483648
    %v422 = vmul.f32 %v421, 1.442695
    %v423 = vpow.pop %v422
    %v424 = vadd.f32 %v423, 1.0
    %v425 = vrcp.pop %v424
    %v426 = vmul.f32 1.0, %v425
    %v427 = vmul.f32 %v426, %v418
    %v428 = vadd.f32 %v309, %v427
    %v429 = vtanh.pop %v428
    %v430 = vsub.f32 1.0, %v426
    %432 = vrot.lane.b32.xlu0 %v429, 64
    %v433 = vpop.permute.xlu0 %432
    %v435 = vmul.f32 %v430, %v433
    %v436 = vmul.f32 %v426, 0.0
    %v437 = vadd.f32 %v435, %v436
    %439 = vrot.lane.b32.xlu0 %v437, 64
    %v440 = vpop.permute.xlu0 %439
    %v441 = vsel %vm345, %v440, 0
    %443 = vmatprep.subr.mxu0 %v318
    %444 = vmatpush1.msra.mxu0 %v317
    %445 = vmatprep.subr.mxu0 %v320
    %446 = vmatpush1.msra.mxu0 %v319
    %447 = vmatprep.subr.mxu0 %v322
    %448 = vmatpush1.msra.mxu0 %v321
    %449 = vmatprep.subr.mxu0 %v324
    %450 = vmatpush1.msra.mxu0 %v323
    %451 = vmatprep.subr.mxu0 %v326
    %452 = vmatpush1.msra.mxu0 %v325
    %453 = vmatprep.subr.mxu0 %v328
    %454 = vmatpush1.msra.mxu0 %v327
    %455 = vmatprep.subr.mxu0 %v330
    %456 = vmatpush1.msra.mxu0 %v329
    %457 = vmatprep.subr.mxu0 %v332
    %458 = vmatpush1.msra.mxu0 %v331
    %459 = vmatprep.subr.mxu0 0.0
    %460 = vmatpush1.msra.mxu0 0.0
    %461 = vmatprep.subr.mxu0 0.0
    %462 = vmatpush1.msra.mxu0 0.0
    %463 = vmatprep.subr.mxu0 0.0
    %464 = vmatpush1.msra.mxu0 0.0
    %465 = vmatprep.subr.mxu0 0.0
    %466 = vmatpush1.msra.mxu0 0.0
    %467 = vmatprep.subr.mxu0 0.0
    %468 = vmatpush1.msra.mxu0 0.0
    %469 = vmatprep.subr.mxu0 0.0
    %470 = vmatpush1.msra.mxu0 0.0
    %471 = vmatprep.subr.mxu0 0.0
    %472 = vmatpush1.msra.mxu0 0.0
    %473 = vmatprep.subr.mxu0 0.0
    %474 = vmatpush1.msra.mxu0 0.0
    %475 = vmatprep.subr.mxu0 0.0
    %476 = vmatpush1.msra.mxu0 0.0
    %477 = vmatprep.subr.mxu0 0.0
    %478 = vmatpush1.msra.mxu0 0.0
    %479 = vmatprep.subr.mxu0 0.0
    %480 = vmatpush1.msra.mxu0 0.0
    %481 = vmatprep.subr.mxu0 0.0
    %482 = vmatpush1.msra.mxu0 0.0
    %483 = vmatprep.subr.mxu0 0.0
    %484 = vmatpush1.msra.mxu0 0.0
    %485 = vmatprep.subr.mxu0 0.0
    %486 = vmatpush1.msra.mxu0 0.0
    %487 = vmatprep.subr.mxu0 0.0
    %488 = vmatpush1.msra.mxu0 0.0
    %489 = vmatprep.subr.mxu0 0.0
    %490 = vmatpush1.msra.mxu0 0.0
    %491 = vmatprep.subr.mxu0 0.0
    %492 = vmatpush1.msra.mxu0 0.0
    %493 = vmatprep.subr.mxu0 0.0
    %494 = vmatpush1.msra.mxu0 0.0
    %495 = vmatprep.subr.mxu0 0.0
    %496 = vmatpush1.msra.mxu0 0.0
    %497 = vmatprep.subr.mxu0 0.0
    %498 = vmatpush1.msra.mxu0 0.0
    %499 = vmatprep.subr.mxu0 0.0
    %500 = vmatpush1.msra.mxu0 0.0
    %501 = vmatprep.subr.mxu0 0.0
    %502 = vmatpush1.msra.mxu0 0.0
    %503 = vmatprep.subr.mxu0 0.0
    %504 = vmatpush1.msra.mxu0 0.0
    %505 = vmatprep.subr.mxu0 0.0
    %506 = vmatpush1.msra.mxu0 0.0
    %507 = vmatprep.mubr.f32.mxu0 0.0
    %508 = vmatmul.mubr.f32.gmra.mrb[0].mxu0 %v441
    %v509 = vpop.f32.mrb[0].mxu0
    %v510 = vadd.f32 %v338, %v509
    %v511 = vpop.f32.mrb[0].mxu0
    %v512 = vadd.f32 %v342, %v511
    %513 = vdwg.mxu0
    %v515 = vrot.slane %v510, 6
    %v517 = vadd.f32 %v307, %v515
    %v518 = vxor.u32 %v517, 2147483648
    %v519 = vmul.f32 %v518, 1.442695
    %v520 = vpow.pop %v519
    %v521 = vadd.f32 %v520, 1.0
    %v522 = vrcp.pop %v521
    %v523 = vmul.f32 1.0, %v522
    %v525 = vrot.slane %v512, 6
    %v527 = vmul.f32 %v523, %v525
    %v528 = vadd.f32 %v309, %v527
    %v529 = vtanh.pop %v528
    %v530 = vsub.f32 1.0, %v523
    %532 = vrot.lane.b32.xlu0 %v529, 64
    %v533 = vpop.permute.xlu0 %532
    %v535 = vmul.f32 %v530, %v533
    %v536 = vrot.slane %v437, 6
    %v538 = vmul.f32 %v523, %v536
    %v539 = vadd.f32 %v535, %v538
    %v541 = vrot.slane %v539, 2
    %542 = vrot.lane.b32.xlu0 %v541, 64
    %v543 = vpop.permute.xlu0 %542
    %v544 = vsel %vm345, %v543, 0
    %546 = vmatprep.subr.mxu0 %v318
    %547 = vmatpush1.msra.mxu0 %v317
    %548 = vmatprep.subr.mxu0 %v320
    %549 = vmatpush1.msra.mxu0 %v319
    %550 = vmatprep.subr.mxu0 %v322
    %551 = vmatpush1.msra.mxu0 %v321
    %552 = vmatprep.subr.mxu0 %v324
    %553 = vmatpush1.msra.mxu0 %v323
    %554 = vmatprep.subr.mxu0 %v326
    %555 = vmatpush1.msra.mxu0 %v325
    %556 = vmatprep.subr.mxu0 %v328
    %557 = vmatpush1.msra.mxu0 %v327
    %558 = vmatprep.subr.mxu0 %v330
    %559 = vmatpush1.msra.mxu0 %v329
    %560 = vmatprep.subr.mxu0 %v332
    %561 = vmatpush1.msra.mxu0 %v331
    %562 = vmatprep.subr.mxu0 0.0
    %563 = vmatpush1.msra.mxu0 0.0
    %564 = vmatprep.subr.mxu0 0.0
    %565 = vmatpush1.msra.mxu0 0.0
    %566 = vmatprep.subr.mxu0 0.0
    %567 = vmatpush1.msra.mxu0 0.0
    %568 = vmatprep.subr.mxu0 0.0
    %569 = vmatpush1.msra.mxu0 0.0
    %570 = vmatprep.subr.mxu0 0.0
    %571 = vmatpush1.msra.mxu0 0.0
    %572 = vmatprep.subr.mxu0 0.0
    %573 = vmatpush1.msra.mxu0 0.0
    %574 = vmatprep.subr.mxu0 0.0
    %575 = vmatpush1.msra.mxu0 0.0
    %576 = vmatprep.subr.mxu0 0.0
    %577 = vmatpush1.msra.mxu0 0.0
    %578 = vmatprep.subr.mxu0 0.0
    %579 = vmatpush1.msra.mxu0 0.0
    %580 = vmatprep.subr.mxu0 0.0
    %581 = vmatpush1.msra.mxu0 0.0
    %582 = vmatprep.subr.mxu0 0.0
    %583 = vmatpush1.msra.mxu0 0.0
    %584 = vmatprep.subr.mxu0 0.0
    %585 = vmatpush1.msra.mxu0 0.0
    %586 = vmatprep.subr.mxu0 0.0
    %587 = vmatpush1.msra.mxu0 0.0
    %588 = vmatprep.subr.mxu0 0.0
    %589 = vmatpush1.msra.mxu0 0.0
    %590 = vmatprep.subr.mxu0 0.0
    %591 = vmatpush1.msra.mxu0 0.0
    %592 = vmatprep.subr.mxu0 0.0
    %593 = vmatpush1.msra.mxu0 0.0
    %594 = vmatprep.subr.mxu0 0.0
    %595 = vmatpush1.msra.mxu0 0.0
    %596 = vmatprep.subr.mxu0 0.0
    %597 = vmatpush1.msra.mxu0 0.0
    %598 = vmatprep.subr.mxu0 0.0
    %599 = vmatpush1.msra.mxu0 0.0
    %600 = vmatprep.subr.mxu0 0.0
    %601 = vmatpush1.msra.mxu0 0.0
    %602 = vmatprep.subr.mxu0 0.0
    %603 = vmatpush1.msra.mxu0 0.0
    %604 = vmatprep.subr.mxu0 0.0
    %605 = vmatpush1.msra.mxu0 0.0
    %606 = vmatprep.subr.mxu0 0.0
    %607 = vmatpush1.msra.mxu0 0.0
    %608 = vmatprep.subr.mxu0 0.0
    %609 = vmatpush1.msra.mxu0 0.0
    %610 = vmatprep.mubr.f32.mxu0 0.0
    %611 = vmatmul.mubr.f32.gmra.mrb[0].mxu0 %v544
    %v612 = vpop.f32.mrb[0].mxu0
    %v613 = vadd.f32 %v338, %v612
    %v614 = vpop.f32.mrb[0].mxu0
    %v615 = vadd.f32 %v342, %v614
    %616 = vdwg.mxu0
    %v618 = vrot.slane %v613, 4
    %v620 = vadd.f32 %v307, %v618
    %v621 = vxor.u32 %v620, 2147483648
    %v622 = vmul.f32 %v621, 1.442695
    %v623 = vpow.pop %v622
    %v624 = vadd.f32 %v623, 1.0
    %v625 = vrcp.pop %v624
    %v626 = vmul.f32 1.0, %v625
    %v628 = vrot.slane %v615, 4
    %v630 = vmul.f32 %v626, %v628
    %v631 = vadd.f32 %v309, %v630
    %v632 = vtanh.pop %v631
    %v633 = vsub.f32 1.0, %v626
    %635 = vrot.lane.b32.xlu0 %v632, 64
    %v636 = vpop.permute.xlu0 %635
    %v638 = vmul.f32 %v633, %v636
    %v639 = vrot.slane %v539, 6
    %v641 = vmul.f32 %v626, %v639
    %v642 = vadd.f32 %v638, %v641
    %v644 = vrot.slane %v642, 4
    %645 = vrot.lane.b32.xlu0 %v644, 64
    %v646 = vpop.permute.xlu0 %645
    %v647 = vsel %vm345, %v646, 0
    %649 = vmatprep.subr.mxu0 %v318
    %650 = vmatpush1.msra.mxu0 %v317
    %651 = vmatprep.subr.mxu0 %v320
    %652 = vmatpush1.msra.mxu0 %v319
    %653 = vmatprep.subr.mxu0 %v322
    %654 = vmatpush1.msra.mxu0 %v321
    %655 = vmatprep.subr.mxu0 %v324
    %656 = vmatpush1.msra.mxu0 %v323
    %657 = vmatprep.subr.mxu0 %v326
    %658 = vmatpush1.msra.mxu0 %v325
    %659 = vmatprep.subr.mxu0 %v328
    %660 = vmatpush1.msra.mxu0 %v327
    %661 = vmatprep.subr.mxu0 %v330
    %662 = vmatpush1.msra.mxu0 %v329
    %663 = vmatprep.subr.mxu0 %v332
    %664 = vmatpush1.msra.mxu0 %v331
    %665 = vmatprep.subr.mxu0 0.0
    %666 = vmatpush1.msra.mxu0 0.0
    %667 = vmatprep.subr.mxu0 0.0
    %668 = vmatpush1.msra.mxu0 0.0
    %669 = vmatprep.subr.mxu0 0.0
    %670 = vmatpush1.msra.mxu0 0.0
    %671 = vmatprep.subr.mxu0 0.0
    %672 = vmatpush1.msra.mxu0 0.0
    %673 = vmatprep.subr.mxu0 0.0
    %674 = vmatpush1.msra.mxu0 0.0
    %675 = vmatprep.subr.mxu0 0.0
    %676 = vmatpush1.msra.mxu0 0.0
    %677 = vmatprep.subr.mxu0 0.0
    %678 = vmatpush1.msra.mxu0 0.0
    %679 = vmatprep.subr.mxu0 0.0
    %680 = vmatpush1.msra.mxu0 0.0
    %681 = vmatprep.subr.mxu0 0.0
    %682 = vmatpush1.msra.mxu0 0.0
    %683 = vmatprep.subr.mxu0 0.0
    %684 = vmatpush1.msra.mxu0 0.0
    %685 = vmatprep.subr.mxu0 0.0
    %686 = vmatpush1.msra.mxu0 0.0
    %687 = vmatprep.subr.mxu0 0.0
    %688 = vmatpush1.msra.mxu0 0.0
    %689 = vmatprep.subr.mxu0 0.0
    %690 = vmatpush1.msra.mxu0 0.0
    %691 = vmatprep.subr.mxu0 0.0
    %692 = vmatpush1.msra.mxu0 0.0
    %693 = vmatprep.subr.mxu0 0.0
    %694 = vmatpush1.msra.mxu0 0.0
    %695 = vmatprep.subr.mxu0 0.0
    %696 = vmatpush1.msra.mxu0 0.0
    %697 = vmatprep.subr.mxu0 0.0
    %698 = vmatpush1.msra.mxu0 0.0
    %699 = vmatprep.subr.mxu0 0.0
    %700 = vmatpush1.msra.mxu0 0.0
    %701 = vmatprep.subr.mxu0 0.0
    %702 = vmatpush1.msra.mxu0 0.0
    %703 = vmatprep.subr.mxu0 0.0
    %704 = vmatpush1.msra.mxu0 0.0
    %705 = vmatprep.subr.mxu0 0.0
    %706 = vmatpush1.msra.mxu0 0.0
    %707 = vmatprep.subr.mxu0 0.0
    %708 = vmatpush1.msra.mxu0 0.0
    %709 = vmatprep.subr.mxu0 0.0
    %710 = vmatpush1.msra.mxu0 0.0
    %711 = vmatprep.subr.mxu0 0.0
    %712 = vmatpush1.msra.mxu0 0.0
    %713 = vmatprep.mubr.f32.mxu0 0.0
    %714 = vmatmul.mubr.f32.gmra.mrb[0].mxu0 %v647
    %v715 = vpop.f32.mrb[0].mxu0
    %v716 = vadd.f32 %v338, %v715
    %v717 = vpop.f32.mrb[0].mxu0
    %v718 = vadd.f32 %v342, %v717
    %719 = vdwg.mxu0
    %v721 = vrot.slane %v716, 2
    %v723 = vadd.f32 %v307, %v721
    %v724 = vxor.u32 %v723, 2147483648
    %v725 = vmul.f32 %v724, 1.442695
    %v726 = vpow.pop %v725
    %v727 = vadd.f32 %v726, 1.0
    %v728 = vrcp.pop %v727
    %v729 = vmul.f32 1.0, %v728
    %v731 = vrot.slane %v718, 2
    %v733 = vmul.f32 %v729, %v731
    %v734 = vadd.f32 %v309, %v733
    %v735 = vtanh.pop %v734
    %v736 = vsub.f32 1.0, %v729
    %738 = vrot.lane.b32.xlu0 %v735, 64
    %v739 = vpop.permute.xlu0 %738
    %v741 = vmul.f32 %v736, %v739
    %v742 = vrot.slane %v642, 6
    %v744 = vmul.f32 %v729, %v742
    %v745 = vadd.f32 %v741, %v744
    %v747 = vrot.slane %v745, 6
    %748 = vrot.lane.b32.xlu0 %v747, 64
    %v749 = vpop.permute.xlu0 %748
    %v750 = vsel %vm345, %v749, 0
    %752 = vmatprep.subr.mxu0 %v318
    %753 = vmatpush1.msra.mxu0 %v317
    %754 = vmatprep.subr.mxu0 %v320
    %755 = vmatpush1.msra.mxu0 %v319
    %756 = vmatprep.subr.mxu0 %v322
    %757 = vmatpush1.msra.mxu0 %v321
    %758 = vmatprep.subr.mxu0 %v324
    %759 = vmatpush1.msra.mxu0 %v323
    %760 = vmatprep.subr.mxu0 %v326
    %761 = vmatpush1.msra.mxu0 %v325
    %762 = vmatprep.subr.mxu0 %v328
    %763 = vmatpush1.msra.mxu0 %v327
    %764 = vmatprep.subr.mxu0 %v330
    %765 = vmatpush1.msra.mxu0 %v329
    %766 = vmatprep.subr.mxu0 %v332
    %767 = vmatpush1.msra.mxu0 %v331
    %768 = vmatprep.subr.mxu0 0.0
    %769 = vmatpush1.msra.mxu0 0.0
    %770 = vmatprep.subr.mxu0 0.0
    %771 = vmatpush1.msra.mxu0 0.0
    %772 = vmatprep.subr.mxu0 0.0
    %773 = vmatpush1.msra.mxu0 0.0
    %774 = vmatprep.subr.mxu0 0.0
    %775 = vmatpush1.msra.mxu0 0.0
    %776 = vmatprep.subr.mxu0 0.0
    %777 = vmatpush1.msra.mxu0 0.0
    %778 = vmatprep.subr.mxu0 0.0
    %779 = vmatpush1.msra.mxu0 0.0
    %780 = vmatprep.subr.mxu0 0.0
    %781 = vmatpush1.msra.mxu0 0.0
    %782 = vmatprep.subr.mxu0 0.0
    %783 = vmatpush1.msra.mxu0 0.0
    %784 = vmatprep.subr.mxu0 0.0
    %785 = vmatpush1.msra.mxu0 0.0
    %786 = vmatprep.subr.mxu0 0.0
    %787 = vmatpush1.msra.mxu0 0.0
    %788 = vmatprep.subr.mxu0 0.0
    %789 = vmatpush1.msra.mxu0 0.0
    %790 = vmatprep.subr.mxu0 0.0
    %791 = vmatpush1.msra.mxu0 0.0
    %792 = vmatprep.subr.mxu0 0.0
    %793 = vmatpush1.msra.mxu0 0.0
    %794 = vmatprep.subr.mxu0 0.0
    %795 = vmatpush1.msra.mxu0 0.0
    %796 = vmatprep.subr.mxu0 0.0
    %797 = vmatpush1.msra.mxu0 0.0
    %798 = vmatprep.subr.mxu0 0.0
    %799 = vmatpush1.msra.mxu0 0.0
    %800 = vmatprep.subr.mxu0 0.0
    %801 = vmatpush1.msra.mxu0 0.0
    %802 = vmatprep.subr.mxu0 0.0
    %803 = vmatpush1.msra.mxu0 0.0
    %804 = vmatprep.subr.mxu0 0.0
    %805 = vmatpush1.msra.mxu0 0.0
    %806 = vmatprep.subr.mxu0 0.0
    %807 = vmatpush1.msra.mxu0 0.0
    %808 = vmatprep.subr.mxu0 0.0
    %809 = vmatpush1.msra.mxu0 0.0
    %810 = vmatprep.subr.mxu0 0.0
    %811 = vmatpush1.msra.mxu0 0.0
    %812 = vmatprep.subr.mxu0 0.0
    %813 = vmatpush1.msra.mxu0 0.0
    %814 = vmatprep.subr.mxu0 0.0
    %815 = vmatpush1.msra.mxu0 0.0
    %816 = vmatprep.mubr.f32.mxu0 0.0
    %817 = vmatmul.mubr.f32.gmra.mrb[0].mxu0 %v750
    %v818 = vpop.f32.mrb[0].mxu0
    %v819 = vadd.f32 %v338, %v818
    %v820 = vpop.f32.mrb[0].mxu0
    %v821 = vadd.f32 %v342, %v820
    %822 = vdwg.mxu0
    %v823 = vadd.f32 %v313, %v819
    %v824 = vxor.u32 %v823, 2147483648
    %v825 = vmul.f32 %v824, 1.442695
    %v826 = vpow.pop %v825
    %v827 = vadd.f32 %v826, 1.0
    %v828 = vrcp.pop %v827
    %v829 = vmul.f32 1.0, %v828
    %v830 = vmul.f32 %v829, %v821
    %v831 = vadd.f32 %v315, %v830
    %v832 = vtanh.pop %v831
    %v833 = vsub.f32 1.0, %v829
    %835 = vrot.lane.b32.xlu0 %v832, 64
    %v836 = vpop.permute.xlu0 %835
    %v838 = vmul.f32 %v833, %v836
    %v840 = vmul.f32 %v829, %v747
    %v841 = vadd.f32 %v838, %v840
    %843 = vrot.lane.b32.xlu0 %v841, 64
    %v844 = vpop.permute.xlu0 %843
    %v845 = vsel %vm345, %v844, 0
    %847 = vmatprep.subr.mxu0 %v318
    %848 = vmatpush1.msra.mxu0 %v317
    %849 = vmatprep.subr.mxu0 %v320
    %850 = vmatpush1.msra.mxu0 %v319
    %851 = vmatprep.subr.mxu0 %v322
    %852 = vmatpush1.msra.mxu0 %v321
    %853 = vmatprep.subr.mxu0 %v324
    %854 = vmatpush1.msra.mxu0 %v323
    %855 = vmatprep.subr.mxu0 %v326
    %856 = vmatpush1.msra.mxu0 %v325
    %857 = vmatprep.subr.mxu0 %v328
    %858 = vmatpush1.msra.mxu0 %v327
    %859 = vmatprep.subr.mxu0 %v330
    %860 = vmatpush1.msra.mxu0 %v329
    %861 = vmatprep.subr.mxu0 %v332
    %862 = vmatpush1.msra.mxu0 %v331
    %863 = vmatprep.subr.mxu0 0.0
    %864 = vmatpush1.msra.mxu0 0.0
    %865 = vmatprep.subr.mxu0 0.0
    %866 = vmatpush1.msra.mxu0 0.0
    %867 = vmatprep.subr.mxu0 0.0
    %868 = vmatpush1.msra.mxu0 0.0
    %869 = vmatprep.subr.mxu0 0.0
    %870 = vmatpush1.msra.mxu0 0.0
    %871 = vmatprep.subr.mxu0 0.0
    %872 = vmatpush1.msra.mxu0 0.0
    %873 = vmatprep.subr.mxu0 0.0
    %874 = vmatpush1.msra.mxu0 0.0
    %875 = vmatprep.subr.mxu0 0.0
    %876 = vmatpush1.msra.mxu0 0.0
    %877 = vmatprep.subr.mxu0 0.0
    %878 = vmatpush1.msra.mxu0 0.0
    %879 = vmatprep.subr.mxu0 0.0
    %880 = vmatpush1.msra.mxu0 0.0
    %881 = vmatprep.subr.mxu0 0.0
    %882 = vmatpush1.msra.mxu0 0.0
    %883 = vmatprep.subr.mxu0 0.0
    %884 = vmatpush1.msra.mxu0 0.0
    %885 = vmatprep.subr.mxu0 0.0
    %886 = vmatpush1.msra.mxu0 0.0
    %887 = vmatprep.subr.mxu0 0.0
    %888 = vmatpush1.msra.mxu0 0.0
    %889 = vmatprep.subr.mxu0 0.0
    %890 = vmatpush1.msra.mxu0 0.0
    %891 = vmatprep.subr.mxu0 0.0
    %892 = vmatpush1.msra.mxu0 0.0
    %893 = vmatprep.subr.mxu0 0.0
    %894 = vmatpush1.msra.mxu0 0.0
    %895 = vmatprep.subr.mxu0 0.0
    %896 = vmatpush1.msra.mxu0 0.0
    %897 = vmatprep.subr.mxu0 0.0
    %898 = vmatpush1.msra.mxu0 0.0
    %899 = vmatprep.subr.mxu0 0.0
    %900 = vmatpush1.msra.mxu0 0.0
    %901 = vmatprep.subr.mxu0 0.0
    %902 = vmatpush1.msra.mxu0 0.0
    %903 = vmatprep.subr.mxu0 0.0
    %904 = vmatpush1.msra.mxu0 0.0
    %905 = vmatprep.subr.mxu0 0.0
    %906 = vmatpush1.msra.mxu0 0.0
    %907 = vmatprep.subr.mxu0 0.0
    %908 = vmatpush1.msra.mxu0 0.0
    %909 = vmatprep.subr.mxu0 0.0
    %910 = vmatpush1.msra.mxu0 0.0
    %911 = vmatprep.mubr.f32.mxu0 0.0
    %912 = vmatmul.mubr.f32.gmra.mrb[0].mxu0 %v845
    %v913 = vpop.f32.mrb[0].mxu0
    %v914 = vadd.f32 %v338, %v913
    %v915 = vpop.f32.mrb[0].mxu0
    %v916 = vadd.f32 %v342, %v915
    %917 = vdwg.mxu0
    %v919 = vrot.slane %v914, 6
    %v921 = vadd.f32 %v313, %v919
    %v922 = vxor.u32 %v921, 2147483648
    %v923 = vmul.f32 %v922, 1.442695
    %v924 = vpow.pop %v923
    %v925 = vadd.f32 %v924, 1.0
    %v926 = vrcp.pop %v925
    %v927 = vmul.f32 1.0, %v926
    %v929 = vrot.slane %v916, 6
    %v931 = vmul.f32 %v927, %v929
    %v932 = vadd.f32 %v315, %v931
    %v933 = vtanh.pop %v932
    %v934 = vsub.f32 1.0, %v927
    %936 = vrot.lane.b32.xlu0 %v933, 64
    %v937 = vpop.permute.xlu0 %936
    %v939 = vmul.f32 %v934, %v937
    %v940 = vrot.slane %v841, 6
    %v942 = vmul.f32 %v927, %v940
    %v943 = vadd.f32 %v939, %v942
    %v945 = vrot.slane %v943, 2
    %946 = vrot.lane.b32.xlu0 %v945, 64
    %v947 = vpop.permute.xlu0 %946
    %v948 = vsel %vm345, %v947, 0
    %950 = vmatprep.subr.mxu0 %v318
    %951 = vmatpush1.msra.mxu0 %v317
    %952 = vmatprep.subr.mxu0 %v320
    %953 = vmatpush1.msra.mxu0 %v319
    %954 = vmatprep.subr.mxu0 %v322
    %955 = vmatpush1.msra.mxu0 %v321
    %956 = vmatprep.subr.mxu0 %v324
    %957 = vmatpush1.msra.mxu0 %v323
    %958 = vmatprep.subr.mxu0 %v326
    %959 = vmatpush1.msra.mxu0 %v325
    %960 = vmatprep.subr.mxu0 %v328
    %961 = vmatpush1.msra.mxu0 %v327
    %962 = vmatprep.subr.mxu0 %v330
    %963 = vmatpush1.msra.mxu0 %v329
    %964 = vmatprep.subr.mxu0 %v332
    %965 = vmatpush1.msra.mxu0 %v331
    %966 = vmatprep.subr.mxu0 0.0
    %967 = vmatpush1.msra.mxu0 0.0
    %968 = vmatprep.subr.mxu0 0.0
    %969 = vmatpush1.msra.mxu0 0.0
    %970 = vmatprep.subr.mxu0 0.0
    %971 = vmatpush1.msra.mxu0 0.0
    %972 = vmatprep.subr.mxu0 0.0
    %973 = vmatpush1.msra.mxu0 0.0
    %974 = vmatprep.subr.mxu0 0.0
    %975 = vmatpush1.msra.mxu0 0.0
    %976 = vmatprep.subr.mxu0 0.0
    %977 = vmatpush1.msra.mxu0 0.0
    %978 = vmatprep.subr.mxu0 0.0
    %979 = vmatpush1.msra.mxu0 0.0
    %980 = vmatprep.subr.mxu0 0.0
    %981 = vmatpush1.msra.mxu0 0.0
    %982 = vmatprep.subr.mxu0 0.0
    %983 = vmatpush1.msra.mxu0 0.0
    %984 = vmatprep.subr.mxu0 0.0
    %985 = vmatpush1.msra.mxu0 0.0
    %986 = vmatprep.subr.mxu0 0.0
    %987 = vmatpush1.msra.mxu0 0.0
    %988 = vmatprep.subr.mxu0 0.0
    %989 = vmatpush1.msra.mxu0 0.0
    %990 = vmatprep.subr.mxu0 0.0
    %991 = vmatpush1.msra.mxu0 0.0
    %992 = vmatprep.subr.mxu0 0.0
    %993 = vmatpush1.msra.mxu0 0.0
    %994 = vmatprep.subr.mxu0 0.0
    %995 = vmatpush1.msra.mxu0 0.0
    %996 = vmatprep.subr.mxu0 0.0
    %997 = vmatpush1.msra.mxu0 0.0
    %998 = vmatprep.subr.mxu0 0.0
    %999 = vmatpush1.msra.mxu0 0.0
    %1000 = vmatprep.subr.mxu0 0.0
    %1001 = vmatpush1.msra.mxu0 0.0
    %1002 = vmatprep.subr.mxu0 0.0
    %1003 = vmatpush1.msra.mxu0 0.0
    %1004 = vmatprep.subr.mxu0 0.0
    %1005 = vmatpush1.msra.mxu0 0.0
    %1006 = vmatprep.subr.mxu0 0.0
    %1007 = vmatpush1.msra.mxu0 0.0
    %1008 = vmatprep.subr.mxu0 0.0
    %1009 = vmatpush1.msra.mxu0 0.0
    %1010 = vmatprep.subr.mxu0 0.0
    %1011 = vmatpush1.msra.mxu0 0.0
    %1012 = vmatprep.subr.mxu0 0.0
    %1013 = vmatpush1.msra.mxu0 0.0
    %1014 = vmatprep.mubr.f32.mxu0 0.0
    %1015 = vmatmul.mubr.f32.gmra.mrb[0].mxu0 %v948
    %v1016 = vpop.f32.mrb[0].mxu0
    %v1017 = vadd.f32 %v338, %v1016
    %v1018 = vpop.f32.mrb[0].mxu0
    %v1019 = vadd.f32 %v342, %v1018
    %1020 = vdwg.mxu0
    %v1022 = vrot.slane %v1017, 4
    %v1024 = vadd.f32 %v313, %v1022
    %v1025 = vxor.u32 %v1024, 2147483648
    %v1026 = vmul.f32 %v1025, 1.442695
    %v1027 = vpow.pop %v1026
    %v1028 = vadd.f32 %v1027, 1.0
    %v1029 = vrcp.pop %v1028
    %v1030 = vmul.f32 1.0, %v1029
    %v1032 = vrot.slane %v1019, 4
    %v1034 = vmul.f32 %v1030, %v1032
    %v1035 = vadd.f32 %v315, %v1034
    %v1036 = vtanh.pop %v1035
    %v1037 = vsub.f32 1.0, %v1030
    %1039 = vrot.lane.b32.xlu0 %v1036, 64
    %v1040 = vpop.permute.xlu0 %1039
    %v1042 = vmul.f32 %v1037, %v1040
    %v1043 = vrot.slane %v943, 6
    %v1045 = vmul.f32 %v1030, %v1043
    %v1046 = vadd.f32 %v1042, %v1045
    %v1048 = vrot.slane %v1046, 4
    %1049 = vrot.lane.b32.xlu0 %v1048, 64
    %v1050 = vpop.permute.xlu0 %1049
    %v1051 = vsel %vm345, %v1050, 0
    %1053 = vmatprep.subr.mxu0 %v318
    %1054 = vmatpush1.msra.mxu0 %v317
    %1055 = vmatprep.subr.mxu0 %v320
    %1056 = vmatpush1.msra.mxu0 %v319
    %1057 = vmatprep.subr.mxu0 %v322
    %1058 = vmatpush1.msra.mxu0 %v321
    %1059 = vmatprep.subr.mxu0 %v324
    %1060 = vmatpush1.msra.mxu0 %v323
    %1061 = vmatprep.subr.mxu0 %v326
    %1062 = vmatpush1.msra.mxu0 %v325
    %1063 = vmatprep.subr.mxu0 %v328
    %1064 = vmatpush1.msra.mxu0 %v327
    %1065 = vmatprep.subr.mxu0 %v330
    %1066 = vmatpush1.msra.mxu0 %v329
    %1067 = vmatprep.subr.mxu0 %v332
    %1068 = vmatpush1.msra.mxu0 %v331
    %1069 = vmatprep.subr.mxu0 0.0
    %1070 = vmatpush1.msra.mxu0 0.0
    %1071 = vmatprep.subr.mxu0 0.0
    %1072 = vmatpush1.msra.mxu0 0.0
    %1073 = vmatprep.subr.mxu0 0.0
    %1074 = vmatpush1.msra.mxu0 0.0
    %1075 = vmatprep.subr.mxu0 0.0
    %1076 = vmatpush1.msra.mxu0 0.0
    %1077 = vmatprep.subr.mxu0 0.0
    %1078 = vmatpush1.msra.mxu0 0.0
    %1079 = vmatprep.subr.mxu0 0.0
    %1080 = vmatpush1.msra.mxu0 0.0
    %1081 = vmatprep.subr.mxu0 0.0
    %1082 = vmatpush1.msra.mxu0 0.0
    %1083 = vmatprep.subr.mxu0 0.0
    %1084 = vmatpush1.msra.mxu0 0.0
    %1085 = vmatprep.subr.mxu0 0.0
    %1086 = vmatpush1.msra.mxu0 0.0
    %1087 = vmatprep.subr.mxu0 0.0
    %1088 = vmatpush1.msra.mxu0 0.0
    %1089 = vmatprep.subr.mxu0 0.0
    %1090 = vmatpush1.msra.mxu0 0.0
    %1091 = vmatprep.subr.mxu0 0.0
    %1092 = vmatpush1.msra.mxu0 0.0
    %1093 = vmatprep.subr.mxu0 0.0
    %1094 = vmatpush1.msra.mxu0 0.0
    %1095 = vmatprep.subr.mxu0 0.0
    %1096 = vmatpush1.msra.mxu0 0.0
    %1097 = vmatprep.subr.mxu0 0.0
    %1098 = vmatpush1.msra.mxu0 0.0
    %1099 = vmatprep.subr.mxu0 0.0
    %1100 = vmatpush1.msra.mxu0 0.0
    %1101 = vmatprep.subr.mxu0 0.0
    %1102 = vmatpush1.msra.mxu0 0.0
    %1103 = vmatprep.subr.mxu0 0.0
    %1104 = vmatpush1.msra.mxu0 0.0
    %1105 = vmatprep.subr.mxu0 0.0
    %1106 = vmatpush1.msra.mxu0 0.0
    %1107 = vmatprep.subr.mxu0 0.0
    %1108 = vmatpush1.msra.mxu0 0.0
    %1109 = vmatprep.subr.mxu0 0.0
    %1110 = vmatpush1.msra.mxu0 0.0
    %1111 = vmatprep.subr.mxu0 0.0
    %1112 = vmatpush1.msra.mxu0 0.0
    %1113 = vmatprep.subr.mxu0 0.0
    %1114 = vmatpush1.msra.mxu0 0.0
    %1115 = vmatprep.subr.mxu0 0.0
    %1116 = vmatpush1.msra.mxu0 0.0
    %1117 = vmatprep.mubr.f32.mxu0 0.0
    %1118 = vmatmul.mubr.f32.gmra.mrb[0].mxu0 %v1051
    %v1119 = vpop.f32.mrb[0].mxu0
    %v1120 = vadd.f32 %v338, %v1119
    %v1121 = vpop.f32.mrb[0].mxu0
    %v1122 = vadd.f32 %v342, %v1121
    %1123 = vdwg.mxu0
    %v1125 = vrot.slane %v1120, 2
    %v1127 = vadd.f32 %v313, %v1125
    %v1128 = vxor.u32 %v1127, 2147483648
    %v1129 = vmul.f32 %v1128, 1.442695
    %v1130 = vpow.pop %v1129
    %v1131 = vadd.f32 %v1130, 1.0
    %v1132 = vrcp.pop %v1131
    %v1133 = vmul.f32 1.0, %v1132
    %v1135 = vrot.slane %v1122, 2
    %v1137 = vmul.f32 %v1133, %v1135
    %v1138 = vadd.f32 %v315, %v1137
    %v1139 = vtanh.pop %v1138
    %v1140 = vsub.f32 1.0, %v1133
    %1142 = vrot.lane.b32.xlu0 %v1139, 64
    %v1143 = vpop.permute.xlu0 %1142
    %v1145 = vmul.f32 %v1140, %v1143
    %v1146 = vrot.slane %v1046, 6
    %v1148 = vmul.f32 %v1133, %v1146
    %v1149 = vadd.f32 %v1145, %v1148
    %v1150 = vld [vmem:[%s13] sm:$0xff]
    %v1151 = vld [vmem:[%s13 + $0x8] sm:$0xff]
    %v1152 = vld [vmem:[%s13 + $0x10] sm:$0xff]
    %v1153 = vld [vmem:[%s13 + $0x18] sm:$0xff]
    %v1154 = vld [vmem:[%s13 + $0x20] sm:$0xff]
    %v1155 = vld [vmem:[%s13 + $0x28] sm:$0xff]
    %v1156 = vld [vmem:[%s13 + $0x30] sm:$0xff]
    %v1157 = vld [vmem:[%s13 + $0x38] sm:$0xff]
    %v1158 = vld [vmem:[%s13 + $0x40] sm:$0xff]
    %v1159 = vld [vmem:[%s13 + $0x48] sm:$0xff]
    %v1160 = vld [vmem:[%s13 + $0x50] sm:$0xff]
    %v1161 = vld [vmem:[%s13 + $0x58] sm:$0xff]
    %v1162 = vld [vmem:[%s13 + $0x60] sm:$0xff]
    %v1163 = vld [vmem:[%s13 + $0x68] sm:$0xff]
    %v1164 = vld [vmem:[%s13 + $0x70] sm:$0xff]
    %v1165 = vld [vmem:[%s13 + $0x78] sm:$0xff]
    %v1166 = vld [vmem:[%s13 + $0x80] sm:$0xff]
    %v1167 = vld [vmem:[%s13 + $0x88] sm:$0xff]
    %v1168 = vld [vmem:[%s15] sm:$0xff]
    %v1169 = vld [vmem:[%s15 + $0x8] sm:$0xff]
    %v1170 = vld [vmem:[%s15 + $0x10] sm:$0xff]
    %v1171 = vld [vmem:[%s15 + $0x18] sm:$0xff]
    %v1172 = vld [vmem:[%s15 + $0x20] sm:$0xff]
    %v1173 = vld [vmem:[%s15 + $0x28] sm:$0xff]
    %v1174 = vld [vmem:[%s15 + $0x30] sm:$0xff]
    %v1175 = vld [vmem:[%s15 + $0x38] sm:$0xff]
    %v1176 = vld [vmem:[%s15 + $0x40] sm:$0xff]
    %v1177 = vld [vmem:[%s17] sm:$0x3]
    %v1178 = vand.u32 2147483647, %v1150
    %v1179 = vand.u32 2147483647, %v1151
    %v1180 = vand.u32 2147483647, %v1152
    %v1181 = vand.u32 2147483647, %v1153
    %v1182 = vand.u32 2147483647, %v1154
    %v1183 = vand.u32 2147483647, %v1155
    %v1184 = vand.u32 2147483647, %v1156
    %v1185 = vand.u32 2147483647, %v1157
    %v1186 = vand.u32 2147483647, %v1158
    %v1187 = vand.u32 2147483647, %v1159
    %v1188 = vand.u32 2147483647, %v1160
    %v1189 = vand.u32 2147483647, %v1161
    %v1190 = vand.u32 2147483647, %v1162
    %v1191 = vand.u32 2147483647, %v1163
    %v1192 = vand.u32 2147483647, %v1164
    %v1193 = vand.u32 2147483647, %v1165
    %v1194 = vand.u32 2147483647, %v1166
    %v1195 = vand.u32 2147483647, %v1167
    %v1196 = vmax.f32 %v1178, 1e-30
    %v1197 = vmax.f32 %v1179, 1e-30
    %v1198 = vmax.f32 %v1180, 1e-30
    %v1199 = vmax.f32 %v1181, 1e-30
    %v1200 = vmax.f32 %v1182, 1e-30
    %v1201 = vmax.f32 %v1183, 1e-30
    %v1202 = vmax.f32 %v1184, 1e-30
    %v1203 = vmax.f32 %v1185, 1e-30
    %v1204 = vmax.f32 %v1186, 1e-30
    %v1205 = vmax.f32 %v1187, 1e-30
    %v1206 = vmax.f32 %v1188, 1e-30
    %v1207 = vmax.f32 %v1189, 1e-30
    %v1208 = vmax.f32 %v1190, 1e-30
    %v1209 = vmax.f32 %v1191, 1e-30
    %v1210 = vmax.f32 %v1192, 1e-30
    %v1211 = vmax.f32 %v1193, 1e-30
    %v1212 = vmax.f32 %v1194, 1e-30
    %v1213 = vmax.f32 %v1195, 1e-30
    %v1214 = vrcp.pop %v1196
    %v1215 = vmul.f32 1.0, %v1214
    %v1216 = vrcp.pop %v1197
    %v1217 = vmul.f32 1.0, %v1216
    %v1218 = vrcp.pop %v1198
    %v1219 = vmul.f32 1.0, %v1218
    %v1220 = vrcp.pop %v1199
    %v1221 = vmul.f32 1.0, %v1220
    %v1222 = vrcp.pop %v1200
    %v1223 = vmul.f32 1.0, %v1222
    %v1224 = vrcp.pop %v1201
    %v1225 = vmul.f32 1.0, %v1224
    %v1226 = vrcp.pop %v1202
    %v1227 = vmul.f32 1.0, %v1226
    %v1228 = vrcp.pop %v1203
    %v1229 = vmul.f32 1.0, %v1228
    %v1230 = vrcp.pop %v1204
    %v1231 = vmul.f32 1.0, %v1230
    %v1232 = vrcp.pop %v1205
    %v1233 = vmul.f32 1.0, %v1232
    %v1234 = vrcp.pop %v1206
    %v1235 = vmul.f32 1.0, %v1234
    %v1236 = vrcp.pop %v1207
    %v1237 = vmul.f32 1.0, %v1236
    %v1238 = vrcp.pop %v1208
    %v1239 = vmul.f32 1.0, %v1238
    %v1240 = vrcp.pop %v1209
    %v1241 = vmul.f32 1.0, %v1240
    %v1242 = vrcp.pop %v1210
    %v1243 = vmul.f32 1.0, %v1242
    %v1244 = vrcp.pop %v1211
    %v1245 = vmul.f32 1.0, %v1244
    %v1246 = vrcp.pop %v1212
    %v1247 = vmul.f32 1.0, %v1246
    %v1248 = vrcp.pop %v1213
    %v1249 = vmul.f32 1.0, %v1248
    %vm1250 = vcmask 588800
    %v1252 = vsel %vm1250, %v1177, 0
    %1254 = vmatprep.subr.mxu0 %v1217
    %1255 = vmatpush1.msra.mxu0 %v1215
    %1256 = vmatprep.subr.mxu0 %v1221
    %1257 = vmatpush1.msra.mxu0 %v1219
    %1258 = vmatprep.subr.mxu0 %v1225
    %1259 = vmatpush1.msra.mxu0 %v1223
    %1260 = vmatprep.subr.mxu0 %v1229
    %1261 = vmatpush1.msra.mxu0 %v1227
    %1262 = vmatprep.subr.mxu0 %v1233
    %1263 = vmatpush1.msra.mxu0 %v1231
    %1264 = vmatprep.subr.mxu0 %v1237
    %1265 = vmatpush1.msra.mxu0 %v1235
    %1266 = vmatprep.subr.mxu0 %v1241
    %1267 = vmatpush1.msra.mxu0 %v1239
    %1268 = vmatprep.subr.mxu0 %v1245
    %1269 = vmatpush1.msra.mxu0 %v1243
    %1270 = vmatprep.subr.mxu0 %v1249
    %1271 = vmatpush1.msra.mxu0 %v1247
    %1272 = vmatprep.subr.mxu0 0.0
    %1273 = vmatpush1.msra.mxu0 0.0
    %1274 = vmatprep.subr.mxu0 0.0
    %1275 = vmatpush1.msra.mxu0 0.0
    %1276 = vmatprep.subr.mxu0 0.0
    %1277 = vmatpush1.msra.mxu0 0.0
    %1278 = vmatprep.subr.mxu0 0.0
    %1279 = vmatpush1.msra.mxu0 0.0
    %1280 = vmatprep.subr.mxu0 0.0
    %1281 = vmatpush1.msra.mxu0 0.0
    %1282 = vmatprep.subr.mxu0 0.0
    %1283 = vmatpush1.msra.mxu0 0.0
    %1284 = vmatprep.subr.mxu0 0.0
    %1285 = vmatpush1.msra.mxu0 0.0
    %1286 = vmatprep.subr.mxu0 0.0
    %1287 = vmatpush1.msra.mxu0 0.0
    %1288 = vmatprep.subr.mxu0 0.0
    %1289 = vmatpush1.msra.mxu0 0.0
    %1290 = vmatprep.subr.mxu0 0.0
    %1291 = vmatpush1.msra.mxu0 0.0
    %1292 = vmatprep.subr.mxu0 0.0
    %1293 = vmatpush1.msra.mxu0 0.0
    %1294 = vmatprep.subr.mxu0 0.0
    %1295 = vmatpush1.msra.mxu0 0.0
    %1296 = vmatprep.subr.mxu0 0.0
    %1297 = vmatpush1.msra.mxu0 0.0
    %1298 = vmatprep.subr.mxu0 0.0
    %1299 = vmatpush1.msra.mxu0 0.0
    %1300 = vmatprep.subr.mxu0 0.0
    %1301 = vmatpush1.msra.mxu0 0.0
    %1302 = vmatprep.subr.mxu0 0.0
    %1303 = vmatpush1.msra.mxu0 0.0
    %1304 = vmatprep.subr.mxu0 0.0
    %1305 = vmatpush1.msra.mxu0 0.0
    %1306 = vmatprep.subr.mxu0 0.0
    %1307 = vmatpush1.msra.mxu0 0.0
    %1308 = vmatprep.subr.mxu0 0.0
    %1309 = vmatpush1.msra.mxu0 0.0
    %1310 = vmatprep.subr.mxu0 0.0
    %1311 = vmatpush1.msra.mxu0 0.0
    %1312 = vmatprep.subr.mxu0 0.0
    %1313 = vmatpush1.msra.mxu0 0.0
    %1314 = vmatprep.subr.mxu0 0.0
    %1315 = vmatpush1.msra.mxu0 0.0
    %1316 = vmatprep.subr.mxu0 0.0
    %1317 = vmatpush1.msra.mxu0 0.0
    %1318 = vmatprep.mubr.f32.mxu0 0.0
    %1319 = vmatmul.mubr.f32.gmra.mrb[0].mxu0 %v1252
    %v1320 = vpop.f32.mrb[0].mxu0
    %v1321 = vadd.f32 0.0, %v1320
    %v1322 = vpop.f32.mrb[0].mxu0
    %v1323 = vadd.f32 0.0, %v1322
    %1324 = vdwg.mxu0
    %v1325 = vmin.f32 %v1321, 1e+12
    %v1326 = vmin.f32 %v1323, 1e+12
    %vm1327 = vcmask 15360
    %v1329 = vsel %vm1327, %v1168, 0
    %v1332 = vsel %vm1327, %v1169, 0
    %v1335 = vsel %vm1327, %v1170, 0
    %v1338 = vsel %vm1327, %v1171, 0
    %v1341 = vsel %vm1327, %v1172, 0
    %v1344 = vsel %vm1327, %v1173, 0
    %v1347 = vsel %vm1327, %v1174, 0
    %v1350 = vsel %vm1327, %v1175, 0
    %v1353 = vsel %vm1327, %v1176, 0
    %vm1355 = vcmask 1041408
    %v1357 = vsel %vm1355, %v1325, 0
    %v1360 = vsel %vm1355, %v1326, 0
    %1362 = vmatprep.subr.mxu0 %v1360
    %1363 = vmatpush1.msra.mxu0 %v1357
    %1364 = vmatprep.subr.mxu0 0.0
    %1365 = vmatpush1.msra.mxu0 0.0
    %1366 = vmatprep.subr.mxu0 0.0
    %1367 = vmatpush1.msra.mxu0 0.0
    %1368 = vmatprep.subr.mxu0 0.0
    %1369 = vmatpush1.msra.mxu0 0.0
    %1370 = vmatprep.subr.mxu0 0.0
    %1371 = vmatpush1.msra.mxu0 0.0
    %1372 = vmatprep.subr.mxu0 0.0
    %1373 = vmatpush1.msra.mxu0 0.0
    %1374 = vmatprep.subr.mxu0 0.0
    %1375 = vmatpush1.msra.mxu0 0.0
    %1376 = vmatprep.subr.mxu0 0.0
    %1377 = vmatpush1.msra.mxu0 0.0
    %1378 = vmatprep.subr.mxu0 0.0
    %1379 = vmatpush1.msra.mxu0 0.0
    %1380 = vmatprep.subr.mxu0 0.0
    %1381 = vmatpush1.msra.mxu0 0.0
    %1382 = vmatprep.subr.mxu0 0.0
    %1383 = vmatpush1.msra.mxu0 0.0
    %1384 = vmatprep.subr.mxu0 0.0
    %1385 = vmatpush1.msra.mxu0 0.0
    %1386 = vmatprep.subr.mxu0 0.0
    %1387 = vmatpush1.msra.mxu0 0.0
    %1388 = vmatprep.subr.mxu0 0.0
    %1389 = vmatpush1.msra.mxu0 0.0
    %1390 = vmatprep.subr.mxu0 0.0
    %1391 = vmatpush1.msra.mxu0 0.0
    %1392 = vmatprep.subr.mxu0 0.0
    %1393 = vmatpush1.msra.mxu0 0.0
    %1394 = vmatprep.subr.mxu0 0.0
    %1395 = vmatpush1.msra.mxu0 0.0
    %1396 = vmatprep.subr.mxu0 0.0
    %1397 = vmatpush1.msra.mxu0 0.0
    %1398 = vmatprep.subr.mxu0 0.0
    %1399 = vmatpush1.msra.mxu0 0.0
    %1400 = vmatprep.subr.mxu0 0.0
    %1401 = vmatpush1.msra.mxu0 0.0
    %1402 = vmatprep.subr.mxu0 0.0
    %1403 = vmatpush1.msra.mxu0 0.0
    %1404 = vmatprep.subr.mxu0 0.0
    %1405 = vmatpush1.msra.mxu0 0.0
    %1406 = vmatprep.subr.mxu0 0.0
    %1407 = vmatpush1.msra.mxu0 0.0
    %1408 = vmatprep.subr.mxu0 0.0
    %1409 = vmatpush1.msra.mxu0 0.0
    %1410 = vmatprep.subr.mxu0 0.0
    %1411 = vmatpush1.msra.mxu0 0.0
    %1412 = vmatprep.subr.mxu0 0.0
    %1413 = vmatpush1.msra.mxu0 0.0
    %1414 = vmatprep.subr.mxu0 0.0
    %1415 = vmatpush1.msra.mxu0 0.0
    %1416 = vmatprep.subr.mxu0 0.0
    %1417 = vmatpush1.msra.mxu0 0.0
    %1418 = vmatprep.subr.mxu0 0.0
    %1419 = vmatpush1.msra.mxu0 0.0
    %1420 = vmatprep.subr.mxu0 0.0
    %1421 = vmatpush1.msra.mxu0 0.0
    %1422 = vmatprep.subr.mxu0 0.0
    %1423 = vmatpush1.msra.mxu0 0.0
    %1424 = vmatprep.subr.mxu0 0.0
    %1425 = vmatpush1.msra.mxu0 0.0
    %1426 = vmatprep.mubr.f32.mxu0 0.0
    %1427 = vmatmul.mubr.f32.gmra.mrb[0].mxu0 %v1329
    %v1428 = vpop.f32.mrb[0].mxu0
    %v1429 = vadd.f32 0.0, %v1428
    %v1430 = vpop.f32.mrb[0].mxu0
    %v1431 = vadd.f32 0.0, %v1430
    %1432 = vmatprep.mubr.f32.mxu0 0.0
    %1433 = vmatmul.mubr.f32.gmra.mrb[0].mxu0 %v1332
    %v1434 = vpop.f32.mrb[0].mxu0
    %v1435 = vadd.f32 0.0, %v1434
    %v1436 = vpop.f32.mrb[0].mxu0
    %v1437 = vadd.f32 0.0, %v1436
    %1438 = vmatprep.mubr.f32.mxu0 0.0
    %1439 = vmatmul.mubr.f32.gmra.mrb[0].mxu0 %v1335
    %v1440 = vpop.f32.mrb[0].mxu0
    %v1441 = vadd.f32 0.0, %v1440
    %v1442 = vpop.f32.mrb[0].mxu0
    %v1443 = vadd.f32 0.0, %v1442
    %1444 = vmatprep.mubr.f32.mxu0 0.0
    %1445 = vmatmul.mubr.f32.gmra.mrb[0].mxu0 %v1338
    %v1446 = vpop.f32.mrb[0].mxu0
    %v1447 = vadd.f32 0.0, %v1446
    %v1448 = vpop.f32.mrb[0].mxu0
    %v1449 = vadd.f32 0.0, %v1448
    %1450 = vmatprep.mubr.f32.mxu0 0.0
    %1451 = vmatmul.mubr.f32.gmra.mrb[0].mxu0 %v1341
    %v1452 = vpop.f32.mrb[0].mxu0
    %v1453 = vadd.f32 0.0, %v1452
    %v1454 = vpop.f32.mrb[0].mxu0
    %v1455 = vadd.f32 0.0, %v1454
    %1456 = vmatprep.mubr.f32.mxu0 0.0
    %1457 = vmatmul.mubr.f32.gmra.mrb[0].mxu0 %v1344
    %v1458 = vpop.f32.mrb[0].mxu0
    %v1459 = vadd.f32 0.0, %v1458
    %v1460 = vpop.f32.mrb[0].mxu0
    %v1461 = vadd.f32 0.0, %v1460
    %1462 = vmatprep.mubr.f32.mxu0 0.0
    %1463 = vmatmul.mubr.f32.gmra.mrb[0].mxu0 %v1347
    %v1464 = vpop.f32.mrb[0].mxu0
    %v1465 = vadd.f32 0.0, %v1464
    %v1466 = vpop.f32.mrb[0].mxu0
    %v1467 = vadd.f32 0.0, %v1466
    %1468 = vmatprep.mubr.f32.mxu0 0.0
    %1469 = vmatmul.mubr.f32.gmra.mrb[0].mxu0 %v1350
    %v1470 = vpop.f32.mrb[0].mxu0
    %v1471 = vadd.f32 0.0, %v1470
    %v1472 = vpop.f32.mrb[0].mxu0
    %v1473 = vadd.f32 0.0, %v1472
    %1474 = vmatprep.mubr.f32.mxu0 0.0
    %1475 = vmatmul.mubr.f32.gmra.mrb[0].mxu0 %v1353
    %v1476 = vpop.f32.mrb[0].mxu0
    %v1477 = vadd.f32 0.0, %v1476
    %v1478 = vpop.f32.mrb[0].mxu0
    %v1479 = vadd.f32 0.0, %v1478
    %1480 = vdwg.mxu0
    %v1481 = vmul.f32 %v1150, %v1429
    %v1482 = vmul.f32 %v1151, %v1431
    %v1483 = vmul.f32 %v1152, %v1435
    %v1484 = vmul.f32 %v1153, %v1437
    %v1485 = vmul.f32 %v1154, %v1441
    %v1486 = vmul.f32 %v1155, %v1443
    %v1487 = vmul.f32 %v1156, %v1447
    %v1488 = vmul.f32 %v1157, %v1449
    %v1489 = vmul.f32 %v1158, %v1453
    %v1490 = vmul.f32 %v1159, %v1455
    %v1491 = vmul.f32 %v1160, %v1459
    %v1492 = vmul.f32 %v1161, %v1461
    %v1493 = vmul.f32 %v1162, %v1465
    %v1494 = vmul.f32 %v1163, %v1467
    %v1495 = vmul.f32 %v1164, %v1471
    %v1496 = vmul.f32 %v1165, %v1473
    %v1497 = vmul.f32 %v1166, %v1477
    %v1498 = vmul.f32 %v1167, %v1479
    %v1499 = vld [vmem:[%s21] sm:$0xff]
    %v1500 = vld [vmem:[%s21 + $0x8] sm:$0xff]
    %v1501 = vld [vmem:[%s21 + $0x10] sm:$0xff]
    %v1502 = vld [vmem:[%s21 + $0x18] sm:$0xff]
    %v1503 = vld [vmem:[%s21 + $0x20] sm:$0xff]
    %v1504 = vld [vmem:[%s21 + $0x28] sm:$0xff]
    %v1505 = vld [vmem:[%s21 + $0x30] sm:$0xff]
    %v1506 = vld [vmem:[%s21 + $0x38] sm:$0xff]
    %v1507 = vld [vmem:[%s23] sm:$0x1]
    %v1509 = vlaneseq
    %v1510 = vshrl.u32 %v1509, 7
    %v1511 = vsub.s32 0, %v1510
    %v1512 = vrot.slane %v1507, %v1511
    %v1515 = vrot.slane %v1149, 6
    %1516 = vrot.lane.b32.xlu0 %v1515, 64
    %v1517 = vpop.permute.xlu0 %1516
    %v1518 = vsel %vm345, %v1517, 0
    %1520 = vmatprep.subr.mxu0 0.0
    %1521 = vmatpush1.msra.mxu0 %v1499
    %1522 = vmatprep.subr.mxu0 0.0
    %1523 = vmatpush1.msra.mxu0 %v1500
    %1524 = vmatprep.subr.mxu0 0.0
    %1525 = vmatpush1.msra.mxu0 %v1501
    %1526 = vmatprep.subr.mxu0 0.0
    %1527 = vmatpush1.msra.mxu0 %v1502
    %1528 = vmatprep.subr.mxu0 0.0
    %1529 = vmatpush1.msra.mxu0 %v1503
    %1530 = vmatprep.subr.mxu0 0.0
    %1531 = vmatpush1.msra.mxu0 %v1504
    %1532 = vmatprep.subr.mxu0 0.0
    %1533 = vmatpush1.msra.mxu0 %v1505
    %1534 = vmatprep.subr.mxu0 0.0
    %1535 = vmatpush1.msra.mxu0 %v1506
    %1536 = vmatprep.subr.mxu0 0.0
    %1537 = vmatpush1.msra.mxu0 0.0
    %1538 = vmatprep.subr.mxu0 0.0
    %1539 = vmatpush1.msra.mxu0 0.0
    %1540 = vmatprep.subr.mxu0 0.0
    %1541 = vmatpush1.msra.mxu0 0.0
    %1542 = vmatprep.subr.mxu0 0.0
    %1543 = vmatpush1.msra.mxu0 0.0
    %1544 = vmatprep.subr.mxu0 0.0
    %1545 = vmatpush1.msra.mxu0 0.0
    %1546 = vmatprep.subr.mxu0 0.0
    %1547 = vmatpush1.msra.mxu0 0.0
    %1548 = vmatprep.subr.mxu0 0.0
    %1549 = vmatpush1.msra.mxu0 0.0
    %1550 = vmatprep.subr.mxu0 0.0
    %1551 = vmatpush1.msra.mxu0 0.0
    %1552 = vmatprep.subr.mxu0 0.0
    %1553 = vmatpush1.msra.mxu0 0.0
    %1554 = vmatprep.subr.mxu0 0.0
    %1555 = vmatpush1.msra.mxu0 0.0
    %1556 = vmatprep.subr.mxu0 0.0
    %1557 = vmatpush1.msra.mxu0 0.0
    %1558 = vmatprep.subr.mxu0 0.0
    %1559 = vmatpush1.msra.mxu0 0.0
    %1560 = vmatprep.subr.mxu0 0.0
    %1561 = vmatpush1.msra.mxu0 0.0
    %1562 = vmatprep.subr.mxu0 0.0
    %1563 = vmatpush1.msra.mxu0 0.0
    %1564 = vmatprep.subr.mxu0 0.0
    %1565 = vmatpush1.msra.mxu0 0.0
    %1566 = vmatprep.subr.mxu0 0.0
    %1567 = vmatpush1.msra.mxu0 0.0
    %1568 = vmatprep.subr.mxu0 0.0
    %1569 = vmatpush1.msra.mxu0 0.0
    %1570 = vmatprep.subr.mxu0 0.0
    %1571 = vmatpush1.msra.mxu0 0.0
    %1572 = vmatprep.subr.mxu0 0.0
    %1573 = vmatpush1.msra.mxu0 0.0
    %1574 = vmatprep.subr.mxu0 0.0
    %1575 = vmatpush1.msra.mxu0 0.0
    %1576 = vmatprep.subr.mxu0 0.0
    %1577 = vmatpush1.msra.mxu0 0.0
    %1578 = vmatprep.subr.mxu0 0.0
    %1579 = vmatpush1.msra.mxu0 0.0
    %1580 = vmatprep.subr.mxu0 0.0
    %1581 = vmatpush1.msra.mxu0 0.0
    %1582 = vmatprep.subr.mxu0 0.0
    %1583 = vmatpush1.msra.mxu0 0.0
    %1584 = vmatprep.mubr.f32.mxu0 0.0
    %1585 = vmatmul.mubr.f32.gmra.mrb[0].mxu0 %v1518
    %v1586 = vpop.f32.mrb[0].mxu0
    %v1587 = vadd.f32 %v1512, %v1586
    %v1588 = vpop.f32.mrb[0].mxu0
    %1589 = vdwg.mxu0
    %v1590 = vld [vmem:[%s27] sm:$0xff]
    %v1591 = vld [vmem:[%s27 + $0x8] sm:$0xff]
    %v1592 = vld [vmem:[%s27 + $0x10] sm:$0xff]
    %v1593 = vld [vmem:[%s27 + $0x18] sm:$0xff]
    %v1594 = vld [vmem:[%s27 + $0x20] sm:$0xff]
    %v1595 = vld [vmem:[%s27 + $0x28] sm:$0xff]
    %v1596 = vld [vmem:[%s27 + $0x30] sm:$0xff]
    %v1597 = vld [vmem:[%s27 + $0x38] sm:$0xff]
    %v1598 = vld [vmem:[%s29] sm:$0x1]
    %v1600 = vlaneseq
    %v1601 = vshrl.u32 %v1600, 7
    %v1602 = vsub.s32 0, %v1601
    %v1603 = vrot.slane %v1598, %v1602
    %1605 = vmatprep.subr.mxu0 0.0
    %1606 = vmatpush1.msra.mxu0 %v1590
    %1607 = vmatprep.subr.mxu0 0.0
    %1608 = vmatpush1.msra.mxu0 %v1591
    %1609 = vmatprep.subr.mxu0 0.0
    %1610 = vmatpush1.msra.mxu0 %v1592
    %1611 = vmatprep.subr.mxu0 0.0
    %1612 = vmatpush1.msra.mxu0 %v1593
    %1613 = vmatprep.subr.mxu0 0.0
    %1614 = vmatpush1.msra.mxu0 %v1594
    %1615 = vmatprep.subr.mxu0 0.0
    %1616 = vmatpush1.msra.mxu0 %v1595
    %1617 = vmatprep.subr.mxu0 0.0
    %1618 = vmatpush1.msra.mxu0 %v1596
    %1619 = vmatprep.subr.mxu0 0.0
    %1620 = vmatpush1.msra.mxu0 %v1597
    %1621 = vmatprep.subr.mxu0 0.0
    %1622 = vmatpush1.msra.mxu0 0.0
    %1623 = vmatprep.subr.mxu0 0.0
    %1624 = vmatpush1.msra.mxu0 0.0
    %1625 = vmatprep.subr.mxu0 0.0
    %1626 = vmatpush1.msra.mxu0 0.0
    %1627 = vmatprep.subr.mxu0 0.0
    %1628 = vmatpush1.msra.mxu0 0.0
    %1629 = vmatprep.subr.mxu0 0.0
    %1630 = vmatpush1.msra.mxu0 0.0
    %1631 = vmatprep.subr.mxu0 0.0
    %1632 = vmatpush1.msra.mxu0 0.0
    %1633 = vmatprep.subr.mxu0 0.0
    %1634 = vmatpush1.msra.mxu0 0.0
    %1635 = vmatprep.subr.mxu0 0.0
    %1636 = vmatpush1.msra.mxu0 0.0
    %1637 = vmatprep.subr.mxu0 0.0
    %1638 = vmatpush1.msra.mxu0 0.0
    %1639 = vmatprep.subr.mxu0 0.0
    %1640 = vmatpush1.msra.mxu0 0.0
    %1641 = vmatprep.subr.mxu0 0.0
    %1642 = vmatpush1.msra.mxu0 0.0
    %1643 = vmatprep.subr.mxu0 0.0
    %1644 = vmatpush1.msra.mxu0 0.0
    %1645 = vmatprep.subr.mxu0 0.0
    %1646 = vmatpush1.msra.mxu0 0.0
    %1647 = vmatprep.subr.mxu0 0.0
    %1648 = vmatpush1.msra.mxu0 0.0
    %1649 = vmatprep.subr.mxu0 0.0
    %1650 = vmatpush1.msra.mxu0 0.0
    %1651 = vmatprep.subr.mxu0 0.0
    %1652 = vmatpush1.msra.mxu0 0.0
    %1653 = vmatprep.subr.mxu0 0.0
    %1654 = vmatpush1.msra.mxu0 0.0
    %1655 = vmatprep.subr.mxu0 0.0
    %1656 = vmatpush1.msra.mxu0 0.0
    %1657 = vmatprep.subr.mxu0 0.0
    %1658 = vmatpush1.msra.mxu0 0.0
    %1659 = vmatprep.subr.mxu0 0.0
    %1660 = vmatpush1.msra.mxu0 0.0
    %1661 = vmatprep.subr.mxu0 0.0
    %1662 = vmatpush1.msra.mxu0 0.0
    %1663 = vmatprep.subr.mxu0 0.0
    %1664 = vmatpush1.msra.mxu0 0.0
    %1665 = vmatprep.subr.mxu0 0.0
    %1666 = vmatpush1.msra.mxu0 0.0
    %1667 = vmatprep.subr.mxu0 0.0
    %1668 = vmatpush1.msra.mxu0 0.0
    %1669 = vmatprep.mubr.f32.mxu0 0.0
    %1670 = vmatmul.mubr.f32.gmra.mrb[0].mxu0 %v1518
    %v1671 = vpop.f32.mrb[0].mxu0
    %v1672 = vadd.f32 %v1603, %v1671
    %v1673 = vpop.f32.mrb[0].mxu0
    %1674 = vdwg.mxu0
    %v1675 = vld [vmem:[%s19] sm:$0xff]
    %v1676 = vld [vmem:[%s19 + $0x8] sm:$0xff]
    %v1677 = vld [vmem:[%s19 + $0x10] sm:$0xff]
    %v1678 = vld [vmem:[%s19 + $0x18] sm:$0xff]
    %v1679 = vld [vmem:[%s19 + $0x20] sm:$0xff]
    %v1680 = vld [vmem:[%s19 + $0x28] sm:$0xff]
    %v1681 = vld [vmem:[%s19 + $0x30] sm:$0xff]
    %v1682 = vld [vmem:[%s19 + $0x38] sm:$0xff]
    %v1683 = vld [vmem:[%s19 + $0x40] sm:$0xff]
    %v1684 = vld [vmem:[%s19 + $0x48] sm:$0xff]
    %v1685 = vld [vmem:[%s19 + $0x50] sm:$0xff]
    %v1686 = vld [vmem:[%s19 + $0x58] sm:$0xff]
    %v1687 = vld [vmem:[%s19 + $0x60] sm:$0xff]
    %v1688 = vld [vmem:[%s19 + $0x68] sm:$0xff]
    %v1689 = vld [vmem:[%s19 + $0x70] sm:$0xff]
    %v1690 = vld [vmem:[%s19 + $0x78] sm:$0xff]
    %v1691 = vld [vmem:[%s19 + $0x80] sm:$0xff]
    %v1692 = vld [vmem:[%s19 + $0x88] sm:$0xff]
    %v1693 = vld [vmem:[%s19 + $0x90] sm:$0xff]
    %v1694 = vld [vmem:[%s19 + $0x98] sm:$0xff]
    %v1695 = vld [vmem:[%s19 + $0xa0] sm:$0xff]
    %v1696 = vld [vmem:[%s19 + $0xa8] sm:$0xff]
    %v1697 = vld [vmem:[%s19 + $0xb0] sm:$0xff]
    %v1698 = vld [vmem:[%s19 + $0xb8] sm:$0xff]
    %v1699 = vld [vmem:[%s19 + $0xc0] sm:$0xff]
    %v1700 = vld [vmem:[%s19 + $0xc8] sm:$0xff]
    %v1701 = vld [vmem:[%s19 + $0xd0] sm:$0xff]
    %v1702 = vld [vmem:[%s19 + $0xd8] sm:$0xff]
    %v1703 = vld [vmem:[%s19 + $0xe0] sm:$0xff]
    %v1704 = vld [vmem:[%s19 + $0xe8] sm:$0xff]
    %v1705 = vld [vmem:[%s19 + $0xf0] sm:$0xff]
    %v1706 = vld [vmem:[%s19 + $0xf8] sm:$0xff]
    %v1708 = vsel %vm1355, %v1587, 0
    %1710 = vmatprep.subr.mxu0 0.0
    %1711 = vmatpush1.msra.mxu0 %v1708
    %1712 = vmatprep.subr.mxu0 0.0
    %1713 = vmatpush1.msra.mxu0 0.0
    %1714 = vmatprep.subr.mxu0 0.0
    %1715 = vmatpush1.msra.mxu0 0.0
    %1716 = vmatprep.subr.mxu0 0.0
    %1717 = vmatpush1.msra.mxu0 0.0
    %1718 = vmatprep.subr.mxu0 0.0
    %1719 = vmatpush1.msra.mxu0 0.0
    %1720 = vmatprep.subr.mxu0 0.0
    %1721 = vmatpush1.msra.mxu0 0.0
    %1722 = vmatprep.subr.mxu0 0.0
    %1723 = vmatpush1.msra.mxu0 0.0
    %1724 = vmatprep.subr.mxu0 0.0
    %1725 = vmatpush1.msra.mxu0 0.0
    %1726 = vmatprep.subr.mxu0 0.0
    %1727 = vmatpush1.msra.mxu0 0.0
    %1728 = vmatprep.subr.mxu0 0.0
    %1729 = vmatpush1.msra.mxu0 0.0
    %1730 = vmatprep.subr.mxu0 0.0
    %1731 = vmatpush1.msra.mxu0 0.0
    %1732 = vmatprep.subr.mxu0 0.0
    %1733 = vmatpush1.msra.mxu0 0.0
    %1734 = vmatprep.subr.mxu0 0.0
    %1735 = vmatpush1.msra.mxu0 0.0
    %1736 = vmatprep.subr.mxu0 0.0
    %1737 = vmatpush1.msra.mxu0 0.0
    %1738 = vmatprep.subr.mxu0 0.0
    %1739 = vmatpush1.msra.mxu0 0.0
    %1740 = vmatprep.subr.mxu0 0.0
    %1741 = vmatpush1.msra.mxu0 0.0
    %1742 = vmatprep.subr.mxu0 0.0
    %1743 = vmatpush1.msra.mxu0 0.0
    %1744 = vmatprep.subr.mxu0 0.0
    %1745 = vmatpush1.msra.mxu0 0.0
    %1746 = vmatprep.subr.mxu0 0.0
    %1747 = vmatpush1.msra.mxu0 0.0
    %1748 = vmatprep.subr.mxu0 0.0
    %1749 = vmatpush1.msra.mxu0 0.0
    %1750 = vmatprep.subr.mxu0 0.0
    %1751 = vmatpush1.msra.mxu0 0.0
    %1752 = vmatprep.subr.mxu0 0.0
    %1753 = vmatpush1.msra.mxu0 0.0
    %1754 = vmatprep.subr.mxu0 0.0
    %1755 = vmatpush1.msra.mxu0 0.0
    %1756 = vmatprep.subr.mxu0 0.0
    %1757 = vmatpush1.msra.mxu0 0.0
    %1758 = vmatprep.subr.mxu0 0.0
    %1759 = vmatpush1.msra.mxu0 0.0
    %1760 = vmatprep.subr.mxu0 0.0
    %1761 = vmatpush1.msra.mxu0 0.0
    %1762 = vmatprep.subr.mxu0 0.0
    %1763 = vmatpush1.msra.mxu0 0.0
    %1764 = vmatprep.subr.mxu0 0.0
    %1765 = vmatpush1.msra.mxu0 0.0
    %1766 = vmatprep.subr.mxu0 0.0
    %1767 = vmatpush1.msra.mxu0 0.0
    %1768 = vmatprep.subr.mxu0 0.0
    %1769 = vmatpush1.msra.mxu0 0.0
    %1770 = vmatprep.subr.mxu0 0.0
    %1771 = vmatpush1.msra.mxu0 0.0
    %1772 = vmatprep.subr.mxu0 0.0
    %1773 = vmatpush1.msra.mxu0 0.0
    %1774 = vmatprep.mubr.f32.mxu0 0.0
    %1775 = vmatmul.mubr.f32.gmra.mrb[0].mxu0 %v1329
    %v1776 = vpop.f32.mrb[0].mxu0
    %v1777 = vadd.f32 0.0, %v1776
    %v1778 = vpop.f32.mrb[0].mxu0
    %1779 = vmatprep.mubr.f32.mxu0 0.0
    %1780 = vmatmul.mubr.f32.gmra.mrb[0].mxu0 %v1332
    %v1781 = vpop.f32.mrb[0].mxu0
    %v1782 = vadd.f32 0.0, %v1781
    %v1783 = vpop.f32.mrb[0].mxu0
    %1784 = vmatprep.mubr.f32.mxu0 0.0
    %1785 = vmatmul.mubr.f32.gmra.mrb[0].mxu0 %v1335
    %v1786 = vpop.f32.mrb[0].mxu0
    %v1787 = vadd.f32 0.0, %v1786
    %v1788 = vpop.f32.mrb[0].mxu0
    %1789 = vmatprep.mubr.f32.mxu0 0.0
    %1790 = vmatmul.mubr.f32.gmra.mrb[0].mxu0 %v1338
    %v1791 = vpop.f32.mrb[0].mxu0
    %v1792 = vadd.f32 0.0, %v1791
    %v1793 = vpop.f32.mrb[0].mxu0
    %1794 = vmatprep.mubr.f32.mxu0 0.0
    %1795 = vmatmul.mubr.f32.gmra.mrb[0].mxu0 %v1341
    %v1796 = vpop.f32.mrb[0].mxu0
    %v1797 = vadd.f32 0.0, %v1796
    %v1798 = vpop.f32.mrb[0].mxu0
    %1799 = vmatprep.mubr.f32.mxu0 0.0
    %1800 = vmatmul.mubr.f32.gmra.mrb[0].mxu0 %v1344
    %v1801 = vpop.f32.mrb[0].mxu0
    %v1802 = vadd.f32 0.0, %v1801
    %v1803 = vpop.f32.mrb[0].mxu0
    %1804 = vmatprep.mubr.f32.mxu0 0.0
    %1805 = vmatmul.mubr.f32.gmra.mrb[0].mxu0 %v1347
    %v1806 = vpop.f32.mrb[0].mxu0
    %v1807 = vadd.f32 0.0, %v1806
    %v1808 = vpop.f32.mrb[0].mxu0
    %1809 = vmatprep.mubr.f32.mxu0 0.0
    %1810 = vmatmul.mubr.f32.gmra.mrb[0].mxu0 %v1350
    %v1811 = vpop.f32.mrb[0].mxu0
    %v1812 = vadd.f32 0.0, %v1811
    %v1813 = vpop.f32.mrb[0].mxu0
    %1814 = vmatprep.mubr.f32.mxu0 0.0
    %1815 = vmatmul.mubr.f32.gmra.mrb[0].mxu0 %v1353
    %v1816 = vpop.f32.mrb[0].mxu0
    %v1817 = vadd.f32 0.0, %v1816
    %v1818 = vpop.f32.mrb[0].mxu0
    %1819 = vdwg.mxu0
    %1820 = vmatprep.subr.mxu0 0.0
    %1821 = vmatpush1.msra.mxu0 %v1675
    %1822 = vmatprep.subr.mxu0 0.0
    %1823 = vmatpush1.msra.mxu0 %v1676
    %1824 = vmatprep.subr.mxu0 0.0
    %1825 = vmatpush1.msra.mxu0 %v1677
    %1826 = vmatprep.subr.mxu0 0.0
    %1827 = vmatpush1.msra.mxu0 %v1678
    %1828 = vmatprep.subr.mxu0 0.0
    %1829 = vmatpush1.msra.mxu0 %v1679
    %1830 = vmatprep.subr.mxu0 0.0
    %1831 = vmatpush1.msra.mxu0 %v1680
    %1832 = vmatprep.subr.mxu0 0.0
    %1833 = vmatpush1.msra.mxu0 %v1681
    %1834 = vmatprep.subr.mxu0 0.0
    %1835 = vmatpush1.msra.mxu0 %v1682
    %1836 = vmatprep.subr.mxu0 0.0
    %1837 = vmatpush1.msra.mxu0 %v1683
    %1838 = vmatprep.subr.mxu0 0.0
    %1839 = vmatpush1.msra.mxu0 %v1684
    %1840 = vmatprep.subr.mxu0 0.0
    %1841 = vmatpush1.msra.mxu0 %v1685
    %1842 = vmatprep.subr.mxu0 0.0
    %1843 = vmatpush1.msra.mxu0 %v1686
    %1844 = vmatprep.subr.mxu0 0.0
    %1845 = vmatpush1.msra.mxu0 %v1687
    %1846 = vmatprep.subr.mxu0 0.0
    %1847 = vmatpush1.msra.mxu0 %v1688
    %1848 = vmatprep.subr.mxu0 0.0
    %1849 = vmatpush1.msra.mxu0 %v1689
    %1850 = vmatprep.subr.mxu0 0.0
    %1851 = vmatpush1.msra.mxu0 %v1690
    %1852 = vmatprep.subr.mxu0 0.0
    %1853 = vmatpush1.msra.mxu0 %v1691
    %1854 = vmatprep.subr.mxu0 0.0
    %1855 = vmatpush1.msra.mxu0 %v1692
    %1856 = vmatprep.subr.mxu0 0.0
    %1857 = vmatpush1.msra.mxu0 %v1693
    %1858 = vmatprep.subr.mxu0 0.0
    %1859 = vmatpush1.msra.mxu0 %v1694
    %1860 = vmatprep.subr.mxu0 0.0
    %1861 = vmatpush1.msra.mxu0 %v1695
    %1862 = vmatprep.subr.mxu0 0.0
    %1863 = vmatpush1.msra.mxu0 %v1696
    %1864 = vmatprep.subr.mxu0 0.0
    %1865 = vmatpush1.msra.mxu0 %v1697
    %1866 = vmatprep.subr.mxu0 0.0
    %1867 = vmatpush1.msra.mxu0 %v1698
    %1868 = vmatprep.subr.mxu0 0.0
    %1869 = vmatpush1.msra.mxu0 %v1699
    %1870 = vmatprep.subr.mxu0 0.0
    %1871 = vmatpush1.msra.mxu0 %v1700
    %1872 = vmatprep.subr.mxu0 0.0
    %1873 = vmatpush1.msra.mxu0 %v1701
    %1874 = vmatprep.subr.mxu0 0.0
    %1875 = vmatpush1.msra.mxu0 %v1702
    %1876 = vmatprep.subr.mxu0 0.0
    %1877 = vmatpush1.msra.mxu0 %v1703
    %1878 = vmatprep.subr.mxu0 0.0
    %1879 = vmatpush1.msra.mxu0 %v1704
    %1880 = vmatprep.subr.mxu0 0.0
    %1881 = vmatpush1.msra.mxu0 %v1705
    %1882 = vmatprep.subr.mxu0 0.0
    %1883 = vmatpush1.msra.mxu0 %v1706
    %1884 = vmatprep.mubr.f32.mxu0 %v1482
    %1885 = vmatmul.mubr.f32.gmra.mrb[0].mxu0 %v1481
    %v1886 = vpop.f32.mrb[0].mxu0
    %v1887 = vadd.f32 %v1777, %v1886
    %v1888 = vpop.f32.mrb[0].mxu0
    %1889 = vmatprep.mubr.f32.mxu0 %v1484
    %1890 = vmatmul.mubr.f32.gmra.mrb[0].mxu0 %v1483
    %v1891 = vpop.f32.mrb[0].mxu0
    %v1892 = vadd.f32 %v1782, %v1891
    %v1893 = vpop.f32.mrb[0].mxu0
    %1894 = vmatprep.mubr.f32.mxu0 %v1486
    %1895 = vmatmul.mubr.f32.gmra.mrb[0].mxu0 %v1485
    %v1896 = vpop.f32.mrb[0].mxu0
    %v1897 = vadd.f32 %v1787, %v1896
    %v1898 = vpop.f32.mrb[0].mxu0
    %1899 = vmatprep.mubr.f32.mxu0 %v1488
    %1900 = vmatmul.mubr.f32.gmra.mrb[0].mxu0 %v1487
    %v1901 = vpop.f32.mrb[0].mxu0
    %v1902 = vadd.f32 %v1792, %v1901
    %v1903 = vpop.f32.mrb[0].mxu0
    %1904 = vmatprep.mubr.f32.mxu0 %v1490
    %1905 = vmatmul.mubr.f32.gmra.mrb[0].mxu0 %v1489
    %v1906 = vpop.f32.mrb[0].mxu0
    %v1907 = vadd.f32 %v1797, %v1906
    %v1908 = vpop.f32.mrb[0].mxu0
    %1909 = vmatprep.mubr.f32.mxu0 %v1492
    %1910 = vmatmul.mubr.f32.gmra.mrb[0].mxu0 %v1491
    %v1911 = vpop.f32.mrb[0].mxu0
    %v1912 = vadd.f32 %v1802, %v1911
    %v1913 = vpop.f32.mrb[0].mxu0
    %1914 = vmatprep.mubr.f32.mxu0 %v1494
    %1915 = vmatmul.mubr.f32.gmra.mrb[0].mxu0 %v1493
    %v1916 = vpop.f32.mrb[0].mxu0
    %v1917 = vadd.f32 %v1807, %v1916
    %v1918 = vpop.f32.mrb[0].mxu0
    %1919 = vmatprep.mubr.f32.mxu0 %v1496
    %1920 = vmatmul.mubr.f32.gmra.mrb[0].mxu0 %v1495
    %v1921 = vpop.f32.mrb[0].mxu0
    %v1922 = vadd.f32 %v1812, %v1921
    %v1923 = vpop.f32.mrb[0].mxu0
    %1924 = vmatprep.mubr.f32.mxu0 %v1498
    %1925 = vmatmul.mubr.f32.gmra.mrb[0].mxu0 %v1497
    %v1926 = vpop.f32.mrb[0].mxu0
    %v1927 = vadd.f32 %v1817, %v1926
    %v1928 = vpop.f32.mrb[0].mxu0
    %1929 = vdwg.mxu0
    %v1930 = vld [vmem:[%s25] sm:$0xff]
    %v1931 = vld [vmem:[%s25 + $0x8] sm:$0xff]
    %v1932 = vld [vmem:[%s25 + $0x10] sm:$0xff]
    %v1933 = vld [vmem:[%s25 + $0x18] sm:$0xff]
    %v1934 = vld [vmem:[%s25 + $0x20] sm:$0xff]
    %v1935 = vld [vmem:[%s25 + $0x28] sm:$0xff]
    %v1936 = vld [vmem:[%s25 + $0x30] sm:$0xff]
    %v1937 = vld [vmem:[%s25 + $0x38] sm:$0xff]
    %v1938 = vld [vmem:[%s25 + $0x40] sm:$0xff]
    %v1939 = vld [vmem:[%s25 + $0x48] sm:$0xff]
    %v1940 = vld [vmem:[%s25 + $0x50] sm:$0xff]
    %v1941 = vld [vmem:[%s25 + $0x58] sm:$0xff]
    %v1942 = vld [vmem:[%s25 + $0x60] sm:$0xff]
    %v1943 = vld [vmem:[%s25 + $0x68] sm:$0xff]
    %v1944 = vld [vmem:[%s25 + $0x70] sm:$0xff]
    %v1945 = vld [vmem:[%s25 + $0x78] sm:$0xff]
    %v1946 = vld [vmem:[%s25 + $0x80] sm:$0xff]
    %v1947 = vld [vmem:[%s25 + $0x88] sm:$0xff]
    %v1948 = vld [vmem:[%s25 + $0x90] sm:$0xff]
    %v1949 = vld [vmem:[%s25 + $0x98] sm:$0xff]
    %v1950 = vld [vmem:[%s25 + $0xa0] sm:$0xff]
    %v1951 = vld [vmem:[%s25 + $0xa8] sm:$0xff]
    %v1952 = vld [vmem:[%s25 + $0xb0] sm:$0xff]
    %v1953 = vld [vmem:[%s25 + $0xb8] sm:$0xff]
    %v1954 = vld [vmem:[%s25 + $0xc0] sm:$0xff]
    %v1955 = vld [vmem:[%s25 + $0xc8] sm:$0xff]
    %v1956 = vld [vmem:[%s25 + $0xd0] sm:$0xff]
    %v1957 = vld [vmem:[%s25 + $0xd8] sm:$0xff]
    %v1958 = vld [vmem:[%s25 + $0xe0] sm:$0xff]
    %v1959 = vld [vmem:[%s25 + $0xe8] sm:$0xff]
    %v1960 = vld [vmem:[%s25 + $0xf0] sm:$0xff]
    %v1961 = vld [vmem:[%s25 + $0xf8] sm:$0xff]
    %v1963 = vsel %vm1355, %v1672, 0
    %1965 = vmatprep.subr.mxu0 0.0
    %1966 = vmatpush1.msra.mxu0 %v1963
    %1967 = vmatprep.subr.mxu0 0.0
    %1968 = vmatpush1.msra.mxu0 0.0
    %1969 = vmatprep.subr.mxu0 0.0
    %1970 = vmatpush1.msra.mxu0 0.0
    %1971 = vmatprep.subr.mxu0 0.0
    %1972 = vmatpush1.msra.mxu0 0.0
    %1973 = vmatprep.subr.mxu0 0.0
    %1974 = vmatpush1.msra.mxu0 0.0
    %1975 = vmatprep.subr.mxu0 0.0
    %1976 = vmatpush1.msra.mxu0 0.0
    %1977 = vmatprep.subr.mxu0 0.0
    %1978 = vmatpush1.msra.mxu0 0.0
    %1979 = vmatprep.subr.mxu0 0.0
    %1980 = vmatpush1.msra.mxu0 0.0
    %1981 = vmatprep.subr.mxu0 0.0
    %1982 = vmatpush1.msra.mxu0 0.0
    %1983 = vmatprep.subr.mxu0 0.0
    %1984 = vmatpush1.msra.mxu0 0.0
    %1985 = vmatprep.subr.mxu0 0.0
    %1986 = vmatpush1.msra.mxu0 0.0
    %1987 = vmatprep.subr.mxu0 0.0
    %1988 = vmatpush1.msra.mxu0 0.0
    %1989 = vmatprep.subr.mxu0 0.0
    %1990 = vmatpush1.msra.mxu0 0.0
    %1991 = vmatprep.subr.mxu0 0.0
    %1992 = vmatpush1.msra.mxu0 0.0
    %1993 = vmatprep.subr.mxu0 0.0
    %1994 = vmatpush1.msra.mxu0 0.0
    %1995 = vmatprep.subr.mxu0 0.0
    %1996 = vmatpush1.msra.mxu0 0.0
    %1997 = vmatprep.subr.mxu0 0.0
    %1998 = vmatpush1.msra.mxu0 0.0
    %1999 = vmatprep.subr.mxu0 0.0
    %2000 = vmatpush1.msra.mxu0 0.0
    %2001 = vmatprep.subr.mxu0 0.0
    %2002 = vmatpush1.msra.mxu0 0.0
    %2003 = vmatprep.subr.mxu0 0.0
    %2004 = vmatpush1.msra.mxu0 0.0
    %2005 = vmatprep.subr.mxu0 0.0
    %2006 = vmatpush1.msra.mxu0 0.0
    %2007 = vmatprep.subr.mxu0 0.0
    %2008 = vmatpush1.msra.mxu0 0.0
    %2009 = vmatprep.subr.mxu0 0.0
    %2010 = vmatpush1.msra.mxu0 0.0
    %2011 = vmatprep.subr.mxu0 0.0
    %2012 = vmatpush1.msra.mxu0 0.0
    %2013 = vmatprep.subr.mxu0 0.0
    %2014 = vmatpush1.msra.mxu0 0.0
    %2015 = vmatprep.subr.mxu0 0.0
    %2016 = vmatpush1.msra.mxu0 0.0
    %2017 = vmatprep.subr.mxu0 0.0
    %2018 = vmatpush1.msra.mxu0 0.0
    %2019 = vmatprep.subr.mxu0 0.0
    %2020 = vmatpush1.msra.mxu0 0.0
    %2021 = vmatprep.subr.mxu0 0.0
    %2022 = vmatpush1.msra.mxu0 0.0
    %2023 = vmatprep.subr.mxu0 0.0
    %2024 = vmatpush1.msra.mxu0 0.0
    %2025 = vmatprep.subr.mxu0 0.0
    %2026 = vmatpush1.msra.mxu0 0.0
    %2027 = vmatprep.subr.mxu0 0.0
    %2028 = vmatpush1.msra.mxu0 0.0
    %2029 = vmatprep.mubr.f32.mxu0 0.0
    %2030 = vmatmul.mubr.f32.gmra.mrb[0].mxu0 %v1329
    %v2031 = vpop.f32.mrb[0].mxu0
    %v2032 = vadd.f32 0.0, %v2031
    %v2033 = vpop.f32.mrb[0].mxu0
    %2034 = vmatprep.mubr.f32.mxu0 0.0
    %2035 = vmatmul.mubr.f32.gmra.mrb[0].mxu0 %v1332
    %v2036 = vpop.f32.mrb[0].mxu0
    %v2037 = vadd.f32 0.0, %v2036
    %v2038 = vpop.f32.mrb[0].mxu0
    %2039 = vmatprep.mubr.f32.mxu0 0.0
    %2040 = vmatmul.mubr.f32.gmra.mrb[0].mxu0 %v1335
    %v2041 = vpop.f32.mrb[0].mxu0
    %v2042 = vadd.f32 0.0, %v2041
    %v2043 = vpop.f32.mrb[0].mxu0
    %2044 = vmatprep.mubr.f32.mxu0 0.0
    %2045 = vmatmul.mubr.f32.gmra.mrb[0].mxu0 %v1338
    %v2046 = vpop.f32.mrb[0].mxu0
    %v2047 = vadd.f32 0.0, %v2046
    %v2048 = vpop.f32.mrb[0].mxu0
    %2049 = vmatprep.mubr.f32.mxu0 0.0
    %2050 = vmatmul.mubr.f32.gmra.mrb[0].mxu0 %v1341
    %v2051 = vpop.f32.mrb[0].mxu0
    %v2052 = vadd.f32 0.0, %v2051
    %v2053 = vpop.f32.mrb[0].mxu0
    %2054 = vmatprep.mubr.f32.mxu0 0.0
    %2055 = vmatmul.mubr.f32.gmra.mrb[0].mxu0 %v1344
    %v2056 = vpop.f32.mrb[0].mxu0
    %v2057 = vadd.f32 0.0, %v2056
    %v2058 = vpop.f32.mrb[0].mxu0
    %2059 = vmatprep.mubr.f32.mxu0 0.0
    %2060 = vmatmul.mubr.f32.gmra.mrb[0].mxu0 %v1347
    %v2061 = vpop.f32.mrb[0].mxu0
    %v2062 = vadd.f32 0.0, %v2061
    %v2063 = vpop.f32.mrb[0].mxu0
    %2064 = vmatprep.mubr.f32.mxu0 0.0
    %2065 = vmatmul.mubr.f32.gmra.mrb[0].mxu0 %v1350
    %v2066 = vpop.f32.mrb[0].mxu0
    %v2067 = vadd.f32 0.0, %v2066
    %v2068 = vpop.f32.mrb[0].mxu0
    %2069 = vmatprep.mubr.f32.mxu0 0.0
    %2070 = vmatmul.mubr.f32.gmra.mrb[0].mxu0 %v1353
    %v2071 = vpop.f32.mrb[0].mxu0
    %v2072 = vadd.f32 0.0, %v2071
    %v2073 = vpop.f32.mrb[0].mxu0
    %2074 = vdwg.mxu0
    %2075 = vmatprep.subr.mxu0 0.0
    %2076 = vmatpush1.msra.mxu0 %v1930
    %2077 = vmatprep.subr.mxu0 0.0
    %2078 = vmatpush1.msra.mxu0 %v1931
    %2079 = vmatprep.subr.mxu0 0.0
    %2080 = vmatpush1.msra.mxu0 %v1932
    %2081 = vmatprep.subr.mxu0 0.0
    %2082 = vmatpush1.msra.mxu0 %v1933
    %2083 = vmatprep.subr.mxu0 0.0
    %2084 = vmatpush1.msra.mxu0 %v1934
    %2085 = vmatprep.subr.mxu0 0.0
    %2086 = vmatpush1.msra.mxu0 %v1935
    %2087 = vmatprep.subr.mxu0 0.0
    %2088 = vmatpush1.msra.mxu0 %v1936
    %2089 = vmatprep.subr.mxu0 0.0
    %2090 = vmatpush1.msra.mxu0 %v1937
    %2091 = vmatprep.subr.mxu0 0.0
    %2092 = vmatpush1.msra.mxu0 %v1938
    %2093 = vmatprep.subr.mxu0 0.0
    %2094 = vmatpush1.msra.mxu0 %v1939
    %2095 = vmatprep.subr.mxu0 0.0
    %2096 = vmatpush1.msra.mxu0 %v1940
    %2097 = vmatprep.subr.mxu0 0.0
    %2098 = vmatpush1.msra.mxu0 %v1941
    %2099 = vmatprep.subr.mxu0 0.0
    %2100 = vmatpush1.msra.mxu0 %v1942
    %2101 = vmatprep.subr.mxu0 0.0
    %2102 = vmatpush1.msra.mxu0 %v1943
    %2103 = vmatprep.subr.mxu0 0.0
    %2104 = vmatpush1.msra.mxu0 %v1944
    %2105 = vmatprep.subr.mxu0 0.0
    %2106 = vmatpush1.msra.mxu0 %v1945
    %2107 = vmatprep.subr.mxu0 0.0
    %2108 = vmatpush1.msra.mxu0 %v1946
    %2109 = vmatprep.subr.mxu0 0.0
    %2110 = vmatpush1.msra.mxu0 %v1947
    %2111 = vmatprep.subr.mxu0 0.0
    %2112 = vmatpush1.msra.mxu0 %v1948
    %2113 = vmatprep.subr.mxu0 0.0
    %2114 = vmatpush1.msra.mxu0 %v1949
    %2115 = vmatprep.subr.mxu0 0.0
    %2116 = vmatpush1.msra.mxu0 %v1950
    %2117 = vmatprep.subr.mxu0 0.0
    %2118 = vmatpush1.msra.mxu0 %v1951
    %2119 = vmatprep.subr.mxu0 0.0
    %2120 = vmatpush1.msra.mxu0 %v1952
    %2121 = vmatprep.subr.mxu0 0.0
    %2122 = vmatpush1.msra.mxu0 %v1953
    %2123 = vmatprep.subr.mxu0 0.0
    %2124 = vmatpush1.msra.mxu0 %v1954
    %2125 = vmatprep.subr.mxu0 0.0
    %2126 = vmatpush1.msra.mxu0 %v1955
    %2127 = vmatprep.subr.mxu0 0.0
    %2128 = vmatpush1.msra.mxu0 %v1956
    %2129 = vmatprep.subr.mxu0 0.0
    %2130 = vmatpush1.msra.mxu0 %v1957
    %2131 = vmatprep.subr.mxu0 0.0
    %2132 = vmatpush1.msra.mxu0 %v1958
    %2133 = vmatprep.subr.mxu0 0.0
    %2134 = vmatpush1.msra.mxu0 %v1959
    %2135 = vmatprep.subr.mxu0 0.0
    %2136 = vmatpush1.msra.mxu0 %v1960
    %2137 = vmatprep.subr.mxu0 0.0
    %2138 = vmatpush1.msra.mxu0 %v1961
    %2139 = vmatprep.mubr.f32.mxu0 %v1482
    %2140 = vmatmul.mubr.f32.gmra.mrb[0].mxu0 %v1481
    %v2141 = vpop.f32.mrb[0].mxu0
    %v2142 = vadd.f32 %v2032, %v2141
    %v2143 = vpop.f32.mrb[0].mxu0
    %2144 = vmatprep.mubr.f32.mxu0 %v1484
    %2145 = vmatmul.mubr.f32.gmra.mrb[0].mxu0 %v1483
    %v2146 = vpop.f32.mrb[0].mxu0
    %v2147 = vadd.f32 %v2037, %v2146
    %v2148 = vpop.f32.mrb[0].mxu0
    %2149 = vmatprep.mubr.f32.mxu0 %v1486
    %2150 = vmatmul.mubr.f32.gmra.mrb[0].mxu0 %v1485
    %v2151 = vpop.f32.mrb[0].mxu0
    %v2152 = vadd.f32 %v2042, %v2151
    %v2153 = vpop.f32.mrb[0].mxu0
    %2154 = vmatprep.mubr.f32.mxu0 %v1488
    %2155 = vmatmul.mubr.f32.gmra.mrb[0].mxu0 %v1487
    %v2156 = vpop.f32.mrb[0].mxu0
    %v2157 = vadd.f32 %v2047, %v2156
    %v2158 = vpop.f32.mrb[0].mxu0
    %2159 = vmatprep.mubr.f32.mxu0 %v1490
    %2160 = vmatmul.mubr.f32.gmra.mrb[0].mxu0 %v1489
    %v2161 = vpop.f32.mrb[0].mxu0
    %v2162 = vadd.f32 %v2052, %v2161
    %v2163 = vpop.f32.mrb[0].mxu0
    %2164 = vmatprep.mubr.f32.mxu0 %v1492
    %2165 = vmatmul.mubr.f32.gmra.mrb[0].mxu0 %v1491
    %v2166 = vpop.f32.mrb[0].mxu0
    %v2167 = vadd.f32 %v2057, %v2166
    %v2168 = vpop.f32.mrb[0].mxu0
    %2169 = vmatprep.mubr.f32.mxu0 %v1494
    %2170 = vmatmul.mubr.f32.gmra.mrb[0].mxu0 %v1493
    %v2171 = vpop.f32.mrb[0].mxu0
    %v2172 = vadd.f32 %v2062, %v2171
    %v2173 = vpop.f32.mrb[0].mxu0
    %2174 = vmatprep.mubr.f32.mxu0 %v1496
    %2175 = vmatmul.mubr.f32.gmra.mrb[0].mxu0 %v1495
    %v2176 = vpop.f32.mrb[0].mxu0
    %v2177 = vadd.f32 %v2067, %v2176
    %v2178 = vpop.f32.mrb[0].mxu0
    %2179 = vmatprep.mubr.f32.mxu0 %v1498
    %2180 = vmatmul.mubr.f32.gmra.mrb[0].mxu0 %v1497
    %v2181 = vpop.f32.mrb[0].mxu0
    %v2182 = vadd.f32 %v2072, %v2181
    %v2183 = vpop.f32.mrb[0].mxu0
    %2184 = vdwg.mxu0
    %v2185 = vtanh.pop %v1887
    %v2186 = vtanh.pop %v1892
    %v2187 = vtanh.pop %v1897
    %v2188 = vtanh.pop %v1902
    %v2189 = vtanh.pop %v1907
    %v2190 = vtanh.pop %v1912
    %v2191 = vtanh.pop %v1917
    %v2192 = vtanh.pop %v1922
    %v2193 = vtanh.pop %v1927
    %v2194 = vxor.u32 %v2142, 2147483648
    %v2195 = vxor.u32 %v2147, 2147483648
    %v2196 = vxor.u32 %v2152, 2147483648
    %v2197 = vxor.u32 %v2157, 2147483648
    %v2198 = vxor.u32 %v2162, 2147483648
    %v2199 = vxor.u32 %v2167, 2147483648
    %v2200 = vxor.u32 %v2172, 2147483648
    %v2201 = vxor.u32 %v2177, 2147483648
    %v2202 = vxor.u32 %v2182, 2147483648
    %v2203 = vmul.f32 %v2194, 1.442695
    %v2204 = vpow.pop %v2203
    %v2205 = vmul.f32 %v2195, 1.442695
    %v2206 = vpow.pop %v2205
    %v2207 = vmul.f32 %v2196, 1.442695
    %v2208 = vpow.pop %v2207
    %v2209 = vmul.f32 %v2197, 1.442695
    %v2210 = vpow.pop %v2209
    %v2211 = vmul.f32 %v2198, 1.442695
    %v2212 = vpow.pop %v2211
    %v2213 = vmul.f32 %v2199, 1.442695
    %v2214 = vpow.pop %v2213
    %v2215 = vmul.f32 %v2200, 1.442695
    %v2216 = vpow.pop %v2215
    %v2217 = vmul.f32 %v2201, 1.442695
    %v2218 = vpow.pop %v2217
    %v2219 = vmul.f32 %v2202, 1.442695
    %v2220 = vpow.pop %v2219
    %v2221 = vadd.f32 %v2204, 1.0
    %v2222 = vadd.f32 %v2206, 1.0
    %v2223 = vadd.f32 %v2208, 1.0
    %v2224 = vadd.f32 %v2210, 1.0
    %v2225 = vadd.f32 %v2212, 1.0
    %v2226 = vadd.f32 %v2214, 1.0
    %v2227 = vadd.f32 %v2216, 1.0
    %v2228 = vadd.f32 %v2218, 1.0
    %v2229 = vadd.f32 %v2220, 1.0
    %v2230 = vrcp.pop %v2221
    %v2231 = vmul.f32 1.0, %v2230
    %v2232 = vrcp.pop %v2222
    %v2233 = vmul.f32 1.0, %v2232
    %v2234 = vrcp.pop %v2223
    %v2235 = vmul.f32 1.0, %v2234
    %v2236 = vrcp.pop %v2224
    %v2237 = vmul.f32 1.0, %v2236
    %v2238 = vrcp.pop %v2225
    %v2239 = vmul.f32 1.0, %v2238
    %v2240 = vrcp.pop %v2226
    %v2241 = vmul.f32 1.0, %v2240
    %v2242 = vrcp.pop %v2227
    %v2243 = vmul.f32 1.0, %v2242
    %v2244 = vrcp.pop %v2228
    %v2245 = vmul.f32 1.0, %v2244
    %v2246 = vrcp.pop %v2229
    %v2247 = vmul.f32 1.0, %v2246
    %v2248 = vmul.f32 %v2185, %v2231
    %v2249 = vmul.f32 %v2186, %v2233
    %v2250 = vmul.f32 %v2187, %v2235
    %v2251 = vmul.f32 %v2188, %v2237
    %v2252 = vmul.f32 %v2189, %v2239
    %v2253 = vmul.f32 %v2190, %v2241
    %v2254 = vmul.f32 %v2191, %v2243
    %v2255 = vmul.f32 %v2192, %v2245
    %v2256 = vmul.f32 %v2193, %v2247
    %v2257 = vld [vmem:[%s31] sm:$0xff]
    %v2258 = vld [vmem:[%s31 + $0x8] sm:$0xff]
    %v2259 = vld [vmem:[%s31 + $0x10] sm:$0xff]
    %v2260 = vld [vmem:[%s31 + $0x18] sm:$0xff]
    %v2261 = vld [vmem:[%s31 + $0x20] sm:$0xff]
    %v2262 = vld [vmem:[%s31 + $0x28] sm:$0xff]
    %v2263 = vld [vmem:[%s31 + $0x30] sm:$0xff]
    %v2264 = vld [vmem:[%s31 + $0x38] sm:$0xff]
    %v2265 = vld [vmem:[#allocation3] sm:$0x1]
    %v2267 = vlaneseq
    %v2268 = vshrl.u32 %v2267, 7
    %v2269 = vsub.s32 0, %v2268
    %v2270 = vrot.slane %v2265, %v2269
    %v2273 = vsel %vm345, %v2248, 0
    %v2276 = vsel %vm345, %v2249, 0
    %v2279 = vsel %vm345, %v2250, 0
    %v2282 = vsel %vm345, %v2251, 0
    %v2285 = vsel %vm345, %v2252, 0
    %v2288 = vsel %vm345, %v2253, 0
    %v2291 = vsel %vm345, %v2254, 0
    %v2294 = vsel %vm345, %v2255, 0
    %v2297 = vsel %vm345, %v2256, 0
    %2299 = vmatprep.subr.mxu0 0.0
    %2300 = vmatpush1.msra.mxu0 %v2257
    %2301 = vmatprep.subr.mxu0 0.0
    %2302 = vmatpush1.msra.mxu0 %v2258
    %2303 = vmatprep.subr.mxu0 0.0
    %2304 = vmatpush1.msra.mxu0 %v2259
    %2305 = vmatprep.subr.mxu0 0.0
    %2306 = vmatpush1.msra.mxu0 %v2260
    %2307 = vmatprep.subr.mxu0 0.0
    %2308 = vmatpush1.msra.mxu0 %v2261
    %2309 = vmatprep.subr.mxu0 0.0
    %2310 = vmatpush1.msra.mxu0 %v2262
    %2311 = vmatprep.subr.mxu0 0.0
    %2312 = vmatpush1.msra.mxu0 %v2263
    %2313 = vmatprep.subr.mxu0 0.0
    %2314 = vmatpush1.msra.mxu0 %v2264
    %2315 = vmatprep.subr.mxu0 0.0
    %2316 = vmatpush1.msra.mxu0 0.0
    %2317 = vmatprep.subr.mxu0 0.0
    %2318 = vmatpush1.msra.mxu0 0.0
    %2319 = vmatprep.subr.mxu0 0.0
    %2320 = vmatpush1.msra.mxu0 0.0
    %2321 = vmatprep.subr.mxu0 0.0
    %2322 = vmatpush1.msra.mxu0 0.0
    %2323 = vmatprep.subr.mxu0 0.0
    %2324 = vmatpush1.msra.mxu0 0.0
    %2325 = vmatprep.subr.mxu0 0.0
    %2326 = vmatpush1.msra.mxu0 0.0
    %2327 = vmatprep.subr.mxu0 0.0
    %2328 = vmatpush1.msra.mxu0 0.0
    %2329 = vmatprep.subr.mxu0 0.0
    %2330 = vmatpush1.msra.mxu0 0.0
    %2331 = vmatprep.subr.mxu0 0.0
    %2332 = vmatpush1.msra.mxu0 0.0
    %2333 = vmatprep.subr.mxu0 0.0
    %2334 = vmatpush1.msra.mxu0 0.0
    %2335 = vmatprep.subr.mxu0 0.0
    %2336 = vmatpush1.msra.mxu0 0.0
    %2337 = vmatprep.subr.mxu0 0.0
    %2338 = vmatpush1.msra.mxu0 0.0
    %2339 = vmatprep.subr.mxu0 0.0
    %2340 = vmatpush1.msra.mxu0 0.0
    %2341 = vmatprep.subr.mxu0 0.0
    %2342 = vmatpush1.msra.mxu0 0.0
    %2343 = vmatprep.subr.mxu0 0.0
    %2344 = vmatpush1.msra.mxu0 0.0
    %2345 = vmatprep.subr.mxu0 0.0
    %2346 = vmatpush1.msra.mxu0 0.0
    %2347 = vmatprep.subr.mxu0 0.0
    %2348 = vmatpush1.msra.mxu0 0.0
    %2349 = vmatprep.subr.mxu0 0.0
    %2350 = vmatpush1.msra.mxu0 0.0
    %2351 = vmatprep.subr.mxu0 0.0
    %2352 = vmatpush1.msra.mxu0 0.0
    %2353 = vmatprep.subr.mxu0 0.0
    %2354 = vmatpush1.msra.mxu0 0.0
    %2355 = vmatprep.subr.mxu0 0.0
    %2356 = vmatpush1.msra.mxu0 0.0
    %2357 = vmatprep.subr.mxu0 0.0
    %2358 = vmatpush1.msra.mxu0 0.0
    %2359 = vmatprep.subr.mxu0 0.0
    %2360 = vmatpush1.msra.mxu0 0.0
    %2361 = vmatprep.subr.mxu0 0.0
    %2362 = vmatpush1.msra.mxu0 0.0
    %2363 = vmatprep.mubr.f32.mxu0 0.0
    %2364 = vmatmul.mubr.f32.gmra.mrb[0].mxu0 %v2273
    %v2365 = vpop.f32.mrb[0].mxu0
    %v2366 = vadd.f32 %v2270, %v2365
    %v2367 = vpop.f32.mrb[0].mxu0
    %2368 = vmatprep.mubr.f32.mxu0 0.0
    %2369 = vmatmul.mubr.f32.gmra.mrb[0].mxu0 %v2276
    %v2370 = vpop.f32.mrb[0].mxu0
    %v2371 = vadd.f32 %v2270, %v2370
    %v2372 = vpop.f32.mrb[0].mxu0
    %2373 = vmatprep.mubr.f32.mxu0 0.0
    %2374 = vmatmul.mubr.f32.gmra.mrb[0].mxu0 %v2279
    %v2375 = vpop.f32.mrb[0].mxu0
    %v2376 = vadd.f32 %v2270, %v2375
    %v2377 = vpop.f32.mrb[0].mxu0
    %2378 = vmatprep.mubr.f32.mxu0 0.0
    %2379 = vmatmul.mubr.f32.gmra.mrb[0].mxu0 %v2282
    %v2380 = vpop.f32.mrb[0].mxu0
    %v2381 = vadd.f32 %v2270, %v2380
    %v2382 = vpop.f32.mrb[0].mxu0
    %2383 = vmatprep.mubr.f32.mxu0 0.0
    %2384 = vmatmul.mubr.f32.gmra.mrb[0].mxu0 %v2285
    %v2385 = vpop.f32.mrb[0].mxu0
    %v2386 = vadd.f32 %v2270, %v2385
    %v2387 = vpop.f32.mrb[0].mxu0
    %2388 = vmatprep.mubr.f32.mxu0 0.0
    %2389 = vmatmul.mubr.f32.gmra.mrb[0].mxu0 %v2288
    %v2390 = vpop.f32.mrb[0].mxu0
    %v2391 = vadd.f32 %v2270, %v2390
    %v2392 = vpop.f32.mrb[0].mxu0
    %2393 = vmatprep.mubr.f32.mxu0 0.0
    %2394 = vmatmul.mubr.f32.gmra.mrb[0].mxu0 %v2291
    %v2395 = vpop.f32.mrb[0].mxu0
    %v2396 = vadd.f32 %v2270, %v2395
    %v2397 = vpop.f32.mrb[0].mxu0
    %2398 = vmatprep.mubr.f32.mxu0 0.0
    %2399 = vmatmul.mubr.f32.gmra.mrb[0].mxu0 %v2294
    %v2400 = vpop.f32.mrb[0].mxu0
    %v2401 = vadd.f32 %v2270, %v2400
    %v2402 = vpop.f32.mrb[0].mxu0
    %2403 = vmatprep.mubr.f32.mxu0 0.0
    %2404 = vmatmul.mubr.f32.gmra.mrb[0].mxu0 %v2297
    %v2405 = vpop.f32.mrb[0].mxu0
    %v2406 = vadd.f32 %v2270, %v2405
    %v2407 = vpop.f32.mrb[0].mxu0
    %2408 = vdwg.mxu0
    %vm2409 = vcmask 7168
    %v2410 = vsel %vm2409, %v2366, -inf
    %v2411 = vsel %vm2409, %v2371, -inf
    %v2412 = vsel %vm2409, %v2376, -inf
    %v2413 = vsel %vm2409, %v2381, -inf
    %v2414 = vsel %vm2409, %v2386, -inf
    %v2415 = vmax.f32 %v2410, %v2414
    %v2416 = vsel %vm2409, %v2391, -inf
    %v2417 = vmax.f32 %v2411, %v2416
    %v2418 = vsel %vm2409, %v2396, -inf
    %v2419 = vmax.f32 %v2412, %v2418
    %v2420 = vsel %vm2409, %v2401, -inf
    %v2421 = vmax.f32 %v2413, %v2420
    %v2422 = vsel %vm2409, %v2406, -inf
    %v2423 = vmax.f32 %v2415, %v2422
    %v2424 = vmax.f32 %v2423, %v2417
    %v2425 = vmax.f32 %v2419, %v2421
    %v2426 = vmax.f32 %v2424, %v2425
    %v2427 = vrot.slane %v2426, 4
    %v2428 = vmax.f32 %v2426, %v2427
    %v2429 = vrot.slane %v2428, 2
    %v2430 = vmax.f32 %v2428, %v2429
    %v2431 = vrot.slane %v2430, 1
    %v2432 = vmax.f32 %v2430, %v2431
    %v2433 = vsub.f32 %v2366, %v2432
    %v2434 = vsub.f32 %v2371, %v2432
    %v2435 = vsub.f32 %v2376, %v2432
    %v2436 = vsub.f32 %v2381, %v2432
    %v2437 = vsub.f32 %v2386, %v2432
    %v2438 = vsub.f32 %v2391, %v2432
    %v2439 = vsub.f32 %v2396, %v2432
    %v2440 = vsub.f32 %v2401, %v2432
    %v2441 = vsub.f32 %v2406, %v2432
    %v2442 = vmul.f32 %v2433, 1.442695
    %v2443 = vpow.pop %v2442
    %v2444 = vmul.f32 %v2434, 1.442695
    %v2445 = vpow.pop %v2444
    %v2446 = vmul.f32 %v2435, 1.442695
    %v2447 = vpow.pop %v2446
    %v2448 = vmul.f32 %v2436, 1.442695
    %v2449 = vpow.pop %v2448
    %v2450 = vmul.f32 %v2437, 1.442695
    %v2451 = vpow.pop %v2450
    %v2452 = vmul.f32 %v2438, 1.442695
    %v2453 = vpow.pop %v2452
    %v2454 = vmul.f32 %v2439, 1.442695
    %v2455 = vpow.pop %v2454
    %v2456 = vmul.f32 %v2440, 1.442695
    %v2457 = vpow.pop %v2456
    %v2458 = vmul.f32 %v2441, 1.442695
    %v2459 = vpow.pop %v2458
    %2460 = vmatprep.subr.mxu0 0.0
    %2461 = vmatpush1.msra.mxu0 %v2443
    %2462 = vmatprep.subr.mxu0 0.0
    %2463 = vmatpush1.msra.mxu0 %v2445
    %2464 = vmatprep.subr.mxu0 0.0
    %2465 = vmatpush1.msra.mxu0 %v2447
    %2466 = vmatprep.subr.mxu0 0.0
    %2467 = vmatpush1.msra.mxu0 %v2449
    %2468 = vmatprep.subr.mxu0 0.0
    %2469 = vmatpush1.msra.mxu0 %v2451
    %2470 = vmatprep.subr.mxu0 0.0
    %2471 = vmatpush1.msra.mxu0 %v2453
    %2472 = vmatprep.subr.mxu0 0.0
    %2473 = vmatpush1.msra.mxu0 %v2455
    %2474 = vmatprep.subr.mxu0 0.0
    %2475 = vmatpush1.msra.mxu0 %v2457
    %2476 = vmatprep.subr.mxu0 0.0
    %2477 = vmatpush1.msra.mxu0 %v2459
    %2478 = vmatprep.subr.mxu0 0.0
    %2479 = vmatpush1.msra.mxu0 0.0
    %2480 = vmatprep.subr.mxu0 0.0
    %2481 = vmatpush1.msra.mxu0 0.0
    %2482 = vmatprep.subr.mxu0 0.0
    %2483 = vmatpush1.msra.mxu0 0.0
    %2484 = vmatprep.subr.mxu0 0.0
    %2485 = vmatpush1.msra.mxu0 0.0
    %2486 = vmatprep.subr.mxu0 0.0
    %2487 = vmatpush1.msra.mxu0 0.0
    %2488 = vmatprep.subr.mxu0 0.0
    %2489 = vmatpush1.msra.mxu0 0.0
    %2490 = vmatprep.subr.mxu0 0.0
    %2491 = vmatpush1.msra.mxu0 0.0
    %2492 = vmatprep.subr.mxu0 0.0
    %2493 = vmatpush1.msra.mxu0 0.0
    %2494 = vmatprep.subr.mxu0 0.0
    %2495 = vmatpush1.msra.mxu0 0.0
    %2496 = vmatprep.subr.mxu0 0.0
    %2497 = vmatpush1.msra.mxu0 0.0
    %2498 = vmatprep.subr.mxu0 0.0
    %2499 = vmatpush1.msra.mxu0 0.0
    %2500 = vmatprep.subr.mxu0 0.0
    %2501 = vmatpush1.msra.mxu0 0.0
    %2502 = vmatprep.subr.mxu0 0.0
    %2503 = vmatpush1.msra.mxu0 0.0
    %2504 = vmatprep.subr.mxu0 0.0
    %2505 = vmatpush1.msra.mxu0 0.0
    %2506 = vmatprep.subr.mxu0 0.0
    %2507 = vmatpush1.msra.mxu0 0.0
    %2508 = vmatprep.subr.mxu0 0.0
    %2509 = vmatpush1.msra.mxu0 0.0
    %2510 = vmatprep.subr.mxu0 0.0
    %2511 = vmatpush1.msra.mxu0 0.0
    %2512 = vmatprep.subr.mxu0 0.0
    %2513 = vmatpush1.msra.mxu0 0.0
    %2514 = vmatprep.subr.mxu0 0.0
    %2515 = vmatpush1.msra.mxu0 0.0
    %2516 = vmatprep.subr.mxu0 0.0
    %2517 = vmatpush1.msra.mxu0 0.0
    %2518 = vmatprep.subr.mxu0 0.0
    %2519 = vmatpush1.msra.mxu0 0.0
    %2520 = vmatprep.subr.mxu0 0.0
    %2521 = vmatpush1.msra.mxu0 0.0
    %2522 = vmatprep.subr.mxu0 0.0
    %2523 = vmatpush1.msra.mxu0 0.0
    %2524 = vmatprep.mubr.f32.mxu0 0.0
    %2525 = vmatmul.mubr.f32.gmra.mrb[0].mxu0 %v1252
    %v2526 = vpop.f32.mrb[0].mxu0
    %v2527 = vadd.f32 0.0, %v2526
    %v2528 = vpop.f32.mrb[0].mxu0
    %2529 = vdwg.mxu0
    %v2530 = vrcp.pop %v2527
    %v2531 = vmul.f32 1.0, %v2530
    %v2533 = vsel %vm1355, %v2531, 0
    %2535 = vmatprep.subr.mxu0 0.0
    %2536 = vmatpush1.msra.mxu0 %v2533
    %2537 = vmatprep.subr.mxu0 0.0
    %2538 = vmatpush1.msra.mxu0 0.0
    %2539 = vmatprep.subr.mxu0 0.0
    %2540 = vmatpush1.msra.mxu0 0.0
    %2541 = vmatprep.subr.mxu0 0.0
    %2542 = vmatpush1.msra.mxu0 0.0
    %2543 = vmatprep.subr.mxu0 0.0
    %2544 = vmatpush1.msra.mxu0 0.0
    %2545 = vmatprep.subr.mxu0 0.0
    %2546 = vmatpush1.msra.mxu0 0.0
    %2547 = vmatprep.subr.mxu0 0.0
    %2548 = vmatpush1.msra.mxu0 0.0
    %2549 = vmatprep.subr.mxu0 0.0
    %2550 = vmatpush1.msra.mxu0 0.0
    %2551 = vmatprep.subr.mxu0 0.0
    %2552 = vmatpush1.msra.mxu0 0.0
    %2553 = vmatprep.subr.mxu0 0.0
    %2554 = vmatpush1.msra.mxu0 0.0
    %2555 = vmatprep.subr.mxu0 0.0
    %2556 = vmatpush1.msra.mxu0 0.0
    %2557 = vmatprep.subr.mxu0 0.0
    %2558 = vmatpush1.msra.mxu0 0.0
    %2559 = vmatprep.subr.mxu0 0.0
    %2560 = vmatpush1.msra.mxu0 0.0
    %2561 = vmatprep.subr.mxu0 0.0
    %2562 = vmatpush1.msra.mxu0 0.0
    %2563 = vmatprep.subr.mxu0 0.0
    %2564 = vmatpush1.msra.mxu0 0.0
    %2565 = vmatprep.subr.mxu0 0.0
    %2566 = vmatpush1.msra.mxu0 0.0
    %2567 = vmatprep.subr.mxu0 0.0
    %2568 = vmatpush1.msra.mxu0 0.0
    %2569 = vmatprep.subr.mxu0 0.0
    %2570 = vmatpush1.msra.mxu0 0.0
    %2571 = vmatprep.subr.mxu0 0.0
    %2572 = vmatpush1.msra.mxu0 0.0
    %2573 = vmatprep.subr.mxu0 0.0
    %2574 = vmatpush1.msra.mxu0 0.0
    %2575 = vmatprep.subr.mxu0 0.0
    %2576 = vmatpush1.msra.mxu0 0.0
    %2577 = vmatprep.subr.mxu0 0.0
    %2578 = vmatpush1.msra.mxu0 0.0
    %2579 = vmatprep.subr.mxu0 0.0
    %2580 = vmatpush1.msra.mxu0 0.0
    %2581 = vmatprep.subr.mxu0 0.0
    %2582 = vmatpush1.msra.mxu0 0.0
    %2583 = vmatprep.subr.mxu0 0.0
    %2584 = vmatpush1.msra.mxu0 0.0
    %2585 = vmatprep.subr.mxu0 0.0
    %2586 = vmatpush1.msra.mxu0 0.0
    %2587 = vmatprep.subr.mxu0 0.0
    %2588 = vmatpush1.msra.mxu0 0.0
    %2589 = vmatprep.subr.mxu0 0.0
    %2590 = vmatpush1.msra.mxu0 0.0
    %2591 = vmatprep.subr.mxu0 0.0
    %2592 = vmatpush1.msra.mxu0 0.0
    %2593 = vmatprep.subr.mxu0 0.0
    %2594 = vmatpush1.msra.mxu0 0.0
    %2595 = vmatprep.subr.mxu0 0.0
    %2596 = vmatpush1.msra.mxu0 0.0
    %2597 = vmatprep.subr.mxu0 0.0
    %2598 = vmatpush1.msra.mxu0 0.0
    %2599 = vmatprep.mubr.f32.mxu0 0.0
    %2600 = vmatmul.mubr.f32.gmra.mrb[0].mxu0 %v1329
    %v2601 = vpop.f32.mrb[0].mxu0
    %v2602 = vadd.f32 0.0, %v2601
    %v2603 = vpop.f32.mrb[0].mxu0
    %2604 = vmatprep.mubr.f32.mxu0 0.0
    %2605 = vmatmul.mubr.f32.gmra.mrb[0].mxu0 %v1332
    %v2606 = vpop.f32.mrb[0].mxu0
    %v2607 = vadd.f32 0.0, %v2606
    %v2608 = vpop.f32.mrb[0].mxu0
    %2609 = vmatprep.mubr.f32.mxu0 0.0
    %2610 = vmatmul.mubr.f32.gmra.mrb[0].mxu0 %v1335
    %v2611 = vpop.f32.mrb[0].mxu0
    %v2612 = vadd.f32 0.0, %v2611
    %v2613 = vpop.f32.mrb[0].mxu0
    %2614 = vmatprep.mubr.f32.mxu0 0.0
    %2615 = vmatmul.mubr.f32.gmra.mrb[0].mxu0 %v1338
    %v2616 = vpop.f32.mrb[0].mxu0
    %v2617 = vadd.f32 0.0, %v2616
    %v2618 = vpop.f32.mrb[0].mxu0
    %2619 = vmatprep.mubr.f32.mxu0 0.0
    %2620 = vmatmul.mubr.f32.gmra.mrb[0].mxu0 %v1341
    %v2621 = vpop.f32.mrb[0].mxu0
    %v2622 = vadd.f32 0.0, %v2621
    %v2623 = vpop.f32.mrb[0].mxu0
    %2624 = vmatprep.mubr.f32.mxu0 0.0
    %2625 = vmatmul.mubr.f32.gmra.mrb[0].mxu0 %v1344
    %v2626 = vpop.f32.mrb[0].mxu0
    %v2627 = vadd.f32 0.0, %v2626
    %v2628 = vpop.f32.mrb[0].mxu0
    %2629 = vmatprep.mubr.f32.mxu0 0.0
    %2630 = vmatmul.mubr.f32.gmra.mrb[0].mxu0 %v1347
    %v2631 = vpop.f32.mrb[0].mxu0
    %v2632 = vadd.f32 0.0, %v2631
    %v2633 = vpop.f32.mrb[0].mxu0
    %2634 = vmatprep.mubr.f32.mxu0 0.0
    %2635 = vmatmul.mubr.f32.gmra.mrb[0].mxu0 %v1350
    %v2636 = vpop.f32.mrb[0].mxu0
    %v2637 = vadd.f32 0.0, %v2636
    %v2638 = vpop.f32.mrb[0].mxu0
    %2639 = vmatprep.mubr.f32.mxu0 0.0
    %2640 = vmatmul.mubr.f32.gmra.mrb[0].mxu0 %v1353
    %v2641 = vpop.f32.mrb[0].mxu0
    %v2642 = vadd.f32 0.0, %v2641
    %v2643 = vpop.f32.mrb[0].mxu0
    %2644 = vdwg.mxu0
    %v2645 = vmul.f32 %v2443, %v2602
    %v2646 = vmul.f32 %v2445, %v2607
    %v2647 = vmul.f32 %v2447, %v2612
    %v2648 = vmul.f32 %v2449, %v2617
    %v2649 = vmul.f32 %v2451, %v2622
    %v2650 = vmul.f32 %v2453, %v2627
    %v2651 = vmul.f32 %v2455, %v2632
    %v2652 = vmul.f32 %v2457, %v2637
    %v2653 = vmul.f32 %v2459, %v2642
    %2655 = vset.pattern.permute.xlu0 0
    %2656 = vperm.xlu0 %2655, %v2645
    %v2657 = vpop.permute.xlu0 %2656
    %2660 = vset.pattern.permute.xlu0 0
    %2661 = vperm.xlu0 %2660, %v2646
    %v2662 = vpop.permute.xlu0 %2661
    %2665 = vset.pattern.permute.xlu0 0
    %2666 = vperm.xlu0 %2665, %v2647
    %v2667 = vpop.permute.xlu0 %2666
    %2670 = vset.pattern.permute.xlu0 0
    %2671 = vperm.xlu0 %2670, %v2648
    %v2672 = vpop.permute.xlu0 %2671
    %2675 = vset.pattern.permute.xlu0 0
    %2676 = vperm.xlu0 %2675, %v2649
    %v2677 = vpop.permute.xlu0 %2676
    %2680 = vset.pattern.permute.xlu0 0
    %2681 = vperm.xlu0 %2680, %v2650
    %v2682 = vpop.permute.xlu0 %2681
    %2685 = vset.pattern.permute.xlu0 0
    %2686 = vperm.xlu0 %2685, %v2651
    %v2687 = vpop.permute.xlu0 %2686
    %2690 = vset.pattern.permute.xlu0 0
    %2691 = vperm.xlu0 %2690, %v2652
    %v2692 = vpop.permute.xlu0 %2691
    %2695 = vset.pattern.permute.xlu0 0
    %2696 = vperm.xlu0 %2695, %v2653
    %v2697 = vpop.permute.xlu0 %2696
    %v2699 = vmul.f32 %v2657, %v1481
    %v2700 = vmul.f32 %v2657, %v1482
    %v2701 = vmul.f32 %v2662, %v1483
    %v2702 = vmul.f32 %v2662, %v1484
    %v2703 = vmul.f32 %v2667, %v1485
    %v2704 = vmul.f32 %v2667, %v1486
    %v2705 = vmul.f32 %v2672, %v1487
    %v2706 = vmul.f32 %v2672, %v1488
    %v2707 = vmul.f32 %v2677, %v1489
    %v2708 = vmul.f32 %v2677, %v1490
    %v2709 = vmul.f32 %v2682, %v1491
    %v2710 = vmul.f32 %v2682, %v1492
    %v2711 = vmul.f32 %v2687, %v1493
    %v2712 = vmul.f32 %v2687, %v1494
    %v2713 = vmul.f32 %v2692, %v1495
    %v2714 = vmul.f32 %v2692, %v1496
    %v2715 = vmul.f32 %v2697, %v1497
    %v2716 = vmul.f32 %v2697, %v1498
    %2717 = vmatprep.subr.mxu0 %v2700
    %2718 = vmatpush1.msra.mxu0 %v2699
    %2719 = vmatprep.subr.mxu0 %v2702
    %2720 = vmatpush1.msra.mxu0 %v2701
    %2721 = vmatprep.subr.mxu0 %v2704
    %2722 = vmatpush1.msra.mxu0 %v2703
    %2723 = vmatprep.subr.mxu0 %v2706
    %2724 = vmatpush1.msra.mxu0 %v2705
    %2725 = vmatprep.subr.mxu0 %v2708
    %2726 = vmatpush1.msra.mxu0 %v2707
    %2727 = vmatprep.subr.mxu0 %v2710
    %2728 = vmatpush1.msra.mxu0 %v2709
    %2729 = vmatprep.subr.mxu0 %v2712
    %2730 = vmatpush1.msra.mxu0 %v2711
    %2731 = vmatprep.subr.mxu0 %v2714
    %2732 = vmatpush1.msra.mxu0 %v2713
    %2733 = vmatprep.subr.mxu0 %v2716
    %2734 = vmatpush1.msra.mxu0 %v2715
    %2735 = vmatprep.subr.mxu0 0.0
    %2736 = vmatpush1.msra.mxu0 0.0
    %2737 = vmatprep.subr.mxu0 0.0
    %2738 = vmatpush1.msra.mxu0 0.0
    %2739 = vmatprep.subr.mxu0 0.0
    %2740 = vmatpush1.msra.mxu0 0.0
    %2741 = vmatprep.subr.mxu0 0.0
    %2742 = vmatpush1.msra.mxu0 0.0
    %2743 = vmatprep.subr.mxu0 0.0
    %2744 = vmatpush1.msra.mxu0 0.0
    %2745 = vmatprep.subr.mxu0 0.0
    %2746 = vmatpush1.msra.mxu0 0.0
    %2747 = vmatprep.subr.mxu0 0.0
    %2748 = vmatpush1.msra.mxu0 0.0
    %2749 = vmatprep.subr.mxu0 0.0
    %2750 = vmatpush1.msra.mxu0 0.0
    %2751 = vmatprep.subr.mxu0 0.0
    %2752 = vmatpush1.msra.mxu0 0.0
    %2753 = vmatprep.subr.mxu0 0.0
    %2754 = vmatpush1.msra.mxu0 0.0
    %2755 = vmatprep.subr.mxu0 0.0
    %2756 = vmatpush1.msra.mxu0 0.0
    %2757 = vmatprep.subr.mxu0 0.0
    %2758 = vmatpush1.msra.mxu0 0.0
    %2759 = vmatprep.subr.mxu0 0.0
    %2760 = vmatpush1.msra.mxu0 0.0
    %2761 = vmatprep.subr.mxu0 0.0
    %2762 = vmatpush1.msra.mxu0 0.0
    %2763 = vmatprep.subr.mxu0 0.0
    %2764 = vmatpush1.msra.mxu0 0.0
    %2765 = vmatprep.subr.mxu0 0.0
    %2766 = vmatpush1.msra.mxu0 0.0
    %2767 = vmatprep.subr.mxu0 0.0
    %2768 = vmatpush1.msra.mxu0 0.0
    %2769 = vmatprep.subr.mxu0 0.0
    %2770 = vmatpush1.msra.mxu0 0.0
    %2771 = vmatprep.subr.mxu0 0.0
    %2772 = vmatpush1.msra.mxu0 0.0
    %2773 = vmatprep.subr.mxu0 0.0
    %2774 = vmatpush1.msra.mxu0 0.0
    %2775 = vmatprep.subr.mxu0 0.0
    %2776 = vmatpush1.msra.mxu0 0.0
    %2777 = vmatprep.subr.mxu0 0.0
    %2778 = vmatpush1.msra.mxu0 0.0
    %2779 = vmatprep.subr.mxu0 0.0
    %2780 = vmatpush1.msra.mxu0 0.0
    %2781 = vmatprep.mubr.f32.mxu0 0.0
    %2782 = vmatmul.mubr.f32.gmra.mrb[0].mxu0 %v1252
    %v2783 = vpop.f32.mrb[0].mxu0
    %v2784 = vadd.f32 0.0, %v2783
    %v2785 = vpop.f32.mrb[0].mxu0
    %v2786 = vadd.f32 0.0, %v2785
    %2787 = vdwg.mxu0
    %v2788 = vld [vmem:[%s35] sm:$0xff]
    %v2789 = vld [vmem:[%s35 + $0x8] sm:$0xff]
    %v2790 = vld [vmem:[%s35 + $0x10] sm:$0xff]
    %v2791 = vld [vmem:[%s35 + $0x18] sm:$0xff]
    %v2792 = vld [vmem:[%s35 + $0x20] sm:$0xff]
    %v2793 = vld [vmem:[%s35 + $0x28] sm:$0xff]
    %v2794 = vld [vmem:[%s35 + $0x30] sm:$0xff]
    %v2795 = vld [vmem:[%s35 + $0x38] sm:$0xff]
    %v2796 = vld [vmem:[%s37] sm:$0x1]
    %v2798 = vlaneseq
    %v2799 = vshrl.u32 %v2798, 7
    %v2800 = vsub.s32 0, %v2799
    %v2801 = vrot.slane %v2796, %v2800
    %2803 = vmatprep.subr.mxu0 0.0
    %2804 = vmatpush1.msra.mxu0 %v2788
    %2805 = vmatprep.subr.mxu0 0.0
    %2806 = vmatpush1.msra.mxu0 %v2789
    %2807 = vmatprep.subr.mxu0 0.0
    %2808 = vmatpush1.msra.mxu0 %v2790
    %2809 = vmatprep.subr.mxu0 0.0
    %2810 = vmatpush1.msra.mxu0 %v2791
    %2811 = vmatprep.subr.mxu0 0.0
    %2812 = vmatpush1.msra.mxu0 %v2792
    %2813 = vmatprep.subr.mxu0 0.0
    %2814 = vmatpush1.msra.mxu0 %v2793
    %2815 = vmatprep.subr.mxu0 0.0
    %2816 = vmatpush1.msra.mxu0 %v2794
    %2817 = vmatprep.subr.mxu0 0.0
    %2818 = vmatpush1.msra.mxu0 %v2795
    %2819 = vmatprep.subr.mxu0 0.0
    %2820 = vmatpush1.msra.mxu0 0.0
    %2821 = vmatprep.subr.mxu0 0.0
    %2822 = vmatpush1.msra.mxu0 0.0
    %2823 = vmatprep.subr.mxu0 0.0
    %2824 = vmatpush1.msra.mxu0 0.0
    %2825 = vmatprep.subr.mxu0 0.0
    %2826 = vmatpush1.msra.mxu0 0.0
    %2827 = vmatprep.subr.mxu0 0.0
    %2828 = vmatpush1.msra.mxu0 0.0
    %2829 = vmatprep.subr.mxu0 0.0
    %2830 = vmatpush1.msra.mxu0 0.0
    %2831 = vmatprep.subr.mxu0 0.0
    %2832 = vmatpush1.msra.mxu0 0.0
    %2833 = vmatprep.subr.mxu0 0.0
    %2834 = vmatpush1.msra.mxu0 0.0
    %2835 = vmatprep.subr.mxu0 0.0
    %2836 = vmatpush1.msra.mxu0 0.0
    %2837 = vmatprep.subr.mxu0 0.0
    %2838 = vmatpush1.msra.mxu0 0.0
    %2839 = vmatprep.subr.mxu0 0.0
    %2840 = vmatpush1.msra.mxu0 0.0
    %2841 = vmatprep.subr.mxu0 0.0
    %2842 = vmatpush1.msra.mxu0 0.0
    %2843 = vmatprep.subr.mxu0 0.0
    %2844 = vmatpush1.msra.mxu0 0.0
    %2845 = vmatprep.subr.mxu0 0.0
    %2846 = vmatpush1.msra.mxu0 0.0
    %2847 = vmatprep.subr.mxu0 0.0
    %2848 = vmatpush1.msra.mxu0 0.0
    %2849 = vmatprep.subr.mxu0 0.0
    %2850 = vmatpush1.msra.mxu0 0.0
    %2851 = vmatprep.subr.mxu0 0.0
    %2852 = vmatpush1.msra.mxu0 0.0
    %2853 = vmatprep.subr.mxu0 0.0
    %2854 = vmatpush1.msra.mxu0 0.0
    %2855 = vmatprep.subr.mxu0 0.0
    %2856 = vmatpush1.msra.mxu0 0.0
    %2857 = vmatprep.subr.mxu0 0.0
    %2858 = vmatpush1.msra.mxu0 0.0
    %2859 = vmatprep.subr.mxu0 0.0
    %2860 = vmatpush1.msra.mxu0 0.0
    %2861 = vmatprep.subr.mxu0 0.0
    %2862 = vmatpush1.msra.mxu0 0.0
    %2863 = vmatprep.subr.mxu0 0.0
    %2864 = vmatpush1.msra.mxu0 0.0
    %2865 = vmatprep.subr.mxu0 0.0
    %2866 = vmatpush1.msra.mxu0 0.0
    %2867 = vmatprep.mubr.f32.mxu0 0.0
    %2868 = vmatmul.mubr.f32.gmra.mrb[0].mxu0 %v1518
    %v2869 = vpop.f32.mrb[0].mxu0
    %v2870 = vadd.f32 %v2801, %v2869
    %v2871 = vpop.f32.mrb[0].mxu0
    %2872 = vdwg.mxu0
    %v2873 = vtanh.pop %v2870
    %v2874 = vld [vmem:[%s39] sm:$0xff]
    %v2875 = vld [vmem:[%s39 + $0x8] sm:$0xff]
    %v2876 = vld [vmem:[%s39 + $0x10] sm:$0xff]
    %v2877 = vld [vmem:[%s39 + $0x18] sm:$0xff]
    %v2878 = vld [vmem:[%s39 + $0x20] sm:$0xff]
    %v2879 = vld [vmem:[%s39 + $0x28] sm:$0xff]
    %v2880 = vld [vmem:[%s39 + $0x30] sm:$0xff]
    %v2881 = vld [vmem:[%s39 + $0x38] sm:$0xff]
    %v2882 = vld [vmem:[%s41] sm:$0x1]
    %v2884 = vlaneseq
    %v2885 = vshrl.u32 %v2884, 7
    %v2886 = vsub.s32 0, %v2885
    %v2887 = vrot.slane %v2882, %v2886
    %2889 = vmatprep.subr.mxu0 0.0
    %2890 = vmatpush1.msra.mxu0 %v2874
    %2891 = vmatprep.subr.mxu0 0.0
    %2892 = vmatpush1.msra.mxu0 %v2875
    %2893 = vmatprep.subr.mxu0 0.0
    %2894 = vmatpush1.msra.mxu0 %v2876
    %2895 = vmatprep.subr.mxu0 0.0
    %2896 = vmatpush1.msra.mxu0 %v2877
    %2897 = vmatprep.subr.mxu0 0.0
    %2898 = vmatpush1.msra.mxu0 %v2878
    %2899 = vmatprep.subr.mxu0 0.0
    %2900 = vmatpush1.msra.mxu0 %v2879
    %2901 = vmatprep.subr.mxu0 0.0
    %2902 = vmatpush1.msra.mxu0 %v2880
    %2903 = vmatprep.subr.mxu0 0.0
    %2904 = vmatpush1.msra.mxu0 %v2881
    %2905 = vmatprep.subr.mxu0 0.0
    %2906 = vmatpush1.msra.mxu0 0.0
    %2907 = vmatprep.subr.mxu0 0.0
    %2908 = vmatpush1.msra.mxu0 0.0
    %2909 = vmatprep.subr.mxu0 0.0
    %2910 = vmatpush1.msra.mxu0 0.0
    %2911 = vmatprep.subr.mxu0 0.0
    %2912 = vmatpush1.msra.mxu0 0.0
    %2913 = vmatprep.subr.mxu0 0.0
    %2914 = vmatpush1.msra.mxu0 0.0
    %2915 = vmatprep.subr.mxu0 0.0
    %2916 = vmatpush1.msra.mxu0 0.0
    %2917 = vmatprep.subr.mxu0 0.0
    %2918 = vmatpush1.msra.mxu0 0.0
    %2919 = vmatprep.subr.mxu0 0.0
    %2920 = vmatpush1.msra.mxu0 0.0
    %2921 = vmatprep.subr.mxu0 0.0
    %2922 = vmatpush1.msra.mxu0 0.0
    %2923 = vmatprep.subr.mxu0 0.0
    %2924 = vmatpush1.msra.mxu0 0.0
    %2925 = vmatprep.subr.mxu0 0.0
    %2926 = vmatpush1.msra.mxu0 0.0
    %2927 = vmatprep.subr.mxu0 0.0
    %2928 = vmatpush1.msra.mxu0 0.0
    %2929 = vmatprep.subr.mxu0 0.0
    %2930 = vmatpush1.msra.mxu0 0.0
    %2931 = vmatprep.subr.mxu0 0.0
    %2932 = vmatpush1.msra.mxu0 0.0
    %2933 = vmatprep.subr.mxu0 0.0
    %2934 = vmatpush1.msra.mxu0 0.0
    %2935 = vmatprep.subr.mxu0 0.0
    %2936 = vmatpush1.msra.mxu0 0.0
    %2937 = vmatprep.subr.mxu0 0.0
    %2938 = vmatpush1.msra.mxu0 0.0
    %2939 = vmatprep.subr.mxu0 0.0
    %2940 = vmatpush1.msra.mxu0 0.0
    %2941 = vmatprep.subr.mxu0 0.0
    %2942 = vmatpush1.msra.mxu0 0.0
    %2943 = vmatprep.subr.mxu0 0.0
    %2944 = vmatpush1.msra.mxu0 0.0
    %2945 = vmatprep.subr.mxu0 0.0
    %2946 = vmatpush1.msra.mxu0 0.0
    %2947 = vmatprep.subr.mxu0 0.0
    %2948 = vmatpush1.msra.mxu0 0.0
    %2949 = vmatprep.subr.mxu0 0.0
    %2950 = vmatpush1.msra.mxu0 0.0
    %2951 = vmatprep.subr.mxu0 0.0
    %2952 = vmatpush1.msra.mxu0 0.0
    %2953 = vmatprep.mubr.f32.mxu0 0.0
    %2954 = vmatmul.mubr.f32.gmra.mrb[0].mxu0 %v1518
    %v2955 = vpop.f32.mrb[0].mxu0
    %v2956 = vadd.f32 %v2887, %v2955
    %v2957 = vpop.f32.mrb[0].mxu0
    %2958 = vdwg.mxu0
    %v2959 = vxor.u32 %v2956, 2147483648
    %v2960 = vmul.f32 %v2959, 1.442695
    %v2961 = vpow.pop %v2960
    %v2962 = vadd.f32 %v2961, 1.0
    %v2963 = vrcp.pop %v2962
    %v2964 = vmul.f32 1.0, %v2963
    %v2965 = vmul.f32 %v2873, %v2964
    %v2966 = vld [vmem:[%s43] sm:$0xff]
    %v2967 = vld [vmem:[%s43 + $0x8] sm:$0xff]
    %v2968 = vld [vmem:[%s43 + $0x10] sm:$0xff]
    %v2969 = vld [vmem:[%s43 + $0x18] sm:$0xff]
    %v2970 = vld [vmem:[%s43 + $0x20] sm:$0xff]
    %v2971 = vld [vmem:[%s43 + $0x28] sm:$0xff]
    %v2972 = vld [vmem:[%s43 + $0x30] sm:$0xff]
    %v2973 = vld [vmem:[%s43 + $0x38] sm:$0xff]
    %v2974 = vld [vmem:[%s43 + $0x40] sm:$0xff]
    %v2975 = vld [vmem:[%s43 + $0x48] sm:$0xff]
    %v2976 = vld [vmem:[%s43 + $0x50] sm:$0xff]
    %v2977 = vld [vmem:[%s43 + $0x58] sm:$0xff]
    %v2978 = vld [vmem:[%s43 + $0x60] sm:$0xff]
    %v2979 = vld [vmem:[%s43 + $0x68] sm:$0xff]
    %v2980 = vld [vmem:[%s43 + $0x70] sm:$0xff]
    %v2981 = vld [vmem:[%s43 + $0x78] sm:$0xff]
    %v2982 = vld [vmem:[%s43 + $0x80] sm:$0xff]
    %v2983 = vld [vmem:[%s43 + $0x88] sm:$0xff]
    %v2984 = vld [vmem:[%s43 + $0x90] sm:$0xff]
    %v2985 = vld [vmem:[%s43 + $0x98] sm:$0xff]
    %v2986 = vld [vmem:[%s43 + $0xa0] sm:$0xff]
    %v2987 = vld [vmem:[%s43 + $0xa8] sm:$0xff]
    %v2988 = vld [vmem:[%s43 + $0xb0] sm:$0xff]
    %v2989 = vld [vmem:[%s43 + $0xb8] sm:$0xff]
    %v2990 = vld [vmem:[%s43 + $0xc0] sm:$0xff]
    %v2991 = vld [vmem:[%s43 + $0xc8] sm:$0xff]
    %v2992 = vld [vmem:[%s43 + $0xd0] sm:$0xff]
    %v2993 = vld [vmem:[%s43 + $0xd8] sm:$0xff]
    %v2994 = vld [vmem:[%s43 + $0xe0] sm:$0xff]
    %v2995 = vld [vmem:[%s43 + $0xe8] sm:$0xff]
    %v2996 = vld [vmem:[%s43 + $0xf0] sm:$0xff]
    %v2997 = vld [vmem:[%s43 + $0xf8] sm:$0xff]
    %v2998 = vld [vmem:[%s45] sm:$0x1]
    %v3000 = vlaneseq
    %v3001 = vshrl.u32 %v3000, 7
    %v3002 = vsub.s32 0, %v3001
    %v3003 = vrot.slane %v2998, %v3002
    %3005 = vmatprep.subr.mxu0 0.0
    %3006 = vmatpush1.msra.mxu0 %v2966
    %3007 = vmatprep.subr.mxu0 0.0
    %3008 = vmatpush1.msra.mxu0 %v2967
    %3009 = vmatprep.subr.mxu0 0.0
    %3010 = vmatpush1.msra.mxu0 %v2968
    %3011 = vmatprep.subr.mxu0 0.0
    %3012 = vmatpush1.msra.mxu0 %v2969
    %3013 = vmatprep.subr.mxu0 0.0
    %3014 = vmatpush1.msra.mxu0 %v2970
    %3015 = vmatprep.subr.mxu0 0.0
    %3016 = vmatpush1.msra.mxu0 %v2971
    %3017 = vmatprep.subr.mxu0 0.0
    %3018 = vmatpush1.msra.mxu0 %v2972
    %3019 = vmatprep.subr.mxu0 0.0
    %3020 = vmatpush1.msra.mxu0 %v2973
    %3021 = vmatprep.subr.mxu0 0.0
    %3022 = vmatpush1.msra.mxu0 %v2974
    %3023 = vmatprep.subr.mxu0 0.0
    %3024 = vmatpush1.msra.mxu0 %v2975
    %3025 = vmatprep.subr.mxu0 0.0
    %3026 = vmatpush1.msra.mxu0 %v2976
    %3027 = vmatprep.subr.mxu0 0.0
    %3028 = vmatpush1.msra.mxu0 %v2977
    %3029 = vmatprep.subr.mxu0 0.0
    %3030 = vmatpush1.msra.mxu0 %v2978
    %3031 = vmatprep.subr.mxu0 0.0
    %3032 = vmatpush1.msra.mxu0 %v2979
    %3033 = vmatprep.subr.mxu0 0.0
    %3034 = vmatpush1.msra.mxu0 %v2980
    %3035 = vmatprep.subr.mxu0 0.0
    %3036 = vmatpush1.msra.mxu0 %v2981
    %3037 = vmatprep.subr.mxu0 0.0
    %3038 = vmatpush1.msra.mxu0 %v2982
    %3039 = vmatprep.subr.mxu0 0.0
    %3040 = vmatpush1.msra.mxu0 %v2983
    %3041 = vmatprep.subr.mxu0 0.0
    %3042 = vmatpush1.msra.mxu0 %v2984
    %3043 = vmatprep.subr.mxu0 0.0
    %3044 = vmatpush1.msra.mxu0 %v2985
    %3045 = vmatprep.subr.mxu0 0.0
    %3046 = vmatpush1.msra.mxu0 %v2986
    %3047 = vmatprep.subr.mxu0 0.0
    %3048 = vmatpush1.msra.mxu0 %v2987
    %3049 = vmatprep.subr.mxu0 0.0
    %3050 = vmatpush1.msra.mxu0 %v2988
    %3051 = vmatprep.subr.mxu0 0.0
    %3052 = vmatpush1.msra.mxu0 %v2989
    %3053 = vmatprep.subr.mxu0 0.0
    %3054 = vmatpush1.msra.mxu0 %v2990
    %3055 = vmatprep.subr.mxu0 0.0
    %3056 = vmatpush1.msra.mxu0 %v2991
    %3057 = vmatprep.subr.mxu0 0.0
    %3058 = vmatpush1.msra.mxu0 %v2992
    %3059 = vmatprep.subr.mxu0 0.0
    %3060 = vmatpush1.msra.mxu0 %v2993
    %3061 = vmatprep.subr.mxu0 0.0
    %3062 = vmatpush1.msra.mxu0 %v2994
    %3063 = vmatprep.subr.mxu0 0.0
    %3064 = vmatpush1.msra.mxu0 %v2995
    %3065 = vmatprep.subr.mxu0 0.0
    %3066 = vmatpush1.msra.mxu0 %v2996
    %3067 = vmatprep.subr.mxu0 0.0
    %3068 = vmatpush1.msra.mxu0 %v2997
    %3069 = vmatprep.mubr.f32.mxu0 %v2786
    %3070 = vmatmul.mubr.f32.gmra.mrb[0].mxu0 %v2784
    %v3071 = vpop.f32.mrb[0].mxu0
    %v3072 = vadd.f32 %v3003, %v3071
    %v3073 = vpop.f32.mrb[0].mxu0
    %3074 = vdwg.mxu0
    %v3075 = vtanh.pop %v3072
    %v3076 = vld [vmem:[%s47] sm:$0xff]
    %v3077 = vld [vmem:[%s47 + $0x8] sm:$0xff]
    %v3078 = vld [vmem:[%s47 + $0x10] sm:$0xff]
    %v3079 = vld [vmem:[%s47 + $0x18] sm:$0xff]
    %v3080 = vld [vmem:[%s47 + $0x20] sm:$0xff]
    %v3081 = vld [vmem:[%s47 + $0x28] sm:$0xff]
    %v3082 = vld [vmem:[%s47 + $0x30] sm:$0xff]
    %v3083 = vld [vmem:[%s47 + $0x38] sm:$0xff]
    %v3084 = vld [vmem:[%s47 + $0x40] sm:$0xff]
    %v3085 = vld [vmem:[%s47 + $0x48] sm:$0xff]
    %v3086 = vld [vmem:[%s47 + $0x50] sm:$0xff]
    %v3087 = vld [vmem:[%s47 + $0x58] sm:$0xff]
    %v3088 = vld [vmem:[%s47 + $0x60] sm:$0xff]
    %v3089 = vld [vmem:[%s47 + $0x68] sm:$0xff]
    %v3090 = vld [vmem:[%s47 + $0x70] sm:$0xff]
    %v3091 = vld [vmem:[%s47 + $0x78] sm:$0xff]
    %v3092 = vld [vmem:[%s47 + $0x80] sm:$0xff]
    %v3093 = vld [vmem:[%s47 + $0x88] sm:$0xff]
    %v3094 = vld [vmem:[%s47 + $0x90] sm:$0xff]
    %v3095 = vld [vmem:[%s47 + $0x98] sm:$0xff]
    %v3096 = vld [vmem:[%s47 + $0xa0] sm:$0xff]
    %v3097 = vld [vmem:[%s47 + $0xa8] sm:$0xff]
    %v3098 = vld [vmem:[%s47 + $0xb0] sm:$0xff]
    %v3099 = vld [vmem:[%s47 + $0xb8] sm:$0xff]
    %v3100 = vld [vmem:[%s47 + $0xc0] sm:$0xff]
    %v3101 = vld [vmem:[%s47 + $0xc8] sm:$0xff]
    %v3102 = vld [vmem:[%s47 + $0xd0] sm:$0xff]
    %v3103 = vld [vmem:[%s47 + $0xd8] sm:$0xff]
    %v3104 = vld [vmem:[%s47 + $0xe0] sm:$0xff]
    %v3105 = vld [vmem:[%s47 + $0xe8] sm:$0xff]
    %v3106 = vld [vmem:[%s47 + $0xf0] sm:$0xff]
    %v3107 = vld [vmem:[%s47 + $0xf8] sm:$0xff]
    %v3108 = vld [vmem:[%s49] sm:$0x1]
    %v3110 = vlaneseq
    %v3111 = vshrl.u32 %v3110, 7
    %v3112 = vsub.s32 0, %v3111
    %v3113 = vrot.slane %v3108, %v3112
    %3115 = vmatprep.subr.mxu0 0.0
    %3116 = vmatpush1.msra.mxu0 %v3076
    %3117 = vmatprep.subr.mxu0 0.0
    %3118 = vmatpush1.msra.mxu0 %v3077
    %3119 = vmatprep.subr.mxu0 0.0
    %3120 = vmatpush1.msra.mxu0 %v3078
    %3121 = vmatprep.subr.mxu0 0.0
    %3122 = vmatpush1.msra.mxu0 %v3079
    %3123 = vmatprep.subr.mxu0 0.0
    %3124 = vmatpush1.msra.mxu0 %v3080
    %3125 = vmatprep.subr.mxu0 0.0
    %3126 = vmatpush1.msra.mxu0 %v3081
    %3127 = vmatprep.subr.mxu0 0.0
    %3128 = vmatpush1.msra.mxu0 %v3082
    %3129 = vmatprep.subr.mxu0 0.0
    %3130 = vmatpush1.msra.mxu0 %v3083
    %3131 = vmatprep.subr.mxu0 0.0
    %3132 = vmatpush1.msra.mxu0 %v3084
    %3133 = vmatprep.subr.mxu0 0.0
    %3134 = vmatpush1.msra.mxu0 %v3085
    %3135 = vmatprep.subr.mxu0 0.0
    %3136 = vmatpush1.msra.mxu0 %v3086
    %3137 = vmatprep.subr.mxu0 0.0
    %3138 = vmatpush1.msra.mxu0 %v3087
    %3139 = vmatprep.subr.mxu0 0.0
    %3140 = vmatpush1.msra.mxu0 %v3088
    %3141 = vmatprep.subr.mxu0 0.0
    %3142 = vmatpush1.msra.mxu0 %v3089
    %3143 = vmatprep.subr.mxu0 0.0
    %3144 = vmatpush1.msra.mxu0 %v3090
    %3145 = vmatprep.subr.mxu0 0.0
    %3146 = vmatpush1.msra.mxu0 %v3091
    %3147 = vmatprep.subr.mxu0 0.0
    %3148 = vmatpush1.msra.mxu0 %v3092
    %3149 = vmatprep.subr.mxu0 0.0
    %3150 = vmatpush1.msra.mxu0 %v3093
    %3151 = vmatprep.subr.mxu0 0.0
    %3152 = vmatpush1.msra.mxu0 %v3094
    %3153 = vmatprep.subr.mxu0 0.0
    %3154 = vmatpush1.msra.mxu0 %v3095
    %3155 = vmatprep.subr.mxu0 0.0
    %3156 = vmatpush1.msra.mxu0 %v3096
    %3157 = vmatprep.subr.mxu0 0.0
    %3158 = vmatpush1.msra.mxu0 %v3097
    %3159 = vmatprep.subr.mxu0 0.0
    %3160 = vmatpush1.msra.mxu0 %v3098
    %3161 = vmatprep.subr.mxu0 0.0
    %3162 = vmatpush1.msra.mxu0 %v3099
    %3163 = vmatprep.subr.mxu0 0.0
    %3164 = vmatpush1.msra.mxu0 %v3100
    %3165 = vmatprep.subr.mxu0 0.0
    %3166 = vmatpush1.msra.mxu0 %v3101
    %3167 = vmatprep.subr.mxu0 0.0
    %3168 = vmatpush1.msra.mxu0 %v3102
    %3169 = vmatprep.subr.mxu0 0.0
    %3170 = vmatpush1.msra.mxu0 %v3103
    %3171 = vmatprep.subr.mxu0 0.0
    %3172 = vmatpush1.msra.mxu0 %v3104
    %3173 = vmatprep.subr.mxu0 0.0
    %3174 = vmatpush1.msra.mxu0 %v3105
    %3175 = vmatprep.subr.mxu0 0.0
    %3176 = vmatpush1.msra.mxu0 %v3106
    %3177 = vmatprep.subr.mxu0 0.0
    %3178 = vmatpush1.msra.mxu0 %v3107
    %3179 = vmatprep.mubr.f32.mxu0 %v2786
    %3180 = vmatmul.mubr.f32.gmra.mrb[0].mxu0 %v2784
    %v3181 = vpop.f32.mrb[0].mxu0
    %v3182 = vadd.f32 %v3113, %v3181
    %v3183 = vpop.f32.mrb[0].mxu0
    %3184 = vdwg.mxu0
    %v3185 = vxor.u32 %v3182, 2147483648
    %v3186 = vmul.f32 %v3185, 1.442695
    %v3187 = vpow.pop %v3186
    %v3188 = vadd.f32 %v3187, 1.0
    %v3189 = vrcp.pop %v3188
    %v3190 = vmul.f32 1.0, %v3189
    %v3191 = vmul.f32 %v3075, %v3190
    %v3192 = vmul.f32 %v2965, %v3191
    %v3193 = vld [vmem:[%s51] sm:$0xff]
    %v3194 = vld [vmem:[%s51 + $0x8] sm:$0xff]
    %v3195 = vld [vmem:[%s51 + $0x10] sm:$0xff]
    %v3196 = vld [vmem:[%s51 + $0x18] sm:$0xff]
    %v3197 = vld [vmem:[%s51 + $0x20] sm:$0xff]
    %v3198 = vld [vmem:[%s51 + $0x28] sm:$0xff]
    %v3199 = vld [vmem:[%s51 + $0x30] sm:$0xff]
    %v3200 = vld [vmem:[%s51 + $0x38] sm:$0xff]
    %v3201 = vld [vmem:[%s53] sm:$0x1]
    %v3203 = vlaneseq
    %v3204 = vshrl.u32 %v3203, 7
    %v3205 = vsub.s32 0, %v3204
    %v3206 = vrot.slane %v3201, %v3205
    %v3209 = vsel %vm345, %v3192, 0
    %3211 = vmatprep.subr.mxu0 0.0
    %3212 = vmatpush1.msra.mxu0 %v3193
    %3213 = vmatprep.subr.mxu0 0.0
    %3214 = vmatpush1.msra.mxu0 %v3194
    %3215 = vmatprep.subr.mxu0 0.0
    %3216 = vmatpush1.msra.mxu0 %v3195
    %3217 = vmatprep.subr.mxu0 0.0
    %3218 = vmatpush1.msra.mxu0 %v3196
    %3219 = vmatprep.subr.mxu0 0.0
    %3220 = vmatpush1.msra.mxu0 %v3197
    %3221 = vmatprep.subr.mxu0 0.0
    %3222 = vmatpush1.msra.mxu0 %v3198
    %3223 = vmatprep.subr.mxu0 0.0
    %3224 = vmatpush1.msra.mxu0 %v3199
    %3225 = vmatprep.subr.mxu0 0.0
    %3226 = vmatpush1.msra.mxu0 %v3200
    %3227 = vmatprep.subr.mxu0 0.0
    %3228 = vmatpush1.msra.mxu0 0.0
    %3229 = vmatprep.subr.mxu0 0.0
    %3230 = vmatpush1.msra.mxu0 0.0
    %3231 = vmatprep.subr.mxu0 0.0
    %3232 = vmatpush1.msra.mxu0 0.0
    %3233 = vmatprep.subr.mxu0 0.0
    %3234 = vmatpush1.msra.mxu0 0.0
    %3235 = vmatprep.subr.mxu0 0.0
    %3236 = vmatpush1.msra.mxu0 0.0
    %3237 = vmatprep.subr.mxu0 0.0
    %3238 = vmatpush1.msra.mxu0 0.0
    %3239 = vmatprep.subr.mxu0 0.0
    %3240 = vmatpush1.msra.mxu0 0.0
    %3241 = vmatprep.subr.mxu0 0.0
    %3242 = vmatpush1.msra.mxu0 0.0
    %3243 = vmatprep.subr.mxu0 0.0
    %3244 = vmatpush1.msra.mxu0 0.0
    %3245 = vmatprep.subr.mxu0 0.0
    %3246 = vmatpush1.msra.mxu0 0.0
    %3247 = vmatprep.subr.mxu0 0.0
    %3248 = vmatpush1.msra.mxu0 0.0
    %3249 = vmatprep.subr.mxu0 0.0
    %3250 = vmatpush1.msra.mxu0 0.0
    %3251 = vmatprep.subr.mxu0 0.0
    %3252 = vmatpush1.msra.mxu0 0.0
    %3253 = vmatprep.subr.mxu0 0.0
    %3254 = vmatpush1.msra.mxu0 0.0
    %3255 = vmatprep.subr.mxu0 0.0
    %3256 = vmatpush1.msra.mxu0 0.0
    %3257 = vmatprep.subr.mxu0 0.0
    %3258 = vmatpush1.msra.mxu0 0.0
    %3259 = vmatprep.subr.mxu0 0.0
    %3260 = vmatpush1.msra.mxu0 0.0
    %3261 = vmatprep.subr.mxu0 0.0
    %3262 = vmatpush1.msra.mxu0 0.0
    %3263 = vmatprep.subr.mxu0 0.0
    %3264 = vmatpush1.msra.mxu0 0.0
    %3265 = vmatprep.subr.mxu0 0.0
    %3266 = vmatpush1.msra.mxu0 0.0
    %3267 = vmatprep.subr.mxu0 0.0
    %3268 = vmatpush1.msra.mxu0 0.0
    %3269 = vmatprep.subr.mxu0 0.0
    %3270 = vmatpush1.msra.mxu0 0.0
    %3271 = vmatprep.subr.mxu0 0.0
    %3272 = vmatpush1.msra.mxu0 0.0
    %3273 = vmatprep.subr.mxu0 0.0
    %3274 = vmatpush1.msra.mxu0 0.0
    %3275 = vmatprep.mubr.f32.mxu0 0.0
    %3276 = vmatmul.mubr.f32.gmra.mrb[0].mxu0 %v3209
    %v3277 = vpop.f32.mrb[0].mxu0
    %v3278 = vadd.f32 %v3206, %v3277
    %v3279 = vpop.f32.mrb[0].mxu0
    %3280 = vdwg.mxu0
    %v3281 = vtanh.pop %v3278
    %v3282 = vld [vmem:[%s55] sm:$0xff]
    %v3283 = vld [vmem:[%s55 + $0x8] sm:$0xff]
    %v3284 = vld [vmem:[%s55 + $0x10] sm:$0xff]
    %v3285 = vld [vmem:[%s55 + $0x18] sm:$0xff]
    %v3286 = vld [vmem:[%s55 + $0x20] sm:$0xff]
    %v3287 = vld [vmem:[%s55 + $0x28] sm:$0xff]
    %v3288 = vld [vmem:[%s55 + $0x30] sm:$0xff]
    %v3289 = vld [vmem:[%s55 + $0x38] sm:$0xff]
    %v3290 = vld [vmem:[%s57] sm:$0x1]
    %v3292 = vlaneseq
    %v3293 = vshrl.u32 %v3292, 7
    %v3294 = vsub.s32 0, %v3293
    %v3295 = vrot.slane %v3290, %v3294
    %3297 = vmatprep.subr.mxu0 0.0
    %3298 = vmatpush1.msra.mxu0 %v3282
    %3299 = vmatprep.subr.mxu0 0.0
    %3300 = vmatpush1.msra.mxu0 %v3283
    %3301 = vmatprep.subr.mxu0 0.0
    %3302 = vmatpush1.msra.mxu0 %v3284
    %3303 = vmatprep.subr.mxu0 0.0
    %3304 = vmatpush1.msra.mxu0 %v3285
    %3305 = vmatprep.subr.mxu0 0.0
    %3306 = vmatpush1.msra.mxu0 %v3286
    %3307 = vmatprep.subr.mxu0 0.0
    %3308 = vmatpush1.msra.mxu0 %v3287
    %3309 = vmatprep.subr.mxu0 0.0
    %3310 = vmatpush1.msra.mxu0 %v3288
    %3311 = vmatprep.subr.mxu0 0.0
    %3312 = vmatpush1.msra.mxu0 %v3289
    %3313 = vmatprep.subr.mxu0 0.0
    %3314 = vmatpush1.msra.mxu0 0.0
    %3315 = vmatprep.subr.mxu0 0.0
    %3316 = vmatpush1.msra.mxu0 0.0
    %3317 = vmatprep.subr.mxu0 0.0
    %3318 = vmatpush1.msra.mxu0 0.0
    %3319 = vmatprep.subr.mxu0 0.0
    %3320 = vmatpush1.msra.mxu0 0.0
    %3321 = vmatprep.subr.mxu0 0.0
    %3322 = vmatpush1.msra.mxu0 0.0
    %3323 = vmatprep.subr.mxu0 0.0
    %3324 = vmatpush1.msra.mxu0 0.0
    %3325 = vmatprep.subr.mxu0 0.0
    %3326 = vmatpush1.msra.mxu0 0.0
    %3327 = vmatprep.subr.mxu0 0.0
    %3328 = vmatpush1.msra.mxu0 0.0
    %3329 = vmatprep.subr.mxu0 0.0
    %3330 = vmatpush1.msra.mxu0 0.0
    %3331 = vmatprep.subr.mxu0 0.0
    %3332 = vmatpush1.msra.mxu0 0.0
    %3333 = vmatprep.subr.mxu0 0.0
    %3334 = vmatpush1.msra.mxu0 0.0
    %3335 = vmatprep.subr.mxu0 0.0
    %3336 = vmatpush1.msra.mxu0 0.0
    %3337 = vmatprep.subr.mxu0 0.0
    %3338 = vmatpush1.msra.mxu0 0.0
    %3339 = vmatprep.subr.mxu0 0.0
    %3340 = vmatpush1.msra.mxu0 0.0
    %3341 = vmatprep.subr.mxu0 0.0
    %3342 = vmatpush1.msra.mxu0 0.0
    %3343 = vmatprep.subr.mxu0 0.0
    %3344 = vmatpush1.msra.mxu0 0.0
    %3345 = vmatprep.subr.mxu0 0.0
    %3346 = vmatpush1.msra.mxu0 0.0
    %3347 = vmatprep.subr.mxu0 0.0
    %3348 = vmatpush1.msra.mxu0 0.0
    %3349 = vmatprep.subr.mxu0 0.0
    %3350 = vmatpush1.msra.mxu0 0.0
    %3351 = vmatprep.subr.mxu0 0.0
    %3352 = vmatpush1.msra.mxu0 0.0
    %3353 = vmatprep.subr.mxu0 0.0
    %3354 = vmatpush1.msra.mxu0 0.0
    %3355 = vmatprep.subr.mxu0 0.0
    %3356 = vmatpush1.msra.mxu0 0.0
    %3357 = vmatprep.subr.mxu0 0.0
    %3358 = vmatpush1.msra.mxu0 0.0
    %3359 = vmatprep.subr.mxu0 0.0
    %3360 = vmatpush1.msra.mxu0 0.0
    %3361 = vmatprep.mubr.f32.mxu0 0.0
    %3362 = vmatmul.mubr.f32.gmra.mrb[0].mxu0 %v3209
    %v3363 = vpop.f32.mrb[0].mxu0
    %v3364 = vadd.f32 %v3295, %v3363
    %v3365 = vpop.f32.mrb[0].mxu0
    %3366 = vdwg.mxu0
    %v3367 = vxor.u32 %v3364, 2147483648
    %v3368 = vmul.f32 %v3367, 1.442695
    %v3369 = vpow.pop %v3368
    %v3370 = vadd.f32 %v3369, 1.0
    %v3371 = vrcp.pop %v3370
    %v3372 = vmul.f32 1.0, %v3371
    %v3373 = vmul.f32 %v3281, %v3372
    %v3374 = vld [vmem:[%s59] sm:$0xff]
    %v3375 = vld [vmem:[%s59 + $0x8] sm:$0xff]
    %v3376 = vld [vmem:[%s59 + $0x10] sm:$0xff]
    %v3377 = vld [vmem:[%s59 + $0x18] sm:$0xff]
    %v3378 = vld [vmem:[%s59 + $0x20] sm:$0xff]
    %v3379 = vld [vmem:[%s59 + $0x28] sm:$0xff]
    %v3380 = vld [vmem:[%s59 + $0x30] sm:$0xff]
    %v3381 = vld [vmem:[%s59 + $0x38] sm:$0xff]
    %v3382 = vld [vmem:[%s61] sm:$0x1]
    %v3384 = vlaneseq
    %v3385 = vshrl.u32 %v3384, 7
    %v3386 = vsub.s32 0, %v3385
    %v3387 = vrot.slane %v3382, %v3386
    %v3390 = vsel %vm345, %v3373, 0
    %3392 = vmatprep.subr.mxu0 0.0
    %3393 = vmatpush1.msra.mxu0 %v3374
    %3394 = vmatprep.subr.mxu0 0.0
    %3395 = vmatpush1.msra.mxu0 %v3375
    %3396 = vmatprep.subr.mxu0 0.0
    %3397 = vmatpush1.msra.mxu0 %v3376
    %3398 = vmatprep.subr.mxu0 0.0
    %3399 = vmatpush1.msra.mxu0 %v3377
    %3400 = vmatprep.subr.mxu0 0.0
    %3401 = vmatpush1.msra.mxu0 %v3378
    %3402 = vmatprep.subr.mxu0 0.0
    %3403 = vmatpush1.msra.mxu0 %v3379
    %3404 = vmatprep.subr.mxu0 0.0
    %3405 = vmatpush1.msra.mxu0 %v3380
    %3406 = vmatprep.subr.mxu0 0.0
    %3407 = vmatpush1.msra.mxu0 %v3381
    %3408 = vmatprep.subr.mxu0 0.0
    %3409 = vmatpush1.msra.mxu0 0.0
    %3410 = vmatprep.subr.mxu0 0.0
    %3411 = vmatpush1.msra.mxu0 0.0
    %3412 = vmatprep.subr.mxu0 0.0
    %3413 = vmatpush1.msra.mxu0 0.0
    %3414 = vmatprep.subr.mxu0 0.0
    %3415 = vmatpush1.msra.mxu0 0.0
    %3416 = vmatprep.subr.mxu0 0.0
    %3417 = vmatpush1.msra.mxu0 0.0
    %3418 = vmatprep.subr.mxu0 0.0
    %3419 = vmatpush1.msra.mxu0 0.0
    %3420 = vmatprep.subr.mxu0 0.0
    %3421 = vmatpush1.msra.mxu0 0.0
    %3422 = vmatprep.subr.mxu0 0.0
    %3423 = vmatpush1.msra.mxu0 0.0
    %3424 = vmatprep.subr.mxu0 0.0
    %3425 = vmatpush1.msra.mxu0 0.0
    %3426 = vmatprep.subr.mxu0 0.0
    %3427 = vmatpush1.msra.mxu0 0.0
    %3428 = vmatprep.subr.mxu0 0.0
    %3429 = vmatpush1.msra.mxu0 0.0
    %3430 = vmatprep.subr.mxu0 0.0
    %3431 = vmatpush1.msra.mxu0 0.0
    %3432 = vmatprep.subr.mxu0 0.0
    %3433 = vmatpush1.msra.mxu0 0.0
    %3434 = vmatprep.subr.mxu0 0.0
    %3435 = vmatpush1.msra.mxu0 0.0
    %3436 = vmatprep.subr.mxu0 0.0
    %3437 = vmatpush1.msra.mxu0 0.0
    %3438 = vmatprep.subr.mxu0 0.0
    %3439 = vmatpush1.msra.mxu0 0.0
    %3440 = vmatprep.subr.mxu0 0.0
    %3441 = vmatpush1.msra.mxu0 0.0
    %3442 = vmatprep.subr.mxu0 0.0
    %3443 = vmatpush1.msra.mxu0 0.0
    %3444 = vmatprep.subr.mxu0 0.0
    %3445 = vmatpush1.msra.mxu0 0.0
    %3446 = vmatprep.subr.mxu0 0.0
    %3447 = vmatpush1.msra.mxu0 0.0
    %3448 = vmatprep.subr.mxu0 0.0
    %3449 = vmatpush1.msra.mxu0 0.0
    %3450 = vmatprep.subr.mxu0 0.0
    %3451 = vmatpush1.msra.mxu0 0.0
    %3452 = vmatprep.subr.mxu0 0.0
    %3453 = vmatpush1.msra.mxu0 0.0
    %3454 = vmatprep.subr.mxu0 0.0
    %3455 = vmatpush1.msra.mxu0 0.0
    %3456 = vmatprep.mubr.f32.mxu0 0.0
    %3457 = vmatmul.mubr.f32.gmra.mrb[0].mxu0 %v3390
    %v3458 = vpop.f32.mrb[0].mxu0
    %v3459 = vadd.f32 %v3387, %v3458
    %v3460 = vpop.f32.mrb[0].mxu0
    %3461 = vdwg.mxu0
    %vm3462 = vcmask 254976
    %3463 = vst.msk [vmem:[#allocation7] sm:$0x3] %vm3462, %v3459
    // Predicated region
    $region130: #{tpu_custom_call.1} parent=1 // pred_check
      _
    $region131: #{tpu_custom_call.1} parent=1 // pred_check_branch
      %3465 = sbr.rel (0) target = $region133
    $region132: #{tpu_custom_call.1} parent=1 // pred_region
      %s3467 = ssub.s32 32, 32
      %3468 = vsyncadd [#allocation5], %s3467
      %s3470 = sshll.u32 [#allocation7], 4
      %s3471 = int_to_ptr.vmem [resolvable:$true] %s3470
      %3473 = dma.vmem_to_hbm [thread:$0]  %s3471, 32, %s63, [#allocation5]
    $region133: #{tpu_custom_call.1} parent=1 // pred_fallthru
      _
    // Predicated region
    $region134: #{tpu_custom_call.1} parent=1 // pred_check
      _
    $region135: #{tpu_custom_call.1} parent=1 // pred_check_branch
      %3475 = sbr.rel (0) target = $region137
    $region136: #{tpu_custom_call.1} parent=1 // pred_region
      %3476 = dma.done [#allocation5], 32
    $region137: #{tpu_custom_call.1} parent=1 // pred_fallthru
      _
    %3477 = vsyncpa [#allocation5], 1
    %3478 = vsyncpa [#allocation6], 1

</llo_original>
